<compile_context>
chip_gen: v6e
topology: v6e:2x2x1
jax: 0.10.0
libtpu: 0.0.40
codegen_flags: <defaults>
</compile_context>

<pallas_src>
import math
from functools import partial

import numpy as np
import jax
import jax.numpy as jnp
from jax.experimental import pallas as pl
from jax.experimental.pallas import tpu as pltpu


def _norm_taps(fir_kernel):
    t = [float(v) for v in fir_kernel]
    s = sum(t)
    return [v / s for v in t]


def _down_matrix(n_out, n_in, pad, taps):
    """M[i, h] = taps[h + pad - 2*i]: stride-2 correlation with zero padding folded in."""
    K = len(taps)
    m = np.zeros((n_out, n_in), np.float32)
    for i in range(n_out):
        for d in range(K):
            h = 2 * i + d - pad
            if 0 <= h < n_in:
                m[i, h] = taps[d]
    return m


def _up_matrix(n_out, n_in, pad, taps):
    """M[y, m] = 2*taps[y - 2*m + pad]: stride-2 transposed conv (2*2 == the module's *4)."""
    K = len(taps)
    m = np.zeros((n_out, n_in), np.float32)
    for y in range(n_out):
        for mm in range(n_in):
            d = y - 2 * mm + pad
            if 0 <= d < K:
                m[y, mm] = 2.0 * taps[d]
    return m


def _sep_fir_kernel(tb, x_ref, a_ref, bt_ref, o_ref):
    # out[b] = A @ x[b] @ Bt   — two MXU matmuls per image, f32 accumulation.
    for b in range(tb):  # tb is small & static -> unrolled, scheduler-visible
        xb = x_ref[b].astype(jnp.float32)                       # (H, W)
        t = jnp.dot(xb, bt_ref[...],
                    precision=jax.lax.Precision.HIGHEST,
                    preferred_element_type=jnp.float32)         # (H, Wo)
        o_ref[b] = jnp.dot(a_ref[...], t,
                           precision=jax.lax.Precision.HIGHEST,
                           preferred_element_type=jnp.float32).astype(o_ref.dtype)


def _pick_batch_tile(B, H, W, itemsize, vmem_budget_bytes=2 << 20, max_unroll=4):
    """Largest divisor of B that keeps one input block within the VMEM budget."""
    cap = max(1, min(max_unroll, vmem_budget_bytes // max(1, H * W * itemsize)))
    tb = 1
    for d in range(1, B + 1):
        if B % d == 0 and d <= cap:
            tb = d
    return tb


def resample(x, fir_kernel, up_or_down):
    """Equivalent of Resample(fir_kernel, buffer_padding=False, causal=False)(x, up_or_down)."""
    N, C, H, W = x.shape
    taps = _norm_taps(fir_kernel)
    K = len(taps)
    B = N * C
    xb = x.reshape(B, H, W)  # free: collapse leading dims, W stays on lanes

    if up_or_down == 'down':
        pH = math.ceil(K / 2) - 1 if H % 2 == 0 else math.ceil((K + 1) / 2) - 1
        pW = math.ceil(K / 2) - 1 if W % 2 == 0 else math.ceil((K + 1) / 2) - 1
        Ho = (H + 2 * pH - K) // 2 + 1
        Wo = (W + 2 * pW - K) // 2 + 1
        A = _down_matrix(Ho, H, pH, taps)
        Bt = np.ascontiguousarray(_down_matrix(Wo, W, pW, taps).T)
    elif up_or_down == 'up':
        p = (K - 1) // 2  # padding used by conv_transpose2d in the module
        Ho = (H - 1) * 2 - 2 * p + K
        Wo = (W - 1) * 2 - 2 * p + K
        A = _up_matrix(Ho, H, p, taps)
        Bt = np.ascontiguousarray(_up_matrix(Wo, W, p, taps).T)
    else:
        raise ValueError(f"up_or_down must be up or down, got {up_or_down}")

    A = jnp.asarray(A)     # (Ho, H) f32
    Bt = jnp.asarray(Bt)   # (W, Wo) f32

    TB = _pick_batch_tile(B, H, W, x.dtype.itemsize)
    grid = (B // TB,)

    out = pl.pallas_call(
        partial(_sep_fir_kernel, TB),
        out_shape=jax.ShapeDtypeStruct((B, Ho, Wo), x.dtype),
        grid=grid,
        in_specs=[
            pl.BlockSpec((TB, H, W), lambda i: (i, 0, 0)),   # walk batch tiles
            pl.BlockSpec((Ho, H), lambda i: (0, 0)),         # resident H-filter matrix
            pl.BlockSpec((W, Wo), lambda i: (0, 0)),         # resident W-filter matrix
        ],
        out_specs=pl.BlockSpec((TB, Ho, Wo), lambda i: (i, 0, 0)),
        compiler_params=pltpu.CompilerParams(
            dimension_semantics=("parallel",),
            vmem_limit_bytes=32 * 1024 * 1024,
        ),
    )(xb, A, Bt)
    return out.reshape(N, C, Ho, Wo)


def _reference(x, fir_kernel, up_or_down):
    """Pure-JAX reference matching F.conv2d / F.conv_transpose2d semantics."""
    N, C, H, W = x.shape
    fir = jnp.asarray(fir_kernel, jnp.float32)
    k2 = jnp.outer(fir, fir)
    k2 = k2 / k2.sum()
    K = k2.shape[0]
    xb = x.reshape(N * C, 1, H, W).astype(jnp.float32)
    dn = ('NCHW', 'OIHW', 'NCHW')
    if up_or_down == 'down':
        pH = math.ceil(K / 2) - 1 if H % 2 == 0 else math.ceil((K + 1) / 2) - 1
        pW = math.ceil(K / 2) - 1 if W % 2 == 0 else math.ceil((K + 1) / 2) - 1
        out = jax.lax.conv_general_dilated(
            xb, k2[None, None], window_strides=(2, 2),
            padding=[(pH, pH), (pW, pW)], dimension_numbers=dn,
            precision=jax.lax.Precision.HIGHEST)
    else:
        p = (K - 1) // 2
        out = jax.lax.conv_general_dilated(
            xb, jnp.flip(k2)[None, None] * 4.0, window_strides=(1, 1),
            padding=[(K - 1 - p, K - 1 - p)] * 2, lhs_dilation=(2, 2),
            dimension_numbers=dn, precision=jax.lax.Precision.HIGHEST)
    return out.reshape(N, C, out.shape[-2], out.shape[-1])


if __name__ == "__main__":
    key = jax.random.PRNGKey(0)
    fir = (1.0, 3.0, 3.0, 1.0)   # deterministic FIR buffer (same as module __init__)

    # Even spatial dims, f32 (primary case).
    N, C, H, W = 2, 4, 16, 16
    x = jax.random.normal(key, (N, C, H, W), dtype=jnp.float32)
    y_down = resample(x, fir, 'down')
    y_up = resample(x, fir, 'up')
    jax.block_until_ready((y_down, y_up))
    assert y_down.shape == (N, C, H // 2, W // 2), y_down.shape
    assert y_up.shape == (N, C, 2 * H, 2 * W), y_up.shape
    ref_down = _reference(x, fir, 'down')
    ref_up = _reference(x, fir, 'up')
    assert jnp.allclose(y_down, ref_down, rtol=1e-3, atol=1e-3)
    assert jnp.allclose(y_up, ref_up, rtol=1e-3, atol=1e-3)

    # Odd spatial dims, f32.
    x2 = jax.random.normal(jax.random.PRNGKey(1), (1, 3, 11, 13), dtype=jnp.float32)
    y2d = resample(x2, fir, 'down')
    y2u = resample(x2, fir, 'up')
    jax.block_until_ready((y2d, y2u))
    assert jnp.allclose(y2d, _reference(x2, fir, 'down'), rtol=1e-3, atol=1e-3)
    assert jnp.allclose(y2u, _reference(x2, fir, 'up'), rtol=1e-3, atol=1e-3)

    # bf16 input (cast once in-kernel, f32 accumulate, bf16 output).
    x16 = x.astype(jnp.bfloat16)
    y3d = resample(x16, fir, 'down')
    jax.block_until_ready(y3d)
    ref3 = _reference(x16.astype(jnp.float32), fir, 'down')
    assert jnp.allclose(y3d.astype(jnp.float32), ref3, rtol=2e-2, atol=2e-2)

    print("KERNEL_OK")
</pallas_src>

<mosaic_0001>
module attributes {stable_mosaic.version = 11 : i64} {
  func.func @_sep_fir_kernel(%arg0: i32, %arg1: memref<4x16x16xf32, #tpu.memory_space<vmem>>, %arg2: memref<8x16xf32, #tpu.memory_space<vmem>>, %arg3: memref<16x8xf32, #tpu.memory_space<vmem>>, %arg4: memref<4x8x8xf32, #tpu.memory_space<vmem>>) attributes {dimension_semantics = [#tpu.dimension_semantics<parallel>], iteration_bounds = array<i64: 2>, scalar_prefetch = 0 : i64, scratch_operands = 0 : i64, tpu.core_type = #tpu.core_type<tc>, window_params = [{transform_indices = @transform_0, window_bounds = array<i64: 4, 16, 16>}, {pipeline_mode = #tpu.pipeline_mode<synchronous>, transform_indices = @transform_1, window_bounds = array<i64: 8, 16>}, {pipeline_mode = #tpu.pipeline_mode<synchronous>, transform_indices = @transform_2, window_bounds = array<i64: 16, 8>}, {transform_indices = @transform_3, window_bounds = array<i64: 4, 8, 8>}]} {
    %c0 = arith.constant 0 : index
    %c0_0 = arith.constant 0 : index
    %c0_1 = arith.constant 0 : index
    %0 = vector.load %arg1[%c0, %c0_0, %c0_1] : memref<4x16x16xf32, #tpu.memory_space<vmem>>, vector<1x16x16xf32>
    %1 = vector.shape_cast %0 : vector<1x16x16xf32> to vector<16x16xf32>
    %c0_2 = arith.constant 0 : index
    %c0_3 = arith.constant 0 : index
    %2 = vector.load %arg3[%c0_2, %c0_3] : memref<16x8xf32, #tpu.memory_space<vmem>>, vector<16x8xf32>
    %cst = arith.constant dense<0.000000e+00> : vector<16x8xf32>
    %3 = tpu.matmul %1, %2, %cst {dimension_numbers = #tpu.dot_dimension_numbers<[1], [0], [0], [1], [0, 0, 1, 1], [], []>, precision = #tpu.contract_precision<fp32>} : vector<16x16xf32>, vector<16x8xf32>, vector<16x8xf32> -> vector<16x8xf32>
    %c0_4 = arith.constant 0 : index
    %c0_5 = arith.constant 0 : index
    %4 = vector.load %arg2[%c0_4, %c0_5] : memref<8x16xf32, #tpu.memory_space<vmem>>, vector<8x16xf32>
    %cst_6 = arith.constant dense<0.000000e+00> : vector<8x8xf32>
    %5 = tpu.matmul %4, %3, %cst_6 {dimension_numbers = #tpu.dot_dimension_numbers<[1], [0], [0], [1], [0, 0, 1, 1], [], []>, precision = #tpu.contract_precision<fp32>} : vector<8x16xf32>, vector<16x8xf32>, vector<8x8xf32> -> vector<8x8xf32>
    %c0_7 = arith.constant 0 : index
    %c0_8 = arith.constant 0 : index
    %c0_9 = arith.constant 0 : index
    %6 = vector.load %arg4[%c0_7, %c0_8, %c0_9] : memref<4x8x8xf32, #tpu.memory_space<vmem>>, vector<1x8x8xf32>
    %7 = vector.shape_cast %6 : vector<1x8x8xf32> to vector<8x8xf32>
    %8 = vector.shape_cast %5 : vector<8x8xf32> to vector<1x8x8xf32>
    tpu.vector_store %arg4[%c0_7, %c0_8, %c0_9], %8 {strides = array<i32>} : memref<4x8x8xf32, #tpu.memory_space<vmem>>, vector<1x8x8xf32>,
    %c1 = arith.constant 1 : index
    %c0_10 = arith.constant 0 : index
    %c0_11 = arith.constant 0 : index
    %9 = vector.load %arg1[%c1, %c0_10, %c0_11] : memref<4x16x16xf32, #tpu.memory_space<vmem>>, vector<1x16x16xf32>
    %10 = vector.shape_cast %9 : vector<1x16x16xf32> to vector<16x16xf32>
    %c0_12 = arith.constant 0 : index
    %c0_13 = arith.constant 0 : index
    %11 = vector.load %arg3[%c0_12, %c0_13] : memref<16x8xf32, #tpu.memory_space<vmem>>, vector<16x8xf32>
    %cst_14 = arith.constant dense<0.000000e+00> : vector<16x8xf32>
    %12 = tpu.matmul %10, %11, %cst_14 {dimension_numbers = #tpu.dot_dimension_numbers<[1], [0], [0], [1], [0, 0, 1, 1], [], []>, precision = #tpu.contract_precision<fp32>} : vector<16x16xf32>, vector<16x8xf32>, vector<16x8xf32> -> vector<16x8xf32>
    %c0_15 = arith.constant 0 : index
    %c0_16 = arith.constant 0 : index
    %13 = vector.load %arg2[%c0_15, %c0_16] : memref<8x16xf32, #tpu.memory_space<vmem>>, vector<8x16xf32>
    %cst_17 = arith.constant dense<0.000000e+00> : vector<8x8xf32>
    %14 = tpu.matmul %13, %12, %cst_17 {dimension_numbers = #tpu.dot_dimension_numbers<[1], [0], [0], [1], [0, 0, 1, 1], [], []>, precision = #tpu.contract_precision<fp32>} : vector<8x16xf32>, vector<16x8xf32>, vector<8x8xf32> -> vector<8x8xf32>
    %c1_18 = arith.constant 1 : index
    %c0_19 = arith.constant 0 : index
    %c0_20 = arith.constant 0 : index
    %15 = vector.load %arg4[%c1_18, %c0_19, %c0_20] : memref<4x8x8xf32, #tpu.memory_space<vmem>>, vector<1x8x8xf32>
    %16 = vector.shape_cast %15 : vector<1x8x8xf32> to vector<8x8xf32>
    %17 = vector.shape_cast %14 : vector<8x8xf32> to vector<1x8x8xf32>
    tpu.vector_store %arg4[%c1_18, %c0_19, %c0_20], %17 {strides = array<i32>} : memref<4x8x8xf32, #tpu.memory_space<vmem>>, vector<1x8x8xf32>,
    %c2 = arith.constant 2 : index
    %c0_21 = arith.constant 0 : index
    %c0_22 = arith.constant 0 : index
    %18 = vector.load %arg1[%c2, %c0_21, %c0_22] : memref<4x16x16xf32, #tpu.memory_space<vmem>>, vector<1x16x16xf32>
    %19 = vector.shape_cast %18 : vector<1x16x16xf32> to vector<16x16xf32>
    %c0_23 = arith.constant 0 : index
    %c0_24 = arith.constant 0 : index
    %20 = vector.load %arg3[%c0_23, %c0_24] : memref<16x8xf32, #tpu.memory_space<vmem>>, vector<16x8xf32>
    %cst_25 = arith.constant dense<0.000000e+00> : vector<16x8xf32>
    %21 = tpu.matmul %19, %20, %cst_25 {dimension_numbers = #tpu.dot_dimension_numbers<[1], [0], [0], [1], [0, 0, 1, 1], [], []>, precision = #tpu.contract_precision<fp32>} : vector<16x16xf32>, vector<16x8xf32>, vector<16x8xf32> -> vector<16x8xf32>
    %c0_26 = arith.constant 0 : index
    %c0_27 = arith.constant 0 : index
    %22 = vector.load %arg2[%c0_26, %c0_27] : memref<8x16xf32, #tpu.memory_space<vmem>>, vector<8x16xf32>
    %cst_28 = arith.constant dense<0.000000e+00> : vector<8x8xf32>
    %23 = tpu.matmul %22, %21, %cst_28 {dimension_numbers = #tpu.dot_dimension_numbers<[1], [0], [0], [1], [0, 0, 1, 1], [], []>, precision = #tpu.contract_precision<fp32>} : vector<8x16xf32>, vector<16x8xf32>, vector<8x8xf32> -> vector<8x8xf32>
    %c2_29 = arith.constant 2 : index
    %c0_30 = arith.constant 0 : index
    %c0_31 = arith.constant 0 : index
    %24 = vector.load %arg4[%c2_29, %c0_30, %c0_31] : memref<4x8x8xf32, #tpu.memory_space<vmem>>, vector<1x8x8xf32>
    %25 = vector.shape_cast %24 : vector<1x8x8xf32> to vector<8x8xf32>
    %26 = vector.shape_cast %23 : vector<8x8xf32> to vector<1x8x8xf32>
    tpu.vector_store %arg4[%c2_29, %c0_30, %c0_31], %26 {strides = array<i32>} : memref<4x8x8xf32, #tpu.memory_space<vmem>>, vector<1x8x8xf32>,
    %c3 = arith.constant 3 : index
    %c0_32 = arith.constant 0 : index
    %c0_33 = arith.constant 0 : index
    %27 = vector.load %arg1[%c3, %c0_32, %c0_33] : memref<4x16x16xf32, #tpu.memory_space<vmem>>, vector<1x16x16xf32>
    %28 = vector.shape_cast %27 : vector<1x16x16xf32> to vector<16x16xf32>
    %c0_34 = arith.constant 0 : index
    %c0_35 = arith.constant 0 : index
    %29 = vector.load %arg3[%c0_34, %c0_35] : memref<16x8xf32, #tpu.memory_space<vmem>>, vector<16x8xf32>
    %cst_36 = arith.constant dense<0.000000e+00> : vector<16x8xf32>
    %30 = tpu.matmul %28, %29, %cst_36 {dimension_numbers = #tpu.dot_dimension_numbers<[1], [0], [0], [1], [0, 0, 1, 1], [], []>, precision = #tpu.contract_precision<fp32>} : vector<16x16xf32>, vector<16x8xf32>, vector<16x8xf32> -> vector<16x8xf32>
    %c0_37 = arith.constant 0 : index
    %c0_38 = arith.constant 0 : index
    %31 = vector.load %arg2[%c0_37, %c0_38] : memref<8x16xf32, #tpu.memory_space<vmem>>, vector<8x16xf32>
    %cst_39 = arith.constant dense<0.000000e+00> : vector<8x8xf32>
    %32 = tpu.matmul %31, %30, %cst_39 {dimension_numbers = #tpu.dot_dimension_numbers<[1], [0], [0], [1], [0, 0, 1, 1], [], []>, precision = #tpu.contract_precision<fp32>} : vector<8x16xf32>, vector<16x8xf32>, vector<8x8xf32> -> vector<8x8xf32>
    %c3_40 = arith.constant 3 : index
    %c0_41 = arith.constant 0 : index
    %c0_42 = arith.constant 0 : index
    %33 = vector.load %arg4[%c3_40, %c0_41, %c0_42] : memref<4x8x8xf32, #tpu.memory_space<vmem>>, vector<1x8x8xf32>
    %34 = vector.shape_cast %33 : vector<1x8x8xf32> to vector<8x8xf32>
    %35 = vector.shape_cast %32 : vector<8x8xf32> to vector<1x8x8xf32>
    tpu.vector_store %arg4[%c3_40, %c0_41, %c0_42], %35 {strides = array<i32>} : memref<4x8x8xf32, #tpu.memory_space<vmem>>, vector<1x8x8xf32>,
    return
  }
  func.func @transform_0(%arg0: i32) -> (i32, i32, i32) {
    %c0_i32 = arith.constant 0 : i32
    %c0_i32_0 = arith.constant 0 : i32
    %c0_i32_1 = arith.constant 0 : i32
    return %arg0, %c0_i32, %c0_i32_0 : i32, i32, i32
  }
  func.func @transform_1(%arg0: i32) -> (i32, i32) {
    %c0_i32 = arith.constant 0 : i32
    %c0_i32_0 = arith.constant 0 : i32
    %c0_i32_1 = arith.constant 0 : i32
    return %c0_i32, %c0_i32_0 : i32, i32
  }
  func.func @transform_2(%arg0: i32) -> (i32, i32) {
    %c0_i32 = arith.constant 0 : i32
    %c0_i32_0 = arith.constant 0 : i32
    %c0_i32_1 = arith.constant 0 : i32
    return %c0_i32, %c0_i32_0 : i32, i32
  }
  func.func @transform_3(%arg0: i32) -> (i32, i32, i32) {
    %c0_i32 = arith.constant 0 : i32
    %c0_i32_0 = arith.constant 0 : i32
    %c0_i32_1 = arith.constant 0 : i32
    return %arg0, %c0_i32, %c0_i32_0 : i32, i32, i32
  }
}

</mosaic_0001>

<llo_original>
// kernel: tpu_custom_call.1
$region0: #{tpu_custom_call.1}
  #allocation0 [shape = 'u32[]', space=smem, size = 0x4, offset = 0x4, fixed_abs, tag = 'smem constant byte address 0x4 - core index']
  #allocation1 [shape = 'u32[144,128]{1,0:T(1,128)}', space=vmem, size = 0x12000, scoped, tag = 'internal scratch']
  %s0 = inlined_call_operand.hbm [shape: f32[8,16,16], index: 0, kind: input, shape index: {}]
  %s1 = inlined_call_operand.vmem [shape: f32[8,16], index: 1, kind: input, shape index: {}]
  %s2 = inlined_call_operand.vmem [shape: f32[16,8], index: 2, kind: input, shape index: {}]
  %s3 = inlined_call_operand.hbm [shape: f32[8,8,8], index: 3, kind: output, shape index: {}]
  %s4 = sld [smem:[#allocation0]]
  $region49: #{tpu_custom_call.1} parent=0
    _
  %s6 = ssub.s32 1, %s4
  %s7 = scalar_select 0, %s6, %s4
  $region1: #{tpu_custom_call.1} parent=0
    #allocation2 [shape = 'u8[65536]{0}', space=vmem, size = 0x10000, scoped, tag = 'input window, operand 0']
    #allocation3 [shape = 's32[2]{0}', space=sflag, size = 0x8, scoped, tag = 'scoped memory for tpu_custom_call.1']
    #allocation4 [shape = 's32[2]{0}', space=sflag, size = 0x8, scoped, tag = 'scoped memory for tpu_custom_call.1']
    #allocation5 [shape = 'u8[32768]{0}', space=vmem, size = 0x8000, scoped, tag = 'output window, operand 0']
    %8 = vsyncpa [#allocation3], 0
    %s9 = scalar_lea.sflag [#allocation3], 1
    %10 = vsyncpa %s9, 0
    %11 = vsyncpa [#allocation4], 0
    %s12 = scalar_lea.sflag [#allocation4], 1
    %13 = vsyncpa %s12, 0
    loop: start=0, step=1, limit=4
    $region2: #{tpu_custom_call.1} parent=1 // loop_pre_header
      _
    $region3: #{tpu_custom_call.1} parent=1 // loop_header
      %s15 = sphi 0, %s19
      %p16 = scmp.ge.s32.totalorder %s15, 4
      %s25 = sphi 0, %s27
      %s28 = sphi 0, %s25
      %s29 = sphi 0, %s28
      %s45 = sphi 0, %s29
      %s49 = sphi 0, %s49
      %s51 = sphi 0, %s49
      %s52 = sphi 0, %s51
      %s66 = sphi 0, %s52
      %s70 = sphi 0, %s70
      %s72 = sphi 0, %s70
      %s73 = sphi 0, %s72
      %s87 = sphi 0, %s73
      %s93 = sphi 0, %s95
      %s96 = sphi 0, %s93
      %s97 = sphi 0, %s96
      %s113 = sphi 0, %s97
    $region4: #{tpu_custom_call.1} parent=1 // loop_header_branch
      %18 = sbr.rel (%p16) target = $region8
    $region5: #{tpu_custom_call.1} parent=1 // loop_body
      %s20 = ssub.s32 %s15, 1
      %s21 = ssub.s32 %s15, 2
      %s22 = sadd.s32 %s15, 1
      %s23 = ssub.s32 %s15, %s22
      %p24 = scmp.eq.s32.totalorder %s23, 0
      %s26 = sadd.s32 %s25, 1
      %s27 = scalar_select %p24, %s25, %s26
      %p30 = pneg %p24
      %p31 = scmp.eq.s32.totalorder %s15, 1
      %p32 = por %p30, %p31
      %p33 = scmp.ne.s32.totalorder %s25, %s28
      %p34 = scmp.eq.s32.totalorder %s15, 0
      %p35 = por %p33, %p34
      %p36 = scmp.ne.s32.totalorder %s25, %s28
      %p37 = scmp.eq.s32.totalorder %s20, 1
      %p38 = por %p36, %p37
      %p39 = scmp.ne.s32.totalorder %s28, %s29
      %p40 = scmp.eq.s32.totalorder %s20, 0
      %p41 = por %p39, %p40
      %p42 = scmp.ne.s32.totalorder %s28, %s29
      %p43 = scmp.eq.s32.totalorder %s21, 1
      %p44 = por %p42, %p43
      %p46 = scmp.ne.s32.totalorder %s29, %s45
      %p47 = scmp.eq.s32.totalorder %s21, 0
      %p48 = por %p46, %p47
      %s50 = sadd.s32 %s49, 1
      %p53 = scmp.eq.s32.totalorder %s15, 1
      %p54 = scmp.ne.s32.totalorder %s49, %s51
      %p55 = scmp.eq.s32.totalorder %s15, 0
      %p56 = por %p54, %p55
      %p57 = scmp.ne.s32.totalorder %s49, %s51
      %p58 = scmp.eq.s32.totalorder %s20, 1
      %p59 = por %p57, %p58
      %p60 = scmp.ne.s32.totalorder %s51, %s52
      %p61 = scmp.eq.s32.totalorder %s20, 0
      %p62 = por %p60, %p61
      %p63 = scmp.ne.s32.totalorder %s51, %s52
      %p64 = scmp.eq.s32.totalorder %s21, 1
      %p65 = por %p63, %p64
      %p67 = scmp.ne.s32.totalorder %s52, %s66
      %p68 = scmp.eq.s32.totalorder %s21, 0
      %p69 = por %p67, %p68
      %s71 = sadd.s32 %s70, 1
      %p74 = scmp.eq.s32.totalorder %s15, 1
      %p75 = scmp.ne.s32.totalorder %s70, %s72
      %p76 = scmp.eq.s32.totalorder %s15, 0
      %p77 = por %p75, %p76
      %p78 = scmp.ne.s32.totalorder %s70, %s72
      %p79 = scmp.eq.s32.totalorder %s20, 1
      %p80 = por %p78, %p79
      %p81 = scmp.ne.s32.totalorder %s72, %s73
      %p82 = scmp.eq.s32.totalorder %s20, 0
      %p83 = por %p81, %p82
      %p84 = scmp.ne.s32.totalorder %s72, %s73
      %p85 = scmp.eq.s32.totalorder %s21, 1
      %p86 = por %p84, %p85
      %p88 = scmp.ne.s32.totalorder %s73, %s87
      %p89 = scmp.eq.s32.totalorder %s21, 0
      %p90 = por %p88, %p89
      %s91 = ssub.s32 %s15, %s22
      %p92 = scmp.eq.s32.totalorder %s91, 0
      %s94 = sadd.s32 %s93, 1
      %s95 = scalar_select %p92, %s93, %s94
      %p98 = pneg %p92
      %p99 = scmp.eq.s32.totalorder %s15, 1
      %p100 = por %p98, %p99
      %p101 = scmp.ne.s32.totalorder %s93, %s96
      %p102 = scmp.eq.s32.totalorder %s15, 0
      %p103 = por %p101, %p102
      %p104 = scmp.ne.s32.totalorder %s93, %s96
      %p105 = scmp.eq.s32.totalorder %s20, 1
      %p106 = por %p104, %p105
      %p107 = scmp.ne.s32.totalorder %s96, %s97
      %p108 = scmp.eq.s32.totalorder %s20, 0
      %p109 = por %p107, %p108
      %p110 = scmp.ne.s32.totalorder %s96, %s97
      %p111 = scmp.eq.s32.totalorder %s21, 1
      %p112 = por %p110, %p111
      %p114 = scmp.ne.s32.totalorder %s97, %s113
      %p115 = scmp.eq.s32.totalorder %s21, 0
      %p116 = por %p114, %p115
      %p117 = scmp.le.s32.totalorder 1, %s15
      %p118 = scmp.lt.s32.totalorder %s15, 3
      %p119 = pnand %p117, %p118
      %p120 = pneg %p119
      // Predicated region
      $region9: #{tpu_custom_call.1} parent=5 // pred_check
        _
      $region10: #{tpu_custom_call.1} parent=5 // pred_check_branch
        %122 = sbr.rel (%p119) target = $region12
      $region11: #{tpu_custom_call.1} parent=5 // pred_region
        %s123 = ssub.s32 %s15, 1
        // Predicated region
        $region13: #{tpu_custom_call.1} parent=11 // pred_check
          %p124 = pneg %p62
        $region14: #{tpu_custom_call.1} parent=11 // pred_check_branch
          %126 = sbr.rel (%p124) target = $region16
        $region15: #{tpu_custom_call.1} parent=11 // pred_region
          _
        $region16: #{tpu_custom_call.1} parent=11 // pred_fallthru
          _
        // Predicated region
        $region17: #{tpu_custom_call.1} parent=11 // pred_check
          %p127 = pneg %p83
        $region18: #{tpu_custom_call.1} parent=11 // pred_check_branch
          %129 = sbr.rel (%p127) target = $region20
        $region19: #{tpu_custom_call.1} parent=11 // pred_region
          _
        $region20: #{tpu_custom_call.1} parent=11 // pred_fallthru
          _
      $region12: #{tpu_custom_call.1} parent=5 // pred_fallthru
        _
      %p130 = scmp.lt.s32.totalorder %s15, 2
      // Predicated region
      $region21: #{tpu_custom_call.1} parent=5 // pred_check
        %p131 = pneg %p130
      $region22: #{tpu_custom_call.1} parent=5 // pred_check_branch
        %133 = sbr.rel (%p131) target = $region24
      $region23: #{tpu_custom_call.1} parent=5 // pred_region
        // Predicated region
        $region25: #{tpu_custom_call.1} parent=23 // pred_check
          %p134 = pneg %p35
        $region26: #{tpu_custom_call.1} parent=23 // pred_check_branch
          %136 = sbr.rel (%p134) target = $region28
        $region27: #{tpu_custom_call.1} parent=23 // pred_region
          %s137 = sand.u32 %s25, 1
          %s138 = scalar_lea.sflag [#allocation3], %s137
          %s139 = sand.u32 %s25, 1
          %s140 = smul.addr %s139, 64
          %s141 = scalar_lea.vmem [#allocation2], %s140
          %s142 = smul.u32 4, %s15
          %s144 = ssub.s32 1024, 1024
          %145 = vsyncadd %s138, %s144
          %s146 = smul.addr %s142, 2
          %s147 = smul.addr %s146, 128
          %s148 = scalar_lea.hbm %s0, %s147
          %s149 = sshll.u32 %s141, 4
          %s150 = int_to_ptr.vmem [resolvable:$true] %s149
          %155 = dma.hbm_to_vmem [thread:$0]  %s148, 1024, %s150, %s138, 128, 128, 8
        $region28: #{tpu_custom_call.1} parent=23 // pred_fallthru
          _
      $region24: #{tpu_custom_call.1} parent=5 // pred_fallthru
        _
      %p156 = scmp.le.s32.totalorder 1, %s15
      %p157 = scmp.lt.s32.totalorder %s15, 3
      %p158 = pnand %p156, %p157
      %p159 = pneg %p158
      // Predicated region
      $region29: #{tpu_custom_call.1} parent=5 // pred_check
        _
      $region30: #{tpu_custom_call.1} parent=5 // pred_check_branch
        %161 = sbr.rel (%p158) target = $region32
      $region31: #{tpu_custom_call.1} parent=5 // pred_region
        %s162 = ssub.s32 %s15, 1
        %s163 = sand.u32 %s28, 1
        %s164 = scalar_lea.sflag [#allocation3], %s163
        %s165 = sand.u32 %s28, 1
        %s166 = smul.addr %s165, 64
        %s167 = scalar_lea.vmem [#allocation2], %s166
        // Predicated region
        $region33: #{tpu_custom_call.1} parent=31 // pred_check
          %p168 = pneg %p41
        $region34: #{tpu_custom_call.1} parent=31 // pred_check_branch
          %170 = sbr.rel (%p168) target = $region36
        $region35: #{tpu_custom_call.1} parent=31 // pred_region
          %171 = dma.done %s164, 1024
        $region36: #{tpu_custom_call.1} parent=31 // pred_fallthru
          _
        %s172 = sand.u32 %s28, 1
        %s173 = scalar_lea.sflag [#allocation3], %s172
        %s174 = sand.u32 %s28, 1
        %s175 = smul.addr %s174, 64
        %s176 = scalar_lea.vmem [#allocation2], %s175
        %p177 = pneg %p41
        %p178 = pneg %p38
        %p179 = pneg %p62
        %p180 = pneg %p59
        %p181 = pneg %p83
        %p182 = pneg %p80
        %p183 = pneg %p109
        %p184 = pneg %p106
        %s185 = sand.u32 %s96, 1
        %s186 = scalar_lea.sflag [#allocation4], %s185
        %s187 = sand.u32 %s96, 1
        %s188 = smul.addr %s187, 32
        %s189 = scalar_lea.vmem [#allocation5], %s188
        %s190 = smul.u32 4, %s20
        %s191 = smul.u32 4, %s20
        %v192 = vld [vmem:[%s167] sm:$0xff]
        %v193 = vld [vmem:[%s167 + $0x8] sm:$0xff]
        %v194 = vld [vmem:[%s2] sm:$0xff]
        %v195 = vld [vmem:[%s2 + $0x8] sm:$0xff]
        %vm196 = vcmask 130048
        %v198 = vsel %vm196, %v192, 0
        %v201 = vsel %vm196, %v193, 0
        %203 = vmatprep.subr.mxu0 0.0
        %204 = vmatpush1.msra.mxu0 0.0
        %205 = vmatprep.subr.mxu0 0.0
        %206 = vmatpush1.msra.mxu0 0.0
        %207 = vmatprep.subr.mxu0 0.0
        %208 = vmatpush1.msra.mxu0 0.0
        %209 = vmatprep.subr.mxu0 0.0
        %210 = vmatpush1.msra.mxu0 0.0
        %211 = vmatprep.subr.mxu0 0.0
        %212 = vmatpush1.msra.mxu0 0.0
        %213 = vmatprep.subr.mxu0 0.0
        %214 = vmatpush1.msra.mxu0 0.0
        %215 = vmatprep.subr.mxu0 0.0
        %216 = vmatpush1.msra.mxu0 0.0
        %217 = vmatprep.subr.mxu0 0.0
        %218 = vmatpush1.msra.mxu0 0.0
        %219 = vmatprep.subr.mxu0 0.0
        %220 = vmatpush1.msra.mxu0 0.0
        %221 = vmatprep.subr.mxu0 0.0
        %222 = vmatpush1.msra.mxu0 0.0
        %223 = vmatprep.subr.mxu0 0.0
        %224 = vmatpush1.msra.mxu0 0.0
        %225 = vmatprep.subr.mxu0 0.0
        %226 = vmatpush1.msra.mxu0 0.0
        %227 = vmatprep.subr.mxu0 0.0
        %228 = vmatpush1.msra.mxu0 0.0
        %229 = vmatprep.subr.mxu0 0.0
        %230 = vmatpush1.msra.mxu0 0.0
        %231 = vmatprep.subr.mxu0 0.0
        %v232 = vand.u32 %v195, 4294901760
        %233 = vmatpush1.msra.mxu0 %v232
        %234 = vmatprep.subr.mxu0 0.0
        %v235 = vand.u32 %v194, 4294901760
        %236 = vmatpush1.msra.mxu0 %v235
        %237 = vmatprep.subr.mxu0 0.0
        %238 = vmatpush2.msra.mxu0 0.0
        %239 = vmatprep.subr.mxu0 0.0
        %240 = vmatpush2.msra.mxu0 0.0
        %241 = vmatprep.subr.mxu0 0.0
        %242 = vmatpush2.msra.mxu0 0.0
        %243 = vmatprep.subr.mxu0 0.0
        %244 = vmatpush2.msra.mxu0 0.0
        %245 = vmatprep.subr.mxu0 0.0
        %246 = vmatpush2.msra.mxu0 0.0
        %247 = vmatprep.subr.mxu0 0.0
        %248 = vmatpush2.msra.mxu0 0.0
        %249 = vmatprep.subr.mxu0 0.0
        %250 = vmatpush2.msra.mxu0 0.0
        %251 = vmatprep.subr.mxu0 0.0
        %252 = vmatpush2.msra.mxu0 0.0
        %253 = vmatprep.subr.mxu0 0.0
        %254 = vmatpush2.msra.mxu0 0.0
        %255 = vmatprep.subr.mxu0 0.0
        %256 = vmatpush2.msra.mxu0 0.0
        %257 = vmatprep.subr.mxu0 0.0
        %258 = vmatpush2.msra.mxu0 0.0
        %259 = vmatprep.subr.mxu0 0.0
        %260 = vmatpush2.msra.mxu0 0.0
        %261 = vmatprep.subr.mxu0 0.0
        %262 = vmatpush2.msra.mxu0 0.0
        %263 = vmatprep.subr.mxu0 0.0
        %264 = vmatpush2.msra.mxu0 0.0
        %265 = vmatprep.subr.mxu0 0.0
        %266 = vmatpush2.msra.mxu0 0.0
        %267 = vmatprep.subr.mxu0 0.0
        %268 = vmatpush2.msra.mxu0 0.0
        %269 = vmatprep.mubr.f32.mxu0 0.0
        %v270 = vand.u32 %v198, 4294901760
        %v271 = vsub.f32 %v198, %v270
        %v272 = vand.u32 %v271, 4294901760
        %v273 = vsub.f32 %v271, %v272
        %v274 = vand.u32 %v273, 4294901760
        %275 = vmatmul.mubr.f32.gmra.mxu0 %v274
        %v276 = vpop.f32.mrf.mxu0
        %v277 = vadd.f32 0.0, %v276
        %v278 = vpop.f32.mrf.mxu0
        %279 = vmatprep.mubr.f32.mxu0 0.0
        %v280 = vand.u32 %v201, 4294901760
        %v281 = vsub.f32 %v201, %v280
        %v282 = vand.u32 %v281, 4294901760
        %v283 = vsub.f32 %v281, %v282
        %v284 = vand.u32 %v283, 4294901760
        %285 = vmatmul.mubr.f32.gmra.mxu0 %v284
        %v286 = vpop.f32.mrf.mxu0
        %v287 = vadd.f32 0.0, %v286
        %v288 = vpop.f32.mrf.mxu0
        %289 = vdwg.mxu0
        %290 = vmatprep.subr.mxu0 0.0
        %291 = vmatpush1.msra.mxu0 0.0
        %292 = vmatprep.subr.mxu0 0.0
        %293 = vmatpush1.msra.mxu0 0.0
        %294 = vmatprep.subr.mxu0 0.0
        %295 = vmatpush1.msra.mxu0 0.0
        %296 = vmatprep.subr.mxu0 0.0
        %297 = vmatpush1.msra.mxu0 0.0
        %298 = vmatprep.subr.mxu0 0.0
        %299 = vmatpush1.msra.mxu0 0.0
        %300 = vmatprep.subr.mxu0 0.0
        %301 = vmatpush1.msra.mxu0 0.0
        %302 = vmatprep.subr.mxu0 0.0
        %303 = vmatpush1.msra.mxu0 0.0
        %304 = vmatprep.subr.mxu0 0.0
        %305 = vmatpush1.msra.mxu0 0.0
        %306 = vmatprep.subr.mxu0 0.0
        %307 = vmatpush1.msra.mxu0 0.0
        %308 = vmatprep.subr.mxu0 0.0
        %309 = vmatpush1.msra.mxu0 0.0
        %310 = vmatprep.subr.mxu0 0.0
        %311 = vmatpush1.msra.mxu0 0.0
        %312 = vmatprep.subr.mxu0 0.0
        %313 = vmatpush1.msra.mxu0 0.0
        %314 = vmatprep.subr.mxu0 0.0
        %315 = vmatpush1.msra.mxu0 0.0
        %316 = vmatprep.subr.mxu0 0.0
        %317 = vmatpush1.msra.mxu0 0.0
        %318 = vmatprep.subr.mxu0 0.0
        %v319 = vand.u32 %v195, 4294901760
        %v320 = vsub.f32 %v195, %v319
        %v321 = vand.u32 %v320, 4294901760
        %v322 = vsub.f32 %v320, %v321
        %v323 = vand.u32 %v322, 4294901760
        %324 = vmatpush1.msra.mxu0 %v323
        %325 = vmatprep.subr.mxu0 0.0
        %v326 = vand.u32 %v194, 4294901760
        %v327 = vsub.f32 %v194, %v326
        %v328 = vand.u32 %v327, 4294901760
        %v329 = vsub.f32 %v327, %v328
        %v330 = vand.u32 %v329, 4294901760
        %331 = vmatpush1.msra.mxu0 %v330
        %332 = vmatprep.subr.mxu0 0.0
        %333 = vmatpush2.msra.mxu0 0.0
        %334 = vmatprep.subr.mxu0 0.0
        %335 = vmatpush2.msra.mxu0 0.0
        %336 = vmatprep.subr.mxu0 0.0
        %337 = vmatpush2.msra.mxu0 0.0
        %338 = vmatprep.subr.mxu0 0.0
        %339 = vmatpush2.msra.mxu0 0.0
        %340 = vmatprep.subr.mxu0 0.0
        %341 = vmatpush2.msra.mxu0 0.0
        %342 = vmatprep.subr.mxu0 0.0
        %343 = vmatpush2.msra.mxu0 0.0
        %344 = vmatprep.subr.mxu0 0.0
        %345 = vmatpush2.msra.mxu0 0.0
        %346 = vmatprep.subr.mxu0 0.0
        %347 = vmatpush2.msra.mxu0 0.0
        %348 = vmatprep.subr.mxu0 0.0
        %349 = vmatpush2.msra.mxu0 0.0
        %350 = vmatprep.subr.mxu0 0.0
        %351 = vmatpush2.msra.mxu0 0.0
        %352 = vmatprep.subr.mxu0 0.0
        %353 = vmatpush2.msra.mxu0 0.0
        %354 = vmatprep.subr.mxu0 0.0
        %355 = vmatpush2.msra.mxu0 0.0
        %356 = vmatprep.subr.mxu0 0.0
        %357 = vmatpush2.msra.mxu0 0.0
        %358 = vmatprep.subr.mxu0 0.0
        %359 = vmatpush2.msra.mxu0 0.0
        %360 = vmatprep.subr.mxu0 0.0
        %361 = vmatpush2.msra.mxu0 0.0
        %362 = vmatprep.subr.mxu0 0.0
        %363 = vmatpush2.msra.mxu0 0.0
        %364 = vmatprep.mubr.f32.mxu0 0.0
        %v365 = vand.u32 %v198, 4294901760
        %366 = vmatmul.mubr.f32.gmra.mxu0 %v365
        %v367 = vpop.f32.mrf.mxu0
        %v368 = vadd.f32 %v277, %v367
        %v369 = vpop.f32.mrf.mxu0
        %370 = vmatprep.mubr.f32.mxu0 0.0
        %v371 = vand.u32 %v201, 4294901760
        %372 = vmatmul.mubr.f32.gmra.mxu0 %v371
        %v373 = vpop.f32.mrf.mxu0
        %v374 = vadd.f32 %v287, %v373
        %v375 = vpop.f32.mrf.mxu0
        %376 = vdwg.mxu0
        %377 = vmatprep.subr.mxu0 0.0
        %378 = vmatpush1.msra.mxu0 0.0
        %379 = vmatprep.subr.mxu0 0.0
        %380 = vmatpush1.msra.mxu0 0.0
        %381 = vmatprep.subr.mxu0 0.0
        %382 = vmatpush1.msra.mxu0 0.0
        %383 = vmatprep.subr.mxu0 0.0
        %384 = vmatpush1.msra.mxu0 0.0
        %385 = vmatprep.subr.mxu0 0.0
        %386 = vmatpush1.msra.mxu0 0.0
        %387 = vmatprep.subr.mxu0 0.0
        %388 = vmatpush1.msra.mxu0 0.0
        %389 = vmatprep.subr.mxu0 0.0
        %390 = vmatpush1.msra.mxu0 0.0
        %391 = vmatprep.subr.mxu0 0.0
        %392 = vmatpush1.msra.mxu0 0.0
        %393 = vmatprep.subr.mxu0 0.0
        %394 = vmatpush1.msra.mxu0 0.0
        %395 = vmatprep.subr.mxu0 0.0
        %396 = vmatpush1.msra.mxu0 0.0
        %397 = vmatprep.subr.mxu0 0.0
        %398 = vmatpush1.msra.mxu0 0.0
        %399 = vmatprep.subr.mxu0 0.0
        %400 = vmatpush1.msra.mxu0 0.0
        %401 = vmatprep.subr.mxu0 0.0
        %402 = vmatpush1.msra.mxu0 0.0
        %403 = vmatprep.subr.mxu0 0.0
        %404 = vmatpush1.msra.mxu0 0.0
        %405 = vmatprep.subr.mxu0 0.0
        %v406 = vand.u32 %v195, 4294901760
        %v407 = vsub.f32 %v195, %v406
        %408 = vmatpush1.msra.mxu0 %v407
        %409 = vmatprep.subr.mxu0 0.0
        %v410 = vand.u32 %v194, 4294901760
        %v411 = vsub.f32 %v194, %v410
        %412 = vmatpush1.msra.mxu0 %v411
        %413 = vmatprep.subr.mxu0 0.0
        %414 = vmatpush2.msra.mxu0 0.0
        %415 = vmatprep.subr.mxu0 0.0
        %416 = vmatpush2.msra.mxu0 0.0
        %417 = vmatprep.subr.mxu0 0.0
        %418 = vmatpush2.msra.mxu0 0.0
        %419 = vmatprep.subr.mxu0 0.0
        %420 = vmatpush2.msra.mxu0 0.0
        %421 = vmatprep.subr.mxu0 0.0
        %422 = vmatpush2.msra.mxu0 0.0
        %423 = vmatprep.subr.mxu0 0.0
        %424 = vmatpush2.msra.mxu0 0.0
        %425 = vmatprep.subr.mxu0 0.0
        %426 = vmatpush2.msra.mxu0 0.0
        %427 = vmatprep.subr.mxu0 0.0
        %428 = vmatpush2.msra.mxu0 0.0
        %429 = vmatprep.subr.mxu0 0.0
        %430 = vmatpush2.msra.mxu0 0.0
        %431 = vmatprep.subr.mxu0 0.0
        %432 = vmatpush2.msra.mxu0 0.0
        %433 = vmatprep.subr.mxu0 0.0
        %434 = vmatpush2.msra.mxu0 0.0
        %435 = vmatprep.subr.mxu0 0.0
        %436 = vmatpush2.msra.mxu0 0.0
        %437 = vmatprep.subr.mxu0 0.0
        %438 = vmatpush2.msra.mxu0 0.0
        %439 = vmatprep.subr.mxu0 0.0
        %440 = vmatpush2.msra.mxu0 0.0
        %441 = vmatprep.subr.mxu0 0.0
        %442 = vmatpush2.msra.mxu0 0.0
        %443 = vmatprep.subr.mxu0 0.0
        %444 = vmatpush2.msra.mxu0 0.0
        %445 = vmatprep.mubr.f32.mxu0 0.0
        %v446 = vand.u32 %v198, 4294901760
        %v447 = vsub.f32 %v198, %v446
        %448 = vmatmul.mubr.f32.gmra.mxu0 %v447
        %v449 = vpop.f32.mrf.mxu0
        %v450 = vadd.f32 %v368, %v449
        %v451 = vpop.f32.mrf.mxu0
        %452 = vmatprep.mubr.f32.mxu0 0.0
        %v453 = vand.u32 %v201, 4294901760
        %v454 = vsub.f32 %v201, %v453
        %455 = vmatmul.mubr.f32.gmra.mxu0 %v454
        %v456 = vpop.f32.mrf.mxu0
        %v457 = vadd.f32 %v374, %v456
        %v458 = vpop.f32.mrf.mxu0
        %459 = vdwg.mxu0
        %460 = vmatprep.subr.mxu0 0.0
        %461 = vmatpush1.msra.mxu0 0.0
        %462 = vmatprep.subr.mxu0 0.0
        %463 = vmatpush1.msra.mxu0 0.0
        %464 = vmatprep.subr.mxu0 0.0
        %465 = vmatpush1.msra.mxu0 0.0
        %466 = vmatprep.subr.mxu0 0.0
        %467 = vmatpush1.msra.mxu0 0.0
        %468 = vmatprep.subr.mxu0 0.0
        %469 = vmatpush1.msra.mxu0 0.0
        %470 = vmatprep.subr.mxu0 0.0
        %471 = vmatpush1.msra.mxu0 0.0
        %472 = vmatprep.subr.mxu0 0.0
        %473 = vmatpush1.msra.mxu0 0.0
        %474 = vmatprep.subr.mxu0 0.0
        %475 = vmatpush1.msra.mxu0 0.0
        %476 = vmatprep.subr.mxu0 0.0
        %477 = vmatpush1.msra.mxu0 0.0
        %478 = vmatprep.subr.mxu0 0.0
        %479 = vmatpush1.msra.mxu0 0.0
        %480 = vmatprep.subr.mxu0 0.0
        %481 = vmatpush1.msra.mxu0 0.0
        %482 = vmatprep.subr.mxu0 0.0
        %483 = vmatpush1.msra.mxu0 0.0
        %484 = vmatprep.subr.mxu0 0.0
        %485 = vmatpush1.msra.mxu0 0.0
        %486 = vmatprep.subr.mxu0 0.0
        %487 = vmatpush1.msra.mxu0 0.0
        %488 = vmatprep.subr.mxu0 0.0
        %v489 = vand.u32 %v195, 4294901760
        %490 = vmatpush1.msra.mxu0 %v489
        %491 = vmatprep.subr.mxu0 0.0
        %v492 = vand.u32 %v194, 4294901760
        %493 = vmatpush1.msra.mxu0 %v492
        %494 = vmatprep.subr.mxu0 0.0
        %495 = vmatpush2.msra.mxu0 0.0
        %496 = vmatprep.subr.mxu0 0.0
        %497 = vmatpush2.msra.mxu0 0.0
        %498 = vmatprep.subr.mxu0 0.0
        %499 = vmatpush2.msra.mxu0 0.0
        %500 = vmatprep.subr.mxu0 0.0
        %501 = vmatpush2.msra.mxu0 0.0
        %502 = vmatprep.subr.mxu0 0.0
        %503 = vmatpush2.msra.mxu0 0.0
        %504 = vmatprep.subr.mxu0 0.0
        %505 = vmatpush2.msra.mxu0 0.0
        %506 = vmatprep.subr.mxu0 0.0
        %507 = vmatpush2.msra.mxu0 0.0
        %508 = vmatprep.subr.mxu0 0.0
        %509 = vmatpush2.msra.mxu0 0.0
        %510 = vmatprep.subr.mxu0 0.0
        %511 = vmatpush2.msra.mxu0 0.0
        %512 = vmatprep.subr.mxu0 0.0
        %513 = vmatpush2.msra.mxu0 0.0
        %514 = vmatprep.subr.mxu0 0.0
        %515 = vmatpush2.msra.mxu0 0.0
        %516 = vmatprep.subr.mxu0 0.0
        %517 = vmatpush2.msra.mxu0 0.0
        %518 = vmatprep.subr.mxu0 0.0
        %519 = vmatpush2.msra.mxu0 0.0
        %520 = vmatprep.subr.mxu0 0.0
        %521 = vmatpush2.msra.mxu0 0.0
        %522 = vmatprep.subr.mxu0 0.0
        %523 = vmatpush2.msra.mxu0 0.0
        %524 = vmatprep.subr.mxu0 0.0
        %525 = vmatpush2.msra.mxu0 0.0
        %526 = vmatprep.mubr.f32.mxu0 0.0
        %v527 = vand.u32 %v198, 4294901760
        %v528 = vsub.f32 %v198, %v527
        %v529 = vand.u32 %v528, 4294901760
        %530 = vmatmul.mubr.f32.gmra.mxu0 %v529
        %v531 = vpop.f32.mrf.mxu0
        %v532 = vadd.f32 %v450, %v531
        %v533 = vpop.f32.mrf.mxu0
        %534 = vmatprep.mubr.f32.mxu0 0.0
        %v535 = vand.u32 %v201, 4294901760
        %v536 = vsub.f32 %v201, %v535
        %v537 = vand.u32 %v536, 4294901760
        %538 = vmatmul.mubr.f32.gmra.mxu0 %v537
        %v539 = vpop.f32.mrf.mxu0
        %v540 = vadd.f32 %v457, %v539
        %v541 = vpop.f32.mrf.mxu0
        %542 = vdwg.mxu0
        %543 = vmatprep.subr.mxu0 0.0
        %544 = vmatpush1.msra.mxu0 0.0
        %545 = vmatprep.subr.mxu0 0.0
        %546 = vmatpush1.msra.mxu0 0.0
        %547 = vmatprep.subr.mxu0 0.0
        %548 = vmatpush1.msra.mxu0 0.0
        %549 = vmatprep.subr.mxu0 0.0
        %550 = vmatpush1.msra.mxu0 0.0
        %551 = vmatprep.subr.mxu0 0.0
        %552 = vmatpush1.msra.mxu0 0.0
        %553 = vmatprep.subr.mxu0 0.0
        %554 = vmatpush1.msra.mxu0 0.0
        %555 = vmatprep.subr.mxu0 0.0
        %556 = vmatpush1.msra.mxu0 0.0
        %557 = vmatprep.subr.mxu0 0.0
        %558 = vmatpush1.msra.mxu0 0.0
        %559 = vmatprep.subr.mxu0 0.0
        %560 = vmatpush1.msra.mxu0 0.0
        %561 = vmatprep.subr.mxu0 0.0
        %562 = vmatpush1.msra.mxu0 0.0
        %563 = vmatprep.subr.mxu0 0.0
        %564 = vmatpush1.msra.mxu0 0.0
        %565 = vmatprep.subr.mxu0 0.0
        %566 = vmatpush1.msra.mxu0 0.0
        %567 = vmatprep.subr.mxu0 0.0
        %568 = vmatpush1.msra.mxu0 0.0
        %569 = vmatprep.subr.mxu0 0.0
        %570 = vmatpush1.msra.mxu0 0.0
        %571 = vmatprep.subr.mxu0 0.0
        %v572 = vand.u32 %v195, 4294901760
        %v573 = vsub.f32 %v195, %v572
        %v574 = vand.u32 %v573, 4294901760
        %575 = vmatpush1.msra.mxu0 %v574
        %576 = vmatprep.subr.mxu0 0.0
        %v577 = vand.u32 %v194, 4294901760
        %v578 = vsub.f32 %v194, %v577
        %v579 = vand.u32 %v578, 4294901760
        %580 = vmatpush1.msra.mxu0 %v579
        %581 = vmatprep.subr.mxu0 0.0
        %582 = vmatpush2.msra.mxu0 0.0
        %583 = vmatprep.subr.mxu0 0.0
        %584 = vmatpush2.msra.mxu0 0.0
        %585 = vmatprep.subr.mxu0 0.0
        %586 = vmatpush2.msra.mxu0 0.0
        %587 = vmatprep.subr.mxu0 0.0
        %588 = vmatpush2.msra.mxu0 0.0
        %589 = vmatprep.subr.mxu0 0.0
        %590 = vmatpush2.msra.mxu0 0.0
        %591 = vmatprep.subr.mxu0 0.0
        %592 = vmatpush2.msra.mxu0 0.0
        %593 = vmatprep.subr.mxu0 0.0
        %594 = vmatpush2.msra.mxu0 0.0
        %595 = vmatprep.subr.mxu0 0.0
        %596 = vmatpush2.msra.mxu0 0.0
        %597 = vmatprep.subr.mxu0 0.0
        %598 = vmatpush2.msra.mxu0 0.0
        %599 = vmatprep.subr.mxu0 0.0
        %600 = vmatpush2.msra.mxu0 0.0
        %601 = vmatprep.subr.mxu0 0.0
        %602 = vmatpush2.msra.mxu0 0.0
        %603 = vmatprep.subr.mxu0 0.0
        %604 = vmatpush2.msra.mxu0 0.0
        %605 = vmatprep.subr.mxu0 0.0
        %606 = vmatpush2.msra.mxu0 0.0
        %607 = vmatprep.subr.mxu0 0.0
        %608 = vmatpush2.msra.mxu0 0.0
        %609 = vmatprep.subr.mxu0 0.0
        %610 = vmatpush2.msra.mxu0 0.0
        %611 = vmatprep.subr.mxu0 0.0
        %612 = vmatpush2.msra.mxu0 0.0
        %613 = vmatprep.mubr.f32.mxu0 0.0
        %v614 = vand.u32 %v198, 4294901760
        %615 = vmatmul.mubr.f32.gmra.mxu0 %v614
        %v616 = vpop.f32.mrf.mxu0
        %v617 = vadd.f32 %v532, %v616
        %v618 = vpop.f32.mrf.mxu0
        %619 = vmatprep.mubr.f32.mxu0 0.0
        %v620 = vand.u32 %v201, 4294901760
        %621 = vmatmul.mubr.f32.gmra.mxu0 %v620
        %v622 = vpop.f32.mrf.mxu0
        %v623 = vadd.f32 %v540, %v622
        %v624 = vpop.f32.mrf.mxu0
        %625 = vdwg.mxu0
        %626 = vmatprep.subr.mxu0 0.0
        %627 = vmatpush1.msra.mxu0 0.0
        %628 = vmatprep.subr.mxu0 0.0
        %629 = vmatpush1.msra.mxu0 0.0
        %630 = vmatprep.subr.mxu0 0.0
        %631 = vmatpush1.msra.mxu0 0.0
        %632 = vmatprep.subr.mxu0 0.0
        %633 = vmatpush1.msra.mxu0 0.0
        %634 = vmatprep.subr.mxu0 0.0
        %635 = vmatpush1.msra.mxu0 0.0
        %636 = vmatprep.subr.mxu0 0.0
        %637 = vmatpush1.msra.mxu0 0.0
        %638 = vmatprep.subr.mxu0 0.0
        %639 = vmatpush1.msra.mxu0 0.0
        %640 = vmatprep.subr.mxu0 0.0
        %641 = vmatpush1.msra.mxu0 0.0
        %642 = vmatprep.subr.mxu0 0.0
        %643 = vmatpush1.msra.mxu0 0.0
        %644 = vmatprep.subr.mxu0 0.0
        %645 = vmatpush1.msra.mxu0 0.0
        %646 = vmatprep.subr.mxu0 0.0
        %647 = vmatpush1.msra.mxu0 0.0
        %648 = vmatprep.subr.mxu0 0.0
        %649 = vmatpush1.msra.mxu0 0.0
        %650 = vmatprep.subr.mxu0 0.0
        %651 = vmatpush1.msra.mxu0 0.0
        %652 = vmatprep.subr.mxu0 0.0
        %653 = vmatpush1.msra.mxu0 0.0
        %654 = vmatprep.subr.mxu0 0.0
        %v655 = vand.u32 %v195, 4294901760
        %656 = vmatpush1.msra.mxu0 %v655
        %657 = vmatprep.subr.mxu0 0.0
        %v658 = vand.u32 %v194, 4294901760
        %659 = vmatpush1.msra.mxu0 %v658
        %660 = vmatprep.subr.mxu0 0.0
        %661 = vmatpush2.msra.mxu0 0.0
        %662 = vmatprep.subr.mxu0 0.0
        %663 = vmatpush2.msra.mxu0 0.0
        %664 = vmatprep.subr.mxu0 0.0
        %665 = vmatpush2.msra.mxu0 0.0
        %666 = vmatprep.subr.mxu0 0.0
        %667 = vmatpush2.msra.mxu0 0.0
        %668 = vmatprep.subr.mxu0 0.0
        %669 = vmatpush2.msra.mxu0 0.0
        %670 = vmatprep.subr.mxu0 0.0
        %671 = vmatpush2.msra.mxu0 0.0
        %672 = vmatprep.subr.mxu0 0.0
        %673 = vmatpush2.msra.mxu0 0.0
        %674 = vmatprep.subr.mxu0 0.0
        %675 = vmatpush2.msra.mxu0 0.0
        %676 = vmatprep.subr.mxu0 0.0
        %677 = vmatpush2.msra.mxu0 0.0
        %678 = vmatprep.subr.mxu0 0.0
        %679 = vmatpush2.msra.mxu0 0.0
        %680 = vmatprep.subr.mxu0 0.0
        %681 = vmatpush2.msra.mxu0 0.0
        %682 = vmatprep.subr.mxu0 0.0
        %683 = vmatpush2.msra.mxu0 0.0
        %684 = vmatprep.subr.mxu0 0.0
        %685 = vmatpush2.msra.mxu0 0.0
        %686 = vmatprep.subr.mxu0 0.0
        %687 = vmatpush2.msra.mxu0 0.0
        %688 = vmatprep.subr.mxu0 0.0
        %689 = vmatpush2.msra.mxu0 0.0
        %690 = vmatprep.subr.mxu0 0.0
        %691 = vmatpush2.msra.mxu0 0.0
        %692 = vmatprep.mubr.f32.mxu0 0.0
        %v693 = vand.u32 %v198, 4294901760
        %694 = vmatmul.mubr.f32.gmra.mxu0 %v693
        %v695 = vpop.f32.mrf.mxu0
        %v696 = vadd.f32 %v617, %v695
        %v697 = vpop.f32.mrf.mxu0
        %698 = vmatprep.mubr.f32.mxu0 0.0
        %v699 = vand.u32 %v201, 4294901760
        %700 = vmatmul.mubr.f32.gmra.mxu0 %v699
        %v701 = vpop.f32.mrf.mxu0
        %v702 = vadd.f32 %v623, %v701
        %v703 = vpop.f32.mrf.mxu0
        %704 = vdwg.mxu0
        %v705 = vld [vmem:[%s1] sm:$0xff]
        %v707 = vsel %vm196, %v705, 0
        %709 = vmatprep.subr.mxu0 0.0
        %710 = vmatpush1.msra.mxu0 0.0
        %711 = vmatprep.subr.mxu0 0.0
        %712 = vmatpush1.msra.mxu0 0.0
        %713 = vmatprep.subr.mxu0 0.0
        %714 = vmatpush1.msra.mxu0 0.0
        %715 = vmatprep.subr.mxu0 0.0
        %716 = vmatpush1.msra.mxu0 0.0
        %717 = vmatprep.subr.mxu0 0.0
        %718 = vmatpush1.msra.mxu0 0.0
        %719 = vmatprep.subr.mxu0 0.0
        %720 = vmatpush1.msra.mxu0 0.0
        %721 = vmatprep.subr.mxu0 0.0
        %722 = vmatpush1.msra.mxu0 0.0
        %723 = vmatprep.subr.mxu0 0.0
        %724 = vmatpush1.msra.mxu0 0.0
        %725 = vmatprep.subr.mxu0 0.0
        %726 = vmatpush1.msra.mxu0 0.0
        %727 = vmatprep.subr.mxu0 0.0
        %728 = vmatpush1.msra.mxu0 0.0
        %729 = vmatprep.subr.mxu0 0.0
        %730 = vmatpush1.msra.mxu0 0.0
        %731 = vmatprep.subr.mxu0 0.0
        %732 = vmatpush1.msra.mxu0 0.0
        %733 = vmatprep.subr.mxu0 0.0
        %734 = vmatpush1.msra.mxu0 0.0
        %735 = vmatprep.subr.mxu0 0.0
        %736 = vmatpush1.msra.mxu0 0.0
        %737 = vmatprep.subr.mxu0 0.0
        %v738 = vand.u32 %v702, 4294901760
        %739 = vmatpush1.msra.mxu0 %v738
        %740 = vmatprep.subr.mxu0 0.0
        %v741 = vand.u32 %v696, 4294901760
        %742 = vmatpush1.msra.mxu0 %v741
        %743 = vmatprep.subr.mxu0 0.0
        %744 = vmatpush2.msra.mxu0 0.0
        %745 = vmatprep.subr.mxu0 0.0
        %746 = vmatpush2.msra.mxu0 0.0
        %747 = vmatprep.subr.mxu0 0.0
        %748 = vmatpush2.msra.mxu0 0.0
        %749 = vmatprep.subr.mxu0 0.0
        %750 = vmatpush2.msra.mxu0 0.0
        %751 = vmatprep.subr.mxu0 0.0
        %752 = vmatpush2.msra.mxu0 0.0
        %753 = vmatprep.subr.mxu0 0.0
        %754 = vmatpush2.msra.mxu0 0.0
        %755 = vmatprep.subr.mxu0 0.0
        %756 = vmatpush2.msra.mxu0 0.0
        %757 = vmatprep.subr.mxu0 0.0
        %758 = vmatpush2.msra.mxu0 0.0
        %759 = vmatprep.subr.mxu0 0.0
        %760 = vmatpush2.msra.mxu0 0.0
        %761 = vmatprep.subr.mxu0 0.0
        %762 = vmatpush2.msra.mxu0 0.0
        %763 = vmatprep.subr.mxu0 0.0
        %764 = vmatpush2.msra.mxu0 0.0
        %765 = vmatprep.subr.mxu0 0.0
        %766 = vmatpush2.msra.mxu0 0.0
        %767 = vmatprep.subr.mxu0 0.0
        %768 = vmatpush2.msra.mxu0 0.0
        %769 = vmatprep.subr.mxu0 0.0
        %770 = vmatpush2.msra.mxu0 0.0
        %771 = vmatprep.subr.mxu0 0.0
        %772 = vmatpush2.msra.mxu0 0.0
        %773 = vmatprep.subr.mxu0 0.0
        %774 = vmatpush2.msra.mxu0 0.0
        %775 = vmatprep.mubr.f32.mxu0 0.0
        %v776 = vand.u32 %v707, 4294901760
        %v777 = vsub.f32 %v707, %v776
        %v778 = vand.u32 %v777, 4294901760
        %v779 = vsub.f32 %v777, %v778
        %v780 = vand.u32 %v779, 4294901760
        %781 = vmatmul.mubr.f32.gmra.mxu0 %v780
        %v782 = vpop.f32.mrf.mxu0
        %v783 = vadd.f32 0.0, %v782
        %v784 = vpop.f32.mrf.mxu0
        %785 = vdwg.mxu0
        %786 = vmatprep.subr.mxu0 0.0
        %787 = vmatpush1.msra.mxu0 0.0
        %788 = vmatprep.subr.mxu0 0.0
        %789 = vmatpush1.msra.mxu0 0.0
        %790 = vmatprep.subr.mxu0 0.0
        %791 = vmatpush1.msra.mxu0 0.0
        %792 = vmatprep.subr.mxu0 0.0
        %793 = vmatpush1.msra.mxu0 0.0
        %794 = vmatprep.subr.mxu0 0.0
        %795 = vmatpush1.msra.mxu0 0.0
        %796 = vmatprep.subr.mxu0 0.0
        %797 = vmatpush1.msra.mxu0 0.0
        %798 = vmatprep.subr.mxu0 0.0
        %799 = vmatpush1.msra.mxu0 0.0
        %800 = vmatprep.subr.mxu0 0.0
        %801 = vmatpush1.msra.mxu0 0.0
        %802 = vmatprep.subr.mxu0 0.0
        %803 = vmatpush1.msra.mxu0 0.0
        %804 = vmatprep.subr.mxu0 0.0
        %805 = vmatpush1.msra.mxu0 0.0
        %806 = vmatprep.subr.mxu0 0.0
        %807 = vmatpush1.msra.mxu0 0.0
        %808 = vmatprep.subr.mxu0 0.0
        %809 = vmatpush1.msra.mxu0 0.0
        %810 = vmatprep.subr.mxu0 0.0
        %811 = vmatpush1.msra.mxu0 0.0
        %812 = vmatprep.subr.mxu0 0.0
        %813 = vmatpush1.msra.mxu0 0.0
        %814 = vmatprep.subr.mxu0 0.0
        %v815 = vand.u32 %v702, 4294901760
        %v816 = vsub.f32 %v702, %v815
        %v817 = vand.u32 %v816, 4294901760
        %v818 = vsub.f32 %v816, %v817
        %v819 = vand.u32 %v818, 4294901760
        %820 = vmatpush1.msra.mxu0 %v819
        %821 = vmatprep.subr.mxu0 0.0
        %v822 = vand.u32 %v696, 4294901760
        %v823 = vsub.f32 %v696, %v822
        %v824 = vand.u32 %v823, 4294901760
        %v825 = vsub.f32 %v823, %v824
        %v826 = vand.u32 %v825, 4294901760
        %827 = vmatpush1.msra.mxu0 %v826
        %828 = vmatprep.subr.mxu0 0.0
        %829 = vmatpush2.msra.mxu0 0.0
        %830 = vmatprep.subr.mxu0 0.0
        %831 = vmatpush2.msra.mxu0 0.0
        %832 = vmatprep.subr.mxu0 0.0
        %833 = vmatpush2.msra.mxu0 0.0
        %834 = vmatprep.subr.mxu0 0.0
        %835 = vmatpush2.msra.mxu0 0.0
        %836 = vmatprep.subr.mxu0 0.0
        %837 = vmatpush2.msra.mxu0 0.0
        %838 = vmatprep.subr.mxu0 0.0
        %839 = vmatpush2.msra.mxu0 0.0
        %840 = vmatprep.subr.mxu0 0.0
        %841 = vmatpush2.msra.mxu0 0.0
        %842 = vmatprep.subr.mxu0 0.0
        %843 = vmatpush2.msra.mxu0 0.0
        %844 = vmatprep.subr.mxu0 0.0
        %845 = vmatpush2.msra.mxu0 0.0
        %846 = vmatprep.subr.mxu0 0.0
        %847 = vmatpush2.msra.mxu0 0.0
        %848 = vmatprep.subr.mxu0 0.0
        %849 = vmatpush2.msra.mxu0 0.0
        %850 = vmatprep.subr.mxu0 0.0
        %851 = vmatpush2.msra.mxu0 0.0
        %852 = vmatprep.subr.mxu0 0.0
        %853 = vmatpush2.msra.mxu0 0.0
        %854 = vmatprep.subr.mxu0 0.0
        %855 = vmatpush2.msra.mxu0 0.0
        %856 = vmatprep.subr.mxu0 0.0
        %857 = vmatpush2.msra.mxu0 0.0
        %858 = vmatprep.subr.mxu0 0.0
        %859 = vmatpush2.msra.mxu0 0.0
        %860 = vmatprep.mubr.f32.mxu0 0.0
        %v861 = vand.u32 %v707, 4294901760
        %862 = vmatmul.mubr.f32.gmra.mxu0 %v861
        %v863 = vpop.f32.mrf.mxu0
        %v864 = vadd.f32 %v783, %v863
        %v865 = vpop.f32.mrf.mxu0
        %866 = vdwg.mxu0
        %867 = vmatprep.subr.mxu0 0.0
        %868 = vmatpush1.msra.mxu0 0.0
        %869 = vmatprep.subr.mxu0 0.0
        %870 = vmatpush1.msra.mxu0 0.0
        %871 = vmatprep.subr.mxu0 0.0
        %872 = vmatpush1.msra.mxu0 0.0
        %873 = vmatprep.subr.mxu0 0.0
        %874 = vmatpush1.msra.mxu0 0.0
        %875 = vmatprep.subr.mxu0 0.0
        %876 = vmatpush1.msra.mxu0 0.0
        %877 = vmatprep.subr.mxu0 0.0
        %878 = vmatpush1.msra.mxu0 0.0
        %879 = vmatprep.subr.mxu0 0.0
        %880 = vmatpush1.msra.mxu0 0.0
        %881 = vmatprep.subr.mxu0 0.0
        %882 = vmatpush1.msra.mxu0 0.0
        %883 = vmatprep.subr.mxu0 0.0
        %884 = vmatpush1.msra.mxu0 0.0
        %885 = vmatprep.subr.mxu0 0.0
        %886 = vmatpush1.msra.mxu0 0.0
        %887 = vmatprep.subr.mxu0 0.0
        %888 = vmatpush1.msra.mxu0 0.0
        %889 = vmatprep.subr.mxu0 0.0
        %890 = vmatpush1.msra.mxu0 0.0
        %891 = vmatprep.subr.mxu0 0.0
        %892 = vmatpush1.msra.mxu0 0.0
        %893 = vmatprep.subr.mxu0 0.0
        %894 = vmatpush1.msra.mxu0 0.0
        %895 = vmatprep.subr.mxu0 0.0
        %v896 = vand.u32 %v702, 4294901760
        %v897 = vsub.f32 %v702, %v896
        %898 = vmatpush1.msra.mxu0 %v897
        %899 = vmatprep.subr.mxu0 0.0
        %v900 = vand.u32 %v696, 4294901760
        %v901 = vsub.f32 %v696, %v900
        %902 = vmatpush1.msra.mxu0 %v901
        %903 = vmatprep.subr.mxu0 0.0
        %904 = vmatpush2.msra.mxu0 0.0
        %905 = vmatprep.subr.mxu0 0.0
        %906 = vmatpush2.msra.mxu0 0.0
        %907 = vmatprep.subr.mxu0 0.0
        %908 = vmatpush2.msra.mxu0 0.0
        %909 = vmatprep.subr.mxu0 0.0
        %910 = vmatpush2.msra.mxu0 0.0
        %911 = vmatprep.subr.mxu0 0.0
        %912 = vmatpush2.msra.mxu0 0.0
        %913 = vmatprep.subr.mxu0 0.0
        %914 = vmatpush2.msra.mxu0 0.0
        %915 = vmatprep.subr.mxu0 0.0
        %916 = vmatpush2.msra.mxu0 0.0
        %917 = vmatprep.subr.mxu0 0.0
        %918 = vmatpush2.msra.mxu0 0.0
        %919 = vmatprep.subr.mxu0 0.0
        %920 = vmatpush2.msra.mxu0 0.0
        %921 = vmatprep.subr.mxu0 0.0
        %922 = vmatpush2.msra.mxu0 0.0
        %923 = vmatprep.subr.mxu0 0.0
        %924 = vmatpush2.msra.mxu0 0.0
        %925 = vmatprep.subr.mxu0 0.0
        %926 = vmatpush2.msra.mxu0 0.0
        %927 = vmatprep.subr.mxu0 0.0
        %928 = vmatpush2.msra.mxu0 0.0
        %929 = vmatprep.subr.mxu0 0.0
        %930 = vmatpush2.msra.mxu0 0.0
        %931 = vmatprep.subr.mxu0 0.0
        %932 = vmatpush2.msra.mxu0 0.0
        %933 = vmatprep.subr.mxu0 0.0
        %934 = vmatpush2.msra.mxu0 0.0
        %935 = vmatprep.mubr.f32.mxu0 0.0
        %v936 = vand.u32 %v707, 4294901760
        %v937 = vsub.f32 %v707, %v936
        %938 = vmatmul.mubr.f32.gmra.mxu0 %v937
        %v939 = vpop.f32.mrf.mxu0
        %v940 = vadd.f32 %v864, %v939
        %v941 = vpop.f32.mrf.mxu0
        %942 = vdwg.mxu0
        %943 = vmatprep.subr.mxu0 0.0
        %944 = vmatpush1.msra.mxu0 0.0
        %945 = vmatprep.subr.mxu0 0.0
        %946 = vmatpush1.msra.mxu0 0.0
        %947 = vmatprep.subr.mxu0 0.0
        %948 = vmatpush1.msra.mxu0 0.0
        %949 = vmatprep.subr.mxu0 0.0
        %950 = vmatpush1.msra.mxu0 0.0
        %951 = vmatprep.subr.mxu0 0.0
        %952 = vmatpush1.msra.mxu0 0.0
        %953 = vmatprep.subr.mxu0 0.0
        %954 = vmatpush1.msra.mxu0 0.0
        %955 = vmatprep.subr.mxu0 0.0
        %956 = vmatpush1.msra.mxu0 0.0
        %957 = vmatprep.subr.mxu0 0.0
        %958 = vmatpush1.msra.mxu0 0.0
        %959 = vmatprep.subr.mxu0 0.0
        %960 = vmatpush1.msra.mxu0 0.0
        %961 = vmatprep.subr.mxu0 0.0
        %962 = vmatpush1.msra.mxu0 0.0
        %963 = vmatprep.subr.mxu0 0.0
        %964 = vmatpush1.msra.mxu0 0.0
        %965 = vmatprep.subr.mxu0 0.0
        %966 = vmatpush1.msra.mxu0 0.0
        %967 = vmatprep.subr.mxu0 0.0
        %968 = vmatpush1.msra.mxu0 0.0
        %969 = vmatprep.subr.mxu0 0.0
        %970 = vmatpush1.msra.mxu0 0.0
        %971 = vmatprep.subr.mxu0 0.0
        %v972 = vand.u32 %v702, 4294901760
        %973 = vmatpush1.msra.mxu0 %v972
        %974 = vmatprep.subr.mxu0 0.0
        %v975 = vand.u32 %v696, 4294901760
        %976 = vmatpush1.msra.mxu0 %v975
        %977 = vmatprep.subr.mxu0 0.0
        %978 = vmatpush2.msra.mxu0 0.0
        %979 = vmatprep.subr.mxu0 0.0
        %980 = vmatpush2.msra.mxu0 0.0
        %981 = vmatprep.subr.mxu0 0.0
        %982 = vmatpush2.msra.mxu0 0.0
        %983 = vmatprep.subr.mxu0 0.0
        %984 = vmatpush2.msra.mxu0 0.0
        %985 = vmatprep.subr.mxu0 0.0
        %986 = vmatpush2.msra.mxu0 0.0
        %987 = vmatprep.subr.mxu0 0.0
        %988 = vmatpush2.msra.mxu0 0.0
        %989 = vmatprep.subr.mxu0 0.0
        %990 = vmatpush2.msra.mxu0 0.0
        %991 = vmatprep.subr.mxu0 0.0
        %992 = vmatpush2.msra.mxu0 0.0
        %993 = vmatprep.subr.mxu0 0.0
        %994 = vmatpush2.msra.mxu0 0.0
        %995 = vmatprep.subr.mxu0 0.0
        %996 = vmatpush2.msra.mxu0 0.0
        %997 = vmatprep.subr.mxu0 0.0
        %998 = vmatpush2.msra.mxu0 0.0
        %999 = vmatprep.subr.mxu0 0.0
        %1000 = vmatpush2.msra.mxu0 0.0
        %1001 = vmatprep.subr.mxu0 0.0
        %1002 = vmatpush2.msra.mxu0 0.0
        %1003 = vmatprep.subr.mxu0 0.0
        %1004 = vmatpush2.msra.mxu0 0.0
        %1005 = vmatprep.subr.mxu0 0.0
        %1006 = vmatpush2.msra.mxu0 0.0
        %1007 = vmatprep.subr.mxu0 0.0
        %1008 = vmatpush2.msra.mxu0 0.0
        %1009 = vmatprep.mubr.f32.mxu0 0.0
        %v1010 = vand.u32 %v707, 4294901760
        %v1011 = vsub.f32 %v707, %v1010
        %v1012 = vand.u32 %v1011, 4294901760
        %1013 = vmatmul.mubr.f32.gmra.mxu0 %v1012
        %v1014 = vpop.f32.mrf.mxu0
        %v1015 = vadd.f32 %v940, %v1014
        %v1016 = vpop.f32.mrf.mxu0
        %1017 = vdwg.mxu0
        %1018 = vmatprep.subr.mxu0 0.0
        %1019 = vmatpush1.msra.mxu0 0.0
        %1020 = vmatprep.subr.mxu0 0.0
        %1021 = vmatpush1.msra.mxu0 0.0
        %1022 = vmatprep.subr.mxu0 0.0
        %1023 = vmatpush1.msra.mxu0 0.0
        %1024 = vmatprep.subr.mxu0 0.0
        %1025 = vmatpush1.msra.mxu0 0.0
        %1026 = vmatprep.subr.mxu0 0.0
        %1027 = vmatpush1.msra.mxu0 0.0
        %1028 = vmatprep.subr.mxu0 0.0
        %1029 = vmatpush1.msra.mxu0 0.0
        %1030 = vmatprep.subr.mxu0 0.0
        %1031 = vmatpush1.msra.mxu0 0.0
        %1032 = vmatprep.subr.mxu0 0.0
        %1033 = vmatpush1.msra.mxu0 0.0
        %1034 = vmatprep.subr.mxu0 0.0
        %1035 = vmatpush1.msra.mxu0 0.0
        %1036 = vmatprep.subr.mxu0 0.0
        %1037 = vmatpush1.msra.mxu0 0.0
        %1038 = vmatprep.subr.mxu0 0.0
        %1039 = vmatpush1.msra.mxu0 0.0
        %1040 = vmatprep.subr.mxu0 0.0
        %1041 = vmatpush1.msra.mxu0 0.0
        %1042 = vmatprep.subr.mxu0 0.0
        %1043 = vmatpush1.msra.mxu0 0.0
        %1044 = vmatprep.subr.mxu0 0.0
        %1045 = vmatpush1.msra.mxu0 0.0
        %1046 = vmatprep.subr.mxu0 0.0
        %v1047 = vand.u32 %v702, 4294901760
        %v1048 = vsub.f32 %v702, %v1047
        %v1049 = vand.u32 %v1048, 4294901760
        %1050 = vmatpush1.msra.mxu0 %v1049
        %1051 = vmatprep.subr.mxu0 0.0
        %v1052 = vand.u32 %v696, 4294901760
        %v1053 = vsub.f32 %v696, %v1052
        %v1054 = vand.u32 %v1053, 4294901760
        %1055 = vmatpush1.msra.mxu0 %v1054
        %1056 = vmatprep.subr.mxu0 0.0
        %1057 = vmatpush2.msra.mxu0 0.0
        %1058 = vmatprep.subr.mxu0 0.0
        %1059 = vmatpush2.msra.mxu0 0.0
        %1060 = vmatprep.subr.mxu0 0.0
        %1061 = vmatpush2.msra.mxu0 0.0
        %1062 = vmatprep.subr.mxu0 0.0
        %1063 = vmatpush2.msra.mxu0 0.0
        %1064 = vmatprep.subr.mxu0 0.0
        %1065 = vmatpush2.msra.mxu0 0.0
        %1066 = vmatprep.subr.mxu0 0.0
        %1067 = vmatpush2.msra.mxu0 0.0
        %1068 = vmatprep.subr.mxu0 0.0
        %1069 = vmatpush2.msra.mxu0 0.0
        %1070 = vmatprep.subr.mxu0 0.0
        %1071 = vmatpush2.msra.mxu0 0.0
        %1072 = vmatprep.subr.mxu0 0.0
        %1073 = vmatpush2.msra.mxu0 0.0
        %1074 = vmatprep.subr.mxu0 0.0
        %1075 = vmatpush2.msra.mxu0 0.0
        %1076 = vmatprep.subr.mxu0 0.0
        %1077 = vmatpush2.msra.mxu0 0.0
        %1078 = vmatprep.subr.mxu0 0.0
        %1079 = vmatpush2.msra.mxu0 0.0
        %1080 = vmatprep.subr.mxu0 0.0
        %1081 = vmatpush2.msra.mxu0 0.0
        %1082 = vmatprep.subr.mxu0 0.0
        %1083 = vmatpush2.msra.mxu0 0.0
        %1084 = vmatprep.subr.mxu0 0.0
        %1085 = vmatpush2.msra.mxu0 0.0
        %1086 = vmatprep.subr.mxu0 0.0
        %1087 = vmatpush2.msra.mxu0 0.0
        %1088 = vmatprep.mubr.f32.mxu0 0.0
        %v1089 = vand.u32 %v707, 4294901760
        %1090 = vmatmul.mubr.f32.gmra.mxu0 %v1089
        %v1091 = vpop.f32.mrf.mxu0
        %v1092 = vadd.f32 %v1015, %v1091
        %v1093 = vpop.f32.mrf.mxu0
        %1094 = vdwg.mxu0
        %1095 = vmatprep.subr.mxu0 0.0
        %1096 = vmatpush1.msra.mxu0 0.0
        %1097 = vmatprep.subr.mxu0 0.0
        %1098 = vmatpush1.msra.mxu0 0.0
        %1099 = vmatprep.subr.mxu0 0.0
        %1100 = vmatpush1.msra.mxu0 0.0
        %1101 = vmatprep.subr.mxu0 0.0
        %1102 = vmatpush1.msra.mxu0 0.0
        %1103 = vmatprep.subr.mxu0 0.0
        %1104 = vmatpush1.msra.mxu0 0.0
        %1105 = vmatprep.subr.mxu0 0.0
        %1106 = vmatpush1.msra.mxu0 0.0
        %1107 = vmatprep.subr.mxu0 0.0
        %1108 = vmatpush1.msra.mxu0 0.0
        %1109 = vmatprep.subr.mxu0 0.0
        %1110 = vmatpush1.msra.mxu0 0.0
        %1111 = vmatprep.subr.mxu0 0.0
        %1112 = vmatpush1.msra.mxu0 0.0
        %1113 = vmatprep.subr.mxu0 0.0
        %1114 = vmatpush1.msra.mxu0 0.0
        %1115 = vmatprep.subr.mxu0 0.0
        %1116 = vmatpush1.msra.mxu0 0.0
        %1117 = vmatprep.subr.mxu0 0.0
        %1118 = vmatpush1.msra.mxu0 0.0
        %1119 = vmatprep.subr.mxu0 0.0
        %1120 = vmatpush1.msra.mxu0 0.0
        %1121 = vmatprep.subr.mxu0 0.0
        %1122 = vmatpush1.msra.mxu0 0.0
        %1123 = vmatprep.subr.mxu0 0.0
        %v1124 = vand.u32 %v702, 4294901760
        %1125 = vmatpush1.msra.mxu0 %v1124
        %1126 = vmatprep.subr.mxu0 0.0
        %v1127 = vand.u32 %v696, 4294901760
        %1128 = vmatpush1.msra.mxu0 %v1127
        %1129 = vmatprep.subr.mxu0 0.0
        %1130 = vmatpush2.msra.mxu0 0.0
        %1131 = vmatprep.subr.mxu0 0.0
        %1132 = vmatpush2.msra.mxu0 0.0
        %1133 = vmatprep.subr.mxu0 0.0
        %1134 = vmatpush2.msra.mxu0 0.0
        %1135 = vmatprep.subr.mxu0 0.0
        %1136 = vmatpush2.msra.mxu0 0.0
        %1137 = vmatprep.subr.mxu0 0.0
        %1138 = vmatpush2.msra.mxu0 0.0
        %1139 = vmatprep.subr.mxu0 0.0
        %1140 = vmatpush2.msra.mxu0 0.0
        %1141 = vmatprep.subr.mxu0 0.0
        %1142 = vmatpush2.msra.mxu0 0.0
        %1143 = vmatprep.subr.mxu0 0.0
        %1144 = vmatpush2.msra.mxu0 0.0
        %1145 = vmatprep.subr.mxu0 0.0
        %1146 = vmatpush2.msra.mxu0 0.0
        %1147 = vmatprep.subr.mxu0 0.0
        %1148 = vmatpush2.msra.mxu0 0.0
        %1149 = vmatprep.subr.mxu0 0.0
        %1150 = vmatpush2.msra.mxu0 0.0
        %1151 = vmatprep.subr.mxu0 0.0
        %1152 = vmatpush2.msra.mxu0 0.0
        %1153 = vmatprep.subr.mxu0 0.0
        %1154 = vmatpush2.msra.mxu0 0.0
        %1155 = vmatprep.subr.mxu0 0.0
        %1156 = vmatpush2.msra.mxu0 0.0
        %1157 = vmatprep.subr.mxu0 0.0
        %1158 = vmatpush2.msra.mxu0 0.0
        %1159 = vmatprep.subr.mxu0 0.0
        %1160 = vmatpush2.msra.mxu0 0.0
        %1161 = vmatprep.mubr.f32.mxu0 0.0
        %v1162 = vand.u32 %v707, 4294901760
        %1163 = vmatmul.mubr.f32.gmra.mxu0 %v1162
        %v1164 = vpop.f32.mrf.mxu0
        %v1165 = vadd.f32 %v1092, %v1164
        %v1166 = vpop.f32.mrf.mxu0
        %1167 = vdwg.mxu0
        %vm1168 = vcmask 64512
        %1169 = vst.msk [vmem:[%s189] sm:$0xff] %vm1168, %v1165
        %s1170 = scalar_lea.vmem %s167, 16 [#allocation2]
        %v1171 = vld [vmem:[%s1170] sm:$0xff]
        %v1172 = vld [vmem:[%s1170 + $0x8] sm:$0xff]
        %v1173 = vld [vmem:[%s2] sm:$0xff]
        %v1174 = vld [vmem:[%s2 + $0x8] sm:$0xff]
        %v1176 = vsel %vm196, %v1171, 0
        %v1179 = vsel %vm196, %v1172, 0
        %1181 = vmatprep.subr.mxu0 0.0
        %1182 = vmatpush1.msra.mxu0 0.0
        %1183 = vmatprep.subr.mxu0 0.0
        %1184 = vmatpush1.msra.mxu0 0.0
        %1185 = vmatprep.subr.mxu0 0.0
        %1186 = vmatpush1.msra.mxu0 0.0
        %1187 = vmatprep.subr.mxu0 0.0
        %1188 = vmatpush1.msra.mxu0 0.0
        %1189 = vmatprep.subr.mxu0 0.0
        %1190 = vmatpush1.msra.mxu0 0.0
        %1191 = vmatprep.subr.mxu0 0.0
        %1192 = vmatpush1.msra.mxu0 0.0
        %1193 = vmatprep.subr.mxu0 0.0
        %1194 = vmatpush1.msra.mxu0 0.0
        %1195 = vmatprep.subr.mxu0 0.0
        %1196 = vmatpush1.msra.mxu0 0.0
        %1197 = vmatprep.subr.mxu0 0.0
        %1198 = vmatpush1.msra.mxu0 0.0
        %1199 = vmatprep.subr.mxu0 0.0
        %1200 = vmatpush1.msra.mxu0 0.0
        %1201 = vmatprep.subr.mxu0 0.0
        %1202 = vmatpush1.msra.mxu0 0.0
        %1203 = vmatprep.subr.mxu0 0.0
        %1204 = vmatpush1.msra.mxu0 0.0
        %1205 = vmatprep.subr.mxu0 0.0
        %1206 = vmatpush1.msra.mxu0 0.0
        %1207 = vmatprep.subr.mxu0 0.0
        %1208 = vmatpush1.msra.mxu0 0.0
        %1209 = vmatprep.subr.mxu0 0.0
        %v1210 = vand.u32 %v1174, 4294901760
        %1211 = vmatpush1.msra.mxu0 %v1210
        %1212 = vmatprep.subr.mxu0 0.0
        %v1213 = vand.u32 %v1173, 4294901760
        %1214 = vmatpush1.msra.mxu0 %v1213
        %1215 = vmatprep.subr.mxu0 0.0
        %1216 = vmatpush2.msra.mxu0 0.0
        %1217 = vmatprep.subr.mxu0 0.0
        %1218 = vmatpush2.msra.mxu0 0.0
        %1219 = vmatprep.subr.mxu0 0.0
        %1220 = vmatpush2.msra.mxu0 0.0
        %1221 = vmatprep.subr.mxu0 0.0
        %1222 = vmatpush2.msra.mxu0 0.0
        %1223 = vmatprep.subr.mxu0 0.0
        %1224 = vmatpush2.msra.mxu0 0.0
        %1225 = vmatprep.subr.mxu0 0.0
        %1226 = vmatpush2.msra.mxu0 0.0
        %1227 = vmatprep.subr.mxu0 0.0
        %1228 = vmatpush2.msra.mxu0 0.0
        %1229 = vmatprep.subr.mxu0 0.0
        %1230 = vmatpush2.msra.mxu0 0.0
        %1231 = vmatprep.subr.mxu0 0.0
        %1232 = vmatpush2.msra.mxu0 0.0
        %1233 = vmatprep.subr.mxu0 0.0
        %1234 = vmatpush2.msra.mxu0 0.0
        %1235 = vmatprep.subr.mxu0 0.0
        %1236 = vmatpush2.msra.mxu0 0.0
        %1237 = vmatprep.subr.mxu0 0.0
        %1238 = vmatpush2.msra.mxu0 0.0
        %1239 = vmatprep.subr.mxu0 0.0
        %1240 = vmatpush2.msra.mxu0 0.0
        %1241 = vmatprep.subr.mxu0 0.0
        %1242 = vmatpush2.msra.mxu0 0.0
        %1243 = vmatprep.subr.mxu0 0.0
        %1244 = vmatpush2.msra.mxu0 0.0
        %1245 = vmatprep.subr.mxu0 0.0
        %1246 = vmatpush2.msra.mxu0 0.0
        %1247 = vmatprep.mubr.f32.mxu0 0.0
        %v1248 = vand.u32 %v1176, 4294901760
        %v1249 = vsub.f32 %v1176, %v1248
        %v1250 = vand.u32 %v1249, 4294901760
        %v1251 = vsub.f32 %v1249, %v1250
        %v1252 = vand.u32 %v1251, 4294901760
        %1253 = vmatmul.mubr.f32.gmra.mxu0 %v1252
        %v1254 = vpop.f32.mrf.mxu0
        %v1255 = vadd.f32 0.0, %v1254
        %v1256 = vpop.f32.mrf.mxu0
        %1257 = vmatprep.mubr.f32.mxu0 0.0
        %v1258 = vand.u32 %v1179, 4294901760
        %v1259 = vsub.f32 %v1179, %v1258
        %v1260 = vand.u32 %v1259, 4294901760
        %v1261 = vsub.f32 %v1259, %v1260
        %v1262 = vand.u32 %v1261, 4294901760
        %1263 = vmatmul.mubr.f32.gmra.mxu0 %v1262
        %v1264 = vpop.f32.mrf.mxu0
        %v1265 = vadd.f32 0.0, %v1264
        %v1266 = vpop.f32.mrf.mxu0
        %1267 = vdwg.mxu0
        %1268 = vmatprep.subr.mxu0 0.0
        %1269 = vmatpush1.msra.mxu0 0.0
        %1270 = vmatprep.subr.mxu0 0.0
        %1271 = vmatpush1.msra.mxu0 0.0
        %1272 = vmatprep.subr.mxu0 0.0
        %1273 = vmatpush1.msra.mxu0 0.0
        %1274 = vmatprep.subr.mxu0 0.0
        %1275 = vmatpush1.msra.mxu0 0.0
        %1276 = vmatprep.subr.mxu0 0.0
        %1277 = vmatpush1.msra.mxu0 0.0
        %1278 = vmatprep.subr.mxu0 0.0
        %1279 = vmatpush1.msra.mxu0 0.0
        %1280 = vmatprep.subr.mxu0 0.0
        %1281 = vmatpush1.msra.mxu0 0.0
        %1282 = vmatprep.subr.mxu0 0.0
        %1283 = vmatpush1.msra.mxu0 0.0
        %1284 = vmatprep.subr.mxu0 0.0
        %1285 = vmatpush1.msra.mxu0 0.0
        %1286 = vmatprep.subr.mxu0 0.0
        %1287 = vmatpush1.msra.mxu0 0.0
        %1288 = vmatprep.subr.mxu0 0.0
        %1289 = vmatpush1.msra.mxu0 0.0
        %1290 = vmatprep.subr.mxu0 0.0
        %1291 = vmatpush1.msra.mxu0 0.0
        %1292 = vmatprep.subr.mxu0 0.0
        %1293 = vmatpush1.msra.mxu0 0.0
        %1294 = vmatprep.subr.mxu0 0.0
        %1295 = vmatpush1.msra.mxu0 0.0
        %1296 = vmatprep.subr.mxu0 0.0
        %v1297 = vand.u32 %v1174, 4294901760
        %v1298 = vsub.f32 %v1174, %v1297
        %v1299 = vand.u32 %v1298, 4294901760
        %v1300 = vsub.f32 %v1298, %v1299
        %v1301 = vand.u32 %v1300, 4294901760
        %1302 = vmatpush1.msra.mxu0 %v1301
        %1303 = vmatprep.subr.mxu0 0.0
        %v1304 = vand.u32 %v1173, 4294901760
        %v1305 = vsub.f32 %v1173, %v1304
        %v1306 = vand.u32 %v1305, 4294901760
        %v1307 = vsub.f32 %v1305, %v1306
        %v1308 = vand.u32 %v1307, 4294901760
        %1309 = vmatpush1.msra.mxu0 %v1308
        %1310 = vmatprep.subr.mxu0 0.0
        %1311 = vmatpush2.msra.mxu0 0.0
        %1312 = vmatprep.subr.mxu0 0.0
        %1313 = vmatpush2.msra.mxu0 0.0
        %1314 = vmatprep.subr.mxu0 0.0
        %1315 = vmatpush2.msra.mxu0 0.0
        %1316 = vmatprep.subr.mxu0 0.0
        %1317 = vmatpush2.msra.mxu0 0.0
        %1318 = vmatprep.subr.mxu0 0.0
        %1319 = vmatpush2.msra.mxu0 0.0
        %1320 = vmatprep.subr.mxu0 0.0
        %1321 = vmatpush2.msra.mxu0 0.0
        %1322 = vmatprep.subr.mxu0 0.0
        %1323 = vmatpush2.msra.mxu0 0.0
        %1324 = vmatprep.subr.mxu0 0.0
        %1325 = vmatpush2.msra.mxu0 0.0
        %1326 = vmatprep.subr.mxu0 0.0
        %1327 = vmatpush2.msra.mxu0 0.0
        %1328 = vmatprep.subr.mxu0 0.0
        %1329 = vmatpush2.msra.mxu0 0.0
        %1330 = vmatprep.subr.mxu0 0.0
        %1331 = vmatpush2.msra.mxu0 0.0
        %1332 = vmatprep.subr.mxu0 0.0
        %1333 = vmatpush2.msra.mxu0 0.0
        %1334 = vmatprep.subr.mxu0 0.0
        %1335 = vmatpush2.msra.mxu0 0.0
        %1336 = vmatprep.subr.mxu0 0.0
        %1337 = vmatpush2.msra.mxu0 0.0
        %1338 = vmatprep.subr.mxu0 0.0
        %1339 = vmatpush2.msra.mxu0 0.0
        %1340 = vmatprep.subr.mxu0 0.0
        %1341 = vmatpush2.msra.mxu0 0.0
        %1342 = vmatprep.mubr.f32.mxu0 0.0
        %v1343 = vand.u32 %v1176, 4294901760
        %1344 = vmatmul.mubr.f32.gmra.mxu0 %v1343
        %v1345 = vpop.f32.mrf.mxu0
        %v1346 = vadd.f32 %v1255, %v1345
        %v1347 = vpop.f32.mrf.mxu0
        %1348 = vmatprep.mubr.f32.mxu0 0.0
        %v1349 = vand.u32 %v1179, 4294901760
        %1350 = vmatmul.mubr.f32.gmra.mxu0 %v1349
        %v1351 = vpop.f32.mrf.mxu0
        %v1352 = vadd.f32 %v1265, %v1351
        %v1353 = vpop.f32.mrf.mxu0
        %1354 = vdwg.mxu0
        %1355 = vmatprep.subr.mxu0 0.0
        %1356 = vmatpush1.msra.mxu0 0.0
        %1357 = vmatprep.subr.mxu0 0.0
        %1358 = vmatpush1.msra.mxu0 0.0
        %1359 = vmatprep.subr.mxu0 0.0
        %1360 = vmatpush1.msra.mxu0 0.0
        %1361 = vmatprep.subr.mxu0 0.0
        %1362 = vmatpush1.msra.mxu0 0.0
        %1363 = vmatprep.subr.mxu0 0.0
        %1364 = vmatpush1.msra.mxu0 0.0
        %1365 = vmatprep.subr.mxu0 0.0
        %1366 = vmatpush1.msra.mxu0 0.0
        %1367 = vmatprep.subr.mxu0 0.0
        %1368 = vmatpush1.msra.mxu0 0.0
        %1369 = vmatprep.subr.mxu0 0.0
        %1370 = vmatpush1.msra.mxu0 0.0
        %1371 = vmatprep.subr.mxu0 0.0
        %1372 = vmatpush1.msra.mxu0 0.0
        %1373 = vmatprep.subr.mxu0 0.0
        %1374 = vmatpush1.msra.mxu0 0.0
        %1375 = vmatprep.subr.mxu0 0.0
        %1376 = vmatpush1.msra.mxu0 0.0
        %1377 = vmatprep.subr.mxu0 0.0
        %1378 = vmatpush1.msra.mxu0 0.0
        %1379 = vmatprep.subr.mxu0 0.0
        %1380 = vmatpush1.msra.mxu0 0.0
        %1381 = vmatprep.subr.mxu0 0.0
        %1382 = vmatpush1.msra.mxu0 0.0
        %1383 = vmatprep.subr.mxu0 0.0
        %v1384 = vand.u32 %v1174, 4294901760
        %v1385 = vsub.f32 %v1174, %v1384
        %1386 = vmatpush1.msra.mxu0 %v1385
        %1387 = vmatprep.subr.mxu0 0.0
        %v1388 = vand.u32 %v1173, 4294901760
        %v1389 = vsub.f32 %v1173, %v1388
        %1390 = vmatpush1.msra.mxu0 %v1389
        %1391 = vmatprep.subr.mxu0 0.0
        %1392 = vmatpush2.msra.mxu0 0.0
        %1393 = vmatprep.subr.mxu0 0.0
        %1394 = vmatpush2.msra.mxu0 0.0
        %1395 = vmatprep.subr.mxu0 0.0
        %1396 = vmatpush2.msra.mxu0 0.0
        %1397 = vmatprep.subr.mxu0 0.0
        %1398 = vmatpush2.msra.mxu0 0.0
        %1399 = vmatprep.subr.mxu0 0.0
        %1400 = vmatpush2.msra.mxu0 0.0
        %1401 = vmatprep.subr.mxu0 0.0
        %1402 = vmatpush2.msra.mxu0 0.0
        %1403 = vmatprep.subr.mxu0 0.0
        %1404 = vmatpush2.msra.mxu0 0.0
        %1405 = vmatprep.subr.mxu0 0.0
        %1406 = vmatpush2.msra.mxu0 0.0
        %1407 = vmatprep.subr.mxu0 0.0
        %1408 = vmatpush2.msra.mxu0 0.0
        %1409 = vmatprep.subr.mxu0 0.0
        %1410 = vmatpush2.msra.mxu0 0.0
        %1411 = vmatprep.subr.mxu0 0.0
        %1412 = vmatpush2.msra.mxu0 0.0
        %1413 = vmatprep.subr.mxu0 0.0
        %1414 = vmatpush2.msra.mxu0 0.0
        %1415 = vmatprep.subr.mxu0 0.0
        %1416 = vmatpush2.msra.mxu0 0.0
        %1417 = vmatprep.subr.mxu0 0.0
        %1418 = vmatpush2.msra.mxu0 0.0
        %1419 = vmatprep.subr.mxu0 0.0
        %1420 = vmatpush2.msra.mxu0 0.0
        %1421 = vmatprep.subr.mxu0 0.0
        %1422 = vmatpush2.msra.mxu0 0.0
        %1423 = vmatprep.mubr.f32.mxu0 0.0
        %v1424 = vand.u32 %v1176, 4294901760
        %v1425 = vsub.f32 %v1176, %v1424
        %1426 = vmatmul.mubr.f32.gmra.mxu0 %v1425
        %v1427 = vpop.f32.mrf.mxu0
        %v1428 = vadd.f32 %v1346, %v1427
        %v1429 = vpop.f32.mrf.mxu0
        %1430 = vmatprep.mubr.f32.mxu0 0.0
        %v1431 = vand.u32 %v1179, 4294901760
        %v1432 = vsub.f32 %v1179, %v1431
        %1433 = vmatmul.mubr.f32.gmra.mxu0 %v1432
        %v1434 = vpop.f32.mrf.mxu0
        %v1435 = vadd.f32 %v1352, %v1434
        %v1436 = vpop.f32.mrf.mxu0
        %1437 = vdwg.mxu0
        %1438 = vmatprep.subr.mxu0 0.0
        %1439 = vmatpush1.msra.mxu0 0.0
        %1440 = vmatprep.subr.mxu0 0.0
        %1441 = vmatpush1.msra.mxu0 0.0
        %1442 = vmatprep.subr.mxu0 0.0
        %1443 = vmatpush1.msra.mxu0 0.0
        %1444 = vmatprep.subr.mxu0 0.0
        %1445 = vmatpush1.msra.mxu0 0.0
        %1446 = vmatprep.subr.mxu0 0.0
        %1447 = vmatpush1.msra.mxu0 0.0
        %1448 = vmatprep.subr.mxu0 0.0
        %1449 = vmatpush1.msra.mxu0 0.0
        %1450 = vmatprep.subr.mxu0 0.0
        %1451 = vmatpush1.msra.mxu0 0.0
        %1452 = vmatprep.subr.mxu0 0.0
        %1453 = vmatpush1.msra.mxu0 0.0
        %1454 = vmatprep.subr.mxu0 0.0
        %1455 = vmatpush1.msra.mxu0 0.0
        %1456 = vmatprep.subr.mxu0 0.0
        %1457 = vmatpush1.msra.mxu0 0.0
        %1458 = vmatprep.subr.mxu0 0.0
        %1459 = vmatpush1.msra.mxu0 0.0
        %1460 = vmatprep.subr.mxu0 0.0
        %1461 = vmatpush1.msra.mxu0 0.0
        %1462 = vmatprep.subr.mxu0 0.0
        %1463 = vmatpush1.msra.mxu0 0.0
        %1464 = vmatprep.subr.mxu0 0.0
        %1465 = vmatpush1.msra.mxu0 0.0
        %1466 = vmatprep.subr.mxu0 0.0
        %v1467 = vand.u32 %v1174, 4294901760
        %1468 = vmatpush1.msra.mxu0 %v1467
        %1469 = vmatprep.subr.mxu0 0.0
        %v1470 = vand.u32 %v1173, 4294901760
        %1471 = vmatpush1.msra.mxu0 %v1470
        %1472 = vmatprep.subr.mxu0 0.0
        %1473 = vmatpush2.msra.mxu0 0.0
        %1474 = vmatprep.subr.mxu0 0.0
        %1475 = vmatpush2.msra.mxu0 0.0
        %1476 = vmatprep.subr.mxu0 0.0
        %1477 = vmatpush2.msra.mxu0 0.0
        %1478 = vmatprep.subr.mxu0 0.0
        %1479 = vmatpush2.msra.mxu0 0.0
        %1480 = vmatprep.subr.mxu0 0.0
        %1481 = vmatpush2.msra.mxu0 0.0
        %1482 = vmatprep.subr.mxu0 0.0
        %1483 = vmatpush2.msra.mxu0 0.0
        %1484 = vmatprep.subr.mxu0 0.0
        %1485 = vmatpush2.msra.mxu0 0.0
        %1486 = vmatprep.subr.mxu0 0.0
        %1487 = vmatpush2.msra.mxu0 0.0
        %1488 = vmatprep.subr.mxu0 0.0
        %1489 = vmatpush2.msra.mxu0 0.0
        %1490 = vmatprep.subr.mxu0 0.0
        %1491 = vmatpush2.msra.mxu0 0.0
        %1492 = vmatprep.subr.mxu0 0.0
        %1493 = vmatpush2.msra.mxu0 0.0
        %1494 = vmatprep.subr.mxu0 0.0
        %1495 = vmatpush2.msra.mxu0 0.0
        %1496 = vmatprep.subr.mxu0 0.0
        %1497 = vmatpush2.msra.mxu0 0.0
        %1498 = vmatprep.subr.mxu0 0.0
        %1499 = vmatpush2.msra.mxu0 0.0
        %1500 = vmatprep.subr.mxu0 0.0
        %1501 = vmatpush2.msra.mxu0 0.0
        %1502 = vmatprep.subr.mxu0 0.0
        %1503 = vmatpush2.msra.mxu0 0.0
        %1504 = vmatprep.mubr.f32.mxu0 0.0
        %v1505 = vand.u32 %v1176, 4294901760
        %v1506 = vsub.f32 %v1176, %v1505
        %v1507 = vand.u32 %v1506, 4294901760
        %1508 = vmatmul.mubr.f32.gmra.mxu0 %v1507
        %v1509 = vpop.f32.mrf.mxu0
        %v1510 = vadd.f32 %v1428, %v1509
        %v1511 = vpop.f32.mrf.mxu0
        %1512 = vmatprep.mubr.f32.mxu0 0.0
        %v1513 = vand.u32 %v1179, 4294901760
        %v1514 = vsub.f32 %v1179, %v1513
        %v1515 = vand.u32 %v1514, 4294901760
        %1516 = vmatmul.mubr.f32.gmra.mxu0 %v1515
        %v1517 = vpop.f32.mrf.mxu0
        %v1518 = vadd.f32 %v1435, %v1517
        %v1519 = vpop.f32.mrf.mxu0
        %1520 = vdwg.mxu0
        %1521 = vmatprep.subr.mxu0 0.0
        %1522 = vmatpush1.msra.mxu0 0.0
        %1523 = vmatprep.subr.mxu0 0.0
        %1524 = vmatpush1.msra.mxu0 0.0
        %1525 = vmatprep.subr.mxu0 0.0
        %1526 = vmatpush1.msra.mxu0 0.0
        %1527 = vmatprep.subr.mxu0 0.0
        %1528 = vmatpush1.msra.mxu0 0.0
        %1529 = vmatprep.subr.mxu0 0.0
        %1530 = vmatpush1.msra.mxu0 0.0
        %1531 = vmatprep.subr.mxu0 0.0
        %1532 = vmatpush1.msra.mxu0 0.0
        %1533 = vmatprep.subr.mxu0 0.0
        %1534 = vmatpush1.msra.mxu0 0.0
        %1535 = vmatprep.subr.mxu0 0.0
        %1536 = vmatpush1.msra.mxu0 0.0
        %1537 = vmatprep.subr.mxu0 0.0
        %1538 = vmatpush1.msra.mxu0 0.0
        %1539 = vmatprep.subr.mxu0 0.0
        %1540 = vmatpush1.msra.mxu0 0.0
        %1541 = vmatprep.subr.mxu0 0.0
        %1542 = vmatpush1.msra.mxu0 0.0
        %1543 = vmatprep.subr.mxu0 0.0
        %1544 = vmatpush1.msra.mxu0 0.0
        %1545 = vmatprep.subr.mxu0 0.0
        %1546 = vmatpush1.msra.mxu0 0.0
        %1547 = vmatprep.subr.mxu0 0.0
        %1548 = vmatpush1.msra.mxu0 0.0
        %1549 = vmatprep.subr.mxu0 0.0
        %v1550 = vand.u32 %v1174, 4294901760
        %v1551 = vsub.f32 %v1174, %v1550
        %v1552 = vand.u32 %v1551, 4294901760
        %1553 = vmatpush1.msra.mxu0 %v1552
        %1554 = vmatprep.subr.mxu0 0.0
        %v1555 = vand.u32 %v1173, 4294901760
        %v1556 = vsub.f32 %v1173, %v1555
        %v1557 = vand.u32 %v1556, 4294901760
        %1558 = vmatpush1.msra.mxu0 %v1557
        %1559 = vmatprep.subr.mxu0 0.0
        %1560 = vmatpush2.msra.mxu0 0.0
        %1561 = vmatprep.subr.mxu0 0.0
        %1562 = vmatpush2.msra.mxu0 0.0
        %1563 = vmatprep.subr.mxu0 0.0
        %1564 = vmatpush2.msra.mxu0 0.0
        %1565 = vmatprep.subr.mxu0 0.0
        %1566 = vmatpush2.msra.mxu0 0.0
        %1567 = vmatprep.subr.mxu0 0.0
        %1568 = vmatpush2.msra.mxu0 0.0
        %1569 = vmatprep.subr.mxu0 0.0
        %1570 = vmatpush2.msra.mxu0 0.0
        %1571 = vmatprep.subr.mxu0 0.0
        %1572 = vmatpush2.msra.mxu0 0.0
        %1573 = vmatprep.subr.mxu0 0.0
        %1574 = vmatpush2.msra.mxu0 0.0
        %1575 = vmatprep.subr.mxu0 0.0
        %1576 = vmatpush2.msra.mxu0 0.0
        %1577 = vmatprep.subr.mxu0 0.0
        %1578 = vmatpush2.msra.mxu0 0.0
        %1579 = vmatprep.subr.mxu0 0.0
        %1580 = vmatpush2.msra.mxu0 0.0
        %1581 = vmatprep.subr.mxu0 0.0
        %1582 = vmatpush2.msra.mxu0 0.0
        %1583 = vmatprep.subr.mxu0 0.0
        %1584 = vmatpush2.msra.mxu0 0.0
        %1585 = vmatprep.subr.mxu0 0.0
        %1586 = vmatpush2.msra.mxu0 0.0
        %1587 = vmatprep.subr.mxu0 0.0
        %1588 = vmatpush2.msra.mxu0 0.0
        %1589 = vmatprep.subr.mxu0 0.0
        %1590 = vmatpush2.msra.mxu0 0.0
        %1591 = vmatprep.mubr.f32.mxu0 0.0
        %v1592 = vand.u32 %v1176, 4294901760
        %1593 = vmatmul.mubr.f32.gmra.mxu0 %v1592
        %v1594 = vpop.f32.mrf.mxu0
        %v1595 = vadd.f32 %v1510, %v1594
        %v1596 = vpop.f32.mrf.mxu0
        %1597 = vmatprep.mubr.f32.mxu0 0.0
        %v1598 = vand.u32 %v1179, 4294901760
        %1599 = vmatmul.mubr.f32.gmra.mxu0 %v1598
        %v1600 = vpop.f32.mrf.mxu0
        %v1601 = vadd.f32 %v1518, %v1600
        %v1602 = vpop.f32.mrf.mxu0
        %1603 = vdwg.mxu0
        %1604 = vmatprep.subr.mxu0 0.0
        %1605 = vmatpush1.msra.mxu0 0.0
        %1606 = vmatprep.subr.mxu0 0.0
        %1607 = vmatpush1.msra.mxu0 0.0
        %1608 = vmatprep.subr.mxu0 0.0
        %1609 = vmatpush1.msra.mxu0 0.0
        %1610 = vmatprep.subr.mxu0 0.0
        %1611 = vmatpush1.msra.mxu0 0.0
        %1612 = vmatprep.subr.mxu0 0.0
        %1613 = vmatpush1.msra.mxu0 0.0
        %1614 = vmatprep.subr.mxu0 0.0
        %1615 = vmatpush1.msra.mxu0 0.0
        %1616 = vmatprep.subr.mxu0 0.0
        %1617 = vmatpush1.msra.mxu0 0.0
        %1618 = vmatprep.subr.mxu0 0.0
        %1619 = vmatpush1.msra.mxu0 0.0
        %1620 = vmatprep.subr.mxu0 0.0
        %1621 = vmatpush1.msra.mxu0 0.0
        %1622 = vmatprep.subr.mxu0 0.0
        %1623 = vmatpush1.msra.mxu0 0.0
        %1624 = vmatprep.subr.mxu0 0.0
        %1625 = vmatpush1.msra.mxu0 0.0
        %1626 = vmatprep.subr.mxu0 0.0
        %1627 = vmatpush1.msra.mxu0 0.0
        %1628 = vmatprep.subr.mxu0 0.0
        %1629 = vmatpush1.msra.mxu0 0.0
        %1630 = vmatprep.subr.mxu0 0.0
        %1631 = vmatpush1.msra.mxu0 0.0
        %1632 = vmatprep.subr.mxu0 0.0
        %v1633 = vand.u32 %v1174, 4294901760
        %1634 = vmatpush1.msra.mxu0 %v1633
        %1635 = vmatprep.subr.mxu0 0.0
        %v1636 = vand.u32 %v1173, 4294901760
        %1637 = vmatpush1.msra.mxu0 %v1636
        %1638 = vmatprep.subr.mxu0 0.0
        %1639 = vmatpush2.msra.mxu0 0.0
        %1640 = vmatprep.subr.mxu0 0.0
        %1641 = vmatpush2.msra.mxu0 0.0
        %1642 = vmatprep.subr.mxu0 0.0
        %1643 = vmatpush2.msra.mxu0 0.0
        %1644 = vmatprep.subr.mxu0 0.0
        %1645 = vmatpush2.msra.mxu0 0.0
        %1646 = vmatprep.subr.mxu0 0.0
        %1647 = vmatpush2.msra.mxu0 0.0
        %1648 = vmatprep.subr.mxu0 0.0
        %1649 = vmatpush2.msra.mxu0 0.0
        %1650 = vmatprep.subr.mxu0 0.0
        %1651 = vmatpush2.msra.mxu0 0.0
        %1652 = vmatprep.subr.mxu0 0.0
        %1653 = vmatpush2.msra.mxu0 0.0
        %1654 = vmatprep.subr.mxu0 0.0
        %1655 = vmatpush2.msra.mxu0 0.0
        %1656 = vmatprep.subr.mxu0 0.0
        %1657 = vmatpush2.msra.mxu0 0.0
        %1658 = vmatprep.subr.mxu0 0.0
        %1659 = vmatpush2.msra.mxu0 0.0
        %1660 = vmatprep.subr.mxu0 0.0
        %1661 = vmatpush2.msra.mxu0 0.0
        %1662 = vmatprep.subr.mxu0 0.0
        %1663 = vmatpush2.msra.mxu0 0.0
        %1664 = vmatprep.subr.mxu0 0.0
        %1665 = vmatpush2.msra.mxu0 0.0
        %1666 = vmatprep.subr.mxu0 0.0
        %1667 = vmatpush2.msra.mxu0 0.0
        %1668 = vmatprep.subr.mxu0 0.0
        %1669 = vmatpush2.msra.mxu0 0.0
        %1670 = vmatprep.mubr.f32.mxu0 0.0
        %v1671 = vand.u32 %v1176, 4294901760
        %1672 = vmatmul.mubr.f32.gmra.mxu0 %v1671
        %v1673 = vpop.f32.mrf.mxu0
        %v1674 = vadd.f32 %v1595, %v1673
        %v1675 = vpop.f32.mrf.mxu0
        %1676 = vmatprep.mubr.f32.mxu0 0.0
        %v1677 = vand.u32 %v1179, 4294901760
        %1678 = vmatmul.mubr.f32.gmra.mxu0 %v1677
        %v1679 = vpop.f32.mrf.mxu0
        %v1680 = vadd.f32 %v1601, %v1679
        %v1681 = vpop.f32.mrf.mxu0
        %1682 = vdwg.mxu0
        %v1683 = vld [vmem:[%s1] sm:$0xff]
        %v1685 = vsel %vm196, %v1683, 0
        %1687 = vmatprep.subr.mxu0 0.0
        %1688 = vmatpush1.msra.mxu0 0.0
        %1689 = vmatprep.subr.mxu0 0.0
        %1690 = vmatpush1.msra.mxu0 0.0
        %1691 = vmatprep.subr.mxu0 0.0
        %1692 = vmatpush1.msra.mxu0 0.0
        %1693 = vmatprep.subr.mxu0 0.0
        %1694 = vmatpush1.msra.mxu0 0.0
        %1695 = vmatprep.subr.mxu0 0.0
        %1696 = vmatpush1.msra.mxu0 0.0
        %1697 = vmatprep.subr.mxu0 0.0
        %1698 = vmatpush1.msra.mxu0 0.0
        %1699 = vmatprep.subr.mxu0 0.0
        %1700 = vmatpush1.msra.mxu0 0.0
        %1701 = vmatprep.subr.mxu0 0.0
        %1702 = vmatpush1.msra.mxu0 0.0
        %1703 = vmatprep.subr.mxu0 0.0
        %1704 = vmatpush1.msra.mxu0 0.0
        %1705 = vmatprep.subr.mxu0 0.0
        %1706 = vmatpush1.msra.mxu0 0.0
        %1707 = vmatprep.subr.mxu0 0.0
        %1708 = vmatpush1.msra.mxu0 0.0
        %1709 = vmatprep.subr.mxu0 0.0
        %1710 = vmatpush1.msra.mxu0 0.0
        %1711 = vmatprep.subr.mxu0 0.0
        %1712 = vmatpush1.msra.mxu0 0.0
        %1713 = vmatprep.subr.mxu0 0.0
        %1714 = vmatpush1.msra.mxu0 0.0
        %1715 = vmatprep.subr.mxu0 0.0
        %v1716 = vand.u32 %v1680, 4294901760
        %1717 = vmatpush1.msra.mxu0 %v1716
        %1718 = vmatprep.subr.mxu0 0.0
        %v1719 = vand.u32 %v1674, 4294901760
        %1720 = vmatpush1.msra.mxu0 %v1719
        %1721 = vmatprep.subr.mxu0 0.0
        %1722 = vmatpush2.msra.mxu0 0.0
        %1723 = vmatprep.subr.mxu0 0.0
        %1724 = vmatpush2.msra.mxu0 0.0
        %1725 = vmatprep.subr.mxu0 0.0
        %1726 = vmatpush2.msra.mxu0 0.0
        %1727 = vmatprep.subr.mxu0 0.0
        %1728 = vmatpush2.msra.mxu0 0.0
        %1729 = vmatprep.subr.mxu0 0.0
        %1730 = vmatpush2.msra.mxu0 0.0
        %1731 = vmatprep.subr.mxu0 0.0
        %1732 = vmatpush2.msra.mxu0 0.0
        %1733 = vmatprep.subr.mxu0 0.0
        %1734 = vmatpush2.msra.mxu0 0.0
        %1735 = vmatprep.subr.mxu0 0.0
        %1736 = vmatpush2.msra.mxu0 0.0
        %1737 = vmatprep.subr.mxu0 0.0
        %1738 = vmatpush2.msra.mxu0 0.0
        %1739 = vmatprep.subr.mxu0 0.0
        %1740 = vmatpush2.msra.mxu0 0.0
        %1741 = vmatprep.subr.mxu0 0.0
        %1742 = vmatpush2.msra.mxu0 0.0
        %1743 = vmatprep.subr.mxu0 0.0
        %1744 = vmatpush2.msra.mxu0 0.0
        %1745 = vmatprep.subr.mxu0 0.0
        %1746 = vmatpush2.msra.mxu0 0.0
        %1747 = vmatprep.subr.mxu0 0.0
        %1748 = vmatpush2.msra.mxu0 0.0
        %1749 = vmatprep.subr.mxu0 0.0
        %1750 = vmatpush2.msra.mxu0 0.0
        %1751 = vmatprep.subr.mxu0 0.0
        %1752 = vmatpush2.msra.mxu0 0.0
        %1753 = vmatprep.mubr.f32.mxu0 0.0
        %v1754 = vand.u32 %v1685, 4294901760
        %v1755 = vsub.f32 %v1685, %v1754
        %v1756 = vand.u32 %v1755, 4294901760
        %v1757 = vsub.f32 %v1755, %v1756
        %v1758 = vand.u32 %v1757, 4294901760
        %1759 = vmatmul.mubr.f32.gmra.mxu0 %v1758
        %v1760 = vpop.f32.mrf.mxu0
        %v1761 = vadd.f32 0.0, %v1760
        %v1762 = vpop.f32.mrf.mxu0
        %1763 = vdwg.mxu0
        %1764 = vmatprep.subr.mxu0 0.0
        %1765 = vmatpush1.msra.mxu0 0.0
        %1766 = vmatprep.subr.mxu0 0.0
        %1767 = vmatpush1.msra.mxu0 0.0
        %1768 = vmatprep.subr.mxu0 0.0
        %1769 = vmatpush1.msra.mxu0 0.0
        %1770 = vmatprep.subr.mxu0 0.0
        %1771 = vmatpush1.msra.mxu0 0.0
        %1772 = vmatprep.subr.mxu0 0.0
        %1773 = vmatpush1.msra.mxu0 0.0
        %1774 = vmatprep.subr.mxu0 0.0
        %1775 = vmatpush1.msra.mxu0 0.0
        %1776 = vmatprep.subr.mxu0 0.0
        %1777 = vmatpush1.msra.mxu0 0.0
        %1778 = vmatprep.subr.mxu0 0.0
        %1779 = vmatpush1.msra.mxu0 0.0
        %1780 = vmatprep.subr.mxu0 0.0
        %1781 = vmatpush1.msra.mxu0 0.0
        %1782 = vmatprep.subr.mxu0 0.0
        %1783 = vmatpush1.msra.mxu0 0.0
        %1784 = vmatprep.subr.mxu0 0.0
        %1785 = vmatpush1.msra.mxu0 0.0
        %1786 = vmatprep.subr.mxu0 0.0
        %1787 = vmatpush1.msra.mxu0 0.0
        %1788 = vmatprep.subr.mxu0 0.0
        %1789 = vmatpush1.msra.mxu0 0.0
        %1790 = vmatprep.subr.mxu0 0.0
        %1791 = vmatpush1.msra.mxu0 0.0
        %1792 = vmatprep.subr.mxu0 0.0
        %v1793 = vand.u32 %v1680, 4294901760
        %v1794 = vsub.f32 %v1680, %v1793
        %v1795 = vand.u32 %v1794, 4294901760
        %v1796 = vsub.f32 %v1794, %v1795
        %v1797 = vand.u32 %v1796, 4294901760
        %1798 = vmatpush1.msra.mxu0 %v1797
        %1799 = vmatprep.subr.mxu0 0.0
        %v1800 = vand.u32 %v1674, 4294901760
        %v1801 = vsub.f32 %v1674, %v1800
        %v1802 = vand.u32 %v1801, 4294901760
        %v1803 = vsub.f32 %v1801, %v1802
        %v1804 = vand.u32 %v1803, 4294901760
        %1805 = vmatpush1.msra.mxu0 %v1804
        %1806 = vmatprep.subr.mxu0 0.0
        %1807 = vmatpush2.msra.mxu0 0.0
        %1808 = vmatprep.subr.mxu0 0.0
        %1809 = vmatpush2.msra.mxu0 0.0
        %1810 = vmatprep.subr.mxu0 0.0
        %1811 = vmatpush2.msra.mxu0 0.0
        %1812 = vmatprep.subr.mxu0 0.0
        %1813 = vmatpush2.msra.mxu0 0.0
        %1814 = vmatprep.subr.mxu0 0.0
        %1815 = vmatpush2.msra.mxu0 0.0
        %1816 = vmatprep.subr.mxu0 0.0
        %1817 = vmatpush2.msra.mxu0 0.0
        %1818 = vmatprep.subr.mxu0 0.0
        %1819 = vmatpush2.msra.mxu0 0.0
        %1820 = vmatprep.subr.mxu0 0.0
        %1821 = vmatpush2.msra.mxu0 0.0
        %1822 = vmatprep.subr.mxu0 0.0
        %1823 = vmatpush2.msra.mxu0 0.0
        %1824 = vmatprep.subr.mxu0 0.0
        %1825 = vmatpush2.msra.mxu0 0.0
        %1826 = vmatprep.subr.mxu0 0.0
        %1827 = vmatpush2.msra.mxu0 0.0
        %1828 = vmatprep.subr.mxu0 0.0
        %1829 = vmatpush2.msra.mxu0 0.0
        %1830 = vmatprep.subr.mxu0 0.0
        %1831 = vmatpush2.msra.mxu0 0.0
        %1832 = vmatprep.subr.mxu0 0.0
        %1833 = vmatpush2.msra.mxu0 0.0
        %1834 = vmatprep.subr.mxu0 0.0
        %1835 = vmatpush2.msra.mxu0 0.0
        %1836 = vmatprep.subr.mxu0 0.0
        %1837 = vmatpush2.msra.mxu0 0.0
        %1838 = vmatprep.mubr.f32.mxu0 0.0
        %v1839 = vand.u32 %v1685, 4294901760
        %1840 = vmatmul.mubr.f32.gmra.mxu0 %v1839
        %v1841 = vpop.f32.mrf.mxu0
        %v1842 = vadd.f32 %v1761, %v1841
        %v1843 = vpop.f32.mrf.mxu0
        %1844 = vdwg.mxu0
        %1845 = vmatprep.subr.mxu0 0.0
        %1846 = vmatpush1.msra.mxu0 0.0
        %1847 = vmatprep.subr.mxu0 0.0
        %1848 = vmatpush1.msra.mxu0 0.0
        %1849 = vmatprep.subr.mxu0 0.0
        %1850 = vmatpush1.msra.mxu0 0.0
        %1851 = vmatprep.subr.mxu0 0.0
        %1852 = vmatpush1.msra.mxu0 0.0
        %1853 = vmatprep.subr.mxu0 0.0
        %1854 = vmatpush1.msra.mxu0 0.0
        %1855 = vmatprep.subr.mxu0 0.0
        %1856 = vmatpush1.msra.mxu0 0.0
        %1857 = vmatprep.subr.mxu0 0.0
        %1858 = vmatpush1.msra.mxu0 0.0
        %1859 = vmatprep.subr.mxu0 0.0
        %1860 = vmatpush1.msra.mxu0 0.0
        %1861 = vmatprep.subr.mxu0 0.0
        %1862 = vmatpush1.msra.mxu0 0.0
        %1863 = vmatprep.subr.mxu0 0.0
        %1864 = vmatpush1.msra.mxu0 0.0
        %1865 = vmatprep.subr.mxu0 0.0
        %1866 = vmatpush1.msra.mxu0 0.0
        %1867 = vmatprep.subr.mxu0 0.0
        %1868 = vmatpush1.msra.mxu0 0.0
        %1869 = vmatprep.subr.mxu0 0.0
        %1870 = vmatpush1.msra.mxu0 0.0
        %1871 = vmatprep.subr.mxu0 0.0
        %1872 = vmatpush1.msra.mxu0 0.0
        %1873 = vmatprep.subr.mxu0 0.0
        %v1874 = vand.u32 %v1680, 4294901760
        %v1875 = vsub.f32 %v1680, %v1874
        %1876 = vmatpush1.msra.mxu0 %v1875
        %1877 = vmatprep.subr.mxu0 0.0
        %v1878 = vand.u32 %v1674, 4294901760
        %v1879 = vsub.f32 %v1674, %v1878
        %1880 = vmatpush1.msra.mxu0 %v1879
        %1881 = vmatprep.subr.mxu0 0.0
        %1882 = vmatpush2.msra.mxu0 0.0
        %1883 = vmatprep.subr.mxu0 0.0
        %1884 = vmatpush2.msra.mxu0 0.0
        %1885 = vmatprep.subr.mxu0 0.0
        %1886 = vmatpush2.msra.mxu0 0.0
        %1887 = vmatprep.subr.mxu0 0.0
        %1888 = vmatpush2.msra.mxu0 0.0
        %1889 = vmatprep.subr.mxu0 0.0
        %1890 = vmatpush2.msra.mxu0 0.0
        %1891 = vmatprep.subr.mxu0 0.0
        %1892 = vmatpush2.msra.mxu0 0.0
        %1893 = vmatprep.subr.mxu0 0.0
        %1894 = vmatpush2.msra.mxu0 0.0
        %1895 = vmatprep.subr.mxu0 0.0
        %1896 = vmatpush2.msra.mxu0 0.0
        %1897 = vmatprep.subr.mxu0 0.0
        %1898 = vmatpush2.msra.mxu0 0.0
        %1899 = vmatprep.subr.mxu0 0.0
        %1900 = vmatpush2.msra.mxu0 0.0
        %1901 = vmatprep.subr.mxu0 0.0
        %1902 = vmatpush2.msra.mxu0 0.0
        %1903 = vmatprep.subr.mxu0 0.0
        %1904 = vmatpush2.msra.mxu0 0.0
        %1905 = vmatprep.subr.mxu0 0.0
        %1906 = vmatpush2.msra.mxu0 0.0
        %1907 = vmatprep.subr.mxu0 0.0
        %1908 = vmatpush2.msra.mxu0 0.0
        %1909 = vmatprep.subr.mxu0 0.0
        %1910 = vmatpush2.msra.mxu0 0.0
        %1911 = vmatprep.subr.mxu0 0.0
        %1912 = vmatpush2.msra.mxu0 0.0
        %1913 = vmatprep.mubr.f32.mxu0 0.0
        %v1914 = vand.u32 %v1685, 4294901760
        %v1915 = vsub.f32 %v1685, %v1914
        %1916 = vmatmul.mubr.f32.gmra.mxu0 %v1915
        %v1917 = vpop.f32.mrf.mxu0
        %v1918 = vadd.f32 %v1842, %v1917
        %v1919 = vpop.f32.mrf.mxu0
        %1920 = vdwg.mxu0
        %1921 = vmatprep.subr.mxu0 0.0
        %1922 = vmatpush1.msra.mxu0 0.0
        %1923 = vmatprep.subr.mxu0 0.0
        %1924 = vmatpush1.msra.mxu0 0.0
        %1925 = vmatprep.subr.mxu0 0.0
        %1926 = vmatpush1.msra.mxu0 0.0
        %1927 = vmatprep.subr.mxu0 0.0
        %1928 = vmatpush1.msra.mxu0 0.0
        %1929 = vmatprep.subr.mxu0 0.0
        %1930 = vmatpush1.msra.mxu0 0.0
        %1931 = vmatprep.subr.mxu0 0.0
        %1932 = vmatpush1.msra.mxu0 0.0
        %1933 = vmatprep.subr.mxu0 0.0
        %1934 = vmatpush1.msra.mxu0 0.0
        %1935 = vmatprep.subr.mxu0 0.0
        %1936 = vmatpush1.msra.mxu0 0.0
        %1937 = vmatprep.subr.mxu0 0.0
        %1938 = vmatpush1.msra.mxu0 0.0
        %1939 = vmatprep.subr.mxu0 0.0
        %1940 = vmatpush1.msra.mxu0 0.0
        %1941 = vmatprep.subr.mxu0 0.0
        %1942 = vmatpush1.msra.mxu0 0.0
        %1943 = vmatprep.subr.mxu0 0.0
        %1944 = vmatpush1.msra.mxu0 0.0
        %1945 = vmatprep.subr.mxu0 0.0
        %1946 = vmatpush1.msra.mxu0 0.0
        %1947 = vmatprep.subr.mxu0 0.0
        %1948 = vmatpush1.msra.mxu0 0.0
        %1949 = vmatprep.subr.mxu0 0.0
        %v1950 = vand.u32 %v1680, 4294901760
        %1951 = vmatpush1.msra.mxu0 %v1950
        %1952 = vmatprep.subr.mxu0 0.0
        %v1953 = vand.u32 %v1674, 4294901760
        %1954 = vmatpush1.msra.mxu0 %v1953
        %1955 = vmatprep.subr.mxu0 0.0
        %1956 = vmatpush2.msra.mxu0 0.0
        %1957 = vmatprep.subr.mxu0 0.0
        %1958 = vmatpush2.msra.mxu0 0.0
        %1959 = vmatprep.subr.mxu0 0.0
        %1960 = vmatpush2.msra.mxu0 0.0
        %1961 = vmatprep.subr.mxu0 0.0
        %1962 = vmatpush2.msra.mxu0 0.0
        %1963 = vmatprep.subr.mxu0 0.0
        %1964 = vmatpush2.msra.mxu0 0.0
        %1965 = vmatprep.subr.mxu0 0.0
        %1966 = vmatpush2.msra.mxu0 0.0
        %1967 = vmatprep.subr.mxu0 0.0
        %1968 = vmatpush2.msra.mxu0 0.0
        %1969 = vmatprep.subr.mxu0 0.0
        %1970 = vmatpush2.msra.mxu0 0.0
        %1971 = vmatprep.subr.mxu0 0.0
        %1972 = vmatpush2.msra.mxu0 0.0
        %1973 = vmatprep.subr.mxu0 0.0
        %1974 = vmatpush2.msra.mxu0 0.0
        %1975 = vmatprep.subr.mxu0 0.0
        %1976 = vmatpush2.msra.mxu0 0.0
        %1977 = vmatprep.subr.mxu0 0.0
        %1978 = vmatpush2.msra.mxu0 0.0
        %1979 = vmatprep.subr.mxu0 0.0
        %1980 = vmatpush2.msra.mxu0 0.0
        %1981 = vmatprep.subr.mxu0 0.0
        %1982 = vmatpush2.msra.mxu0 0.0
        %1983 = vmatprep.subr.mxu0 0.0
        %1984 = vmatpush2.msra.mxu0 0.0
        %1985 = vmatprep.subr.mxu0 0.0
        %1986 = vmatpush2.msra.mxu0 0.0
        %1987 = vmatprep.mubr.f32.mxu0 0.0
        %v1988 = vand.u32 %v1685, 4294901760
        %v1989 = vsub.f32 %v1685, %v1988
        %v1990 = vand.u32 %v1989, 4294901760
        %1991 = vmatmul.mubr.f32.gmra.mxu0 %v1990
        %v1992 = vpop.f32.mrf.mxu0
        %v1993 = vadd.f32 %v1918, %v1992
        %v1994 = vpop.f32.mrf.mxu0
        %1995 = vdwg.mxu0
        %1996 = vmatprep.subr.mxu0 0.0
        %1997 = vmatpush1.msra.mxu0 0.0
        %1998 = vmatprep.subr.mxu0 0.0
        %1999 = vmatpush1.msra.mxu0 0.0
        %2000 = vmatprep.subr.mxu0 0.0
        %2001 = vmatpush1.msra.mxu0 0.0
        %2002 = vmatprep.subr.mxu0 0.0
        %2003 = vmatpush1.msra.mxu0 0.0
        %2004 = vmatprep.subr.mxu0 0.0
        %2005 = vmatpush1.msra.mxu0 0.0
        %2006 = vmatprep.subr.mxu0 0.0
        %2007 = vmatpush1.msra.mxu0 0.0
        %2008 = vmatprep.subr.mxu0 0.0
        %2009 = vmatpush1.msra.mxu0 0.0
        %2010 = vmatprep.subr.mxu0 0.0
        %2011 = vmatpush1.msra.mxu0 0.0
        %2012 = vmatprep.subr.mxu0 0.0
        %2013 = vmatpush1.msra.mxu0 0.0
        %2014 = vmatprep.subr.mxu0 0.0
        %2015 = vmatpush1.msra.mxu0 0.0
        %2016 = vmatprep.subr.mxu0 0.0
        %2017 = vmatpush1.msra.mxu0 0.0
        %2018 = vmatprep.subr.mxu0 0.0
        %2019 = vmatpush1.msra.mxu0 0.0
        %2020 = vmatprep.subr.mxu0 0.0
        %2021 = vmatpush1.msra.mxu0 0.0
        %2022 = vmatprep.subr.mxu0 0.0
        %2023 = vmatpush1.msra.mxu0 0.0
        %2024 = vmatprep.subr.mxu0 0.0
        %v2025 = vand.u32 %v1680, 4294901760
        %v2026 = vsub.f32 %v1680, %v2025
        %v2027 = vand.u32 %v2026, 4294901760
        %2028 = vmatpush1.msra.mxu0 %v2027
        %2029 = vmatprep.subr.mxu0 0.0
        %v2030 = vand.u32 %v1674, 4294901760
        %v2031 = vsub.f32 %v1674, %v2030
        %v2032 = vand.u32 %v2031, 4294901760
        %2033 = vmatpush1.msra.mxu0 %v2032
        %2034 = vmatprep.subr.mxu0 0.0
        %2035 = vmatpush2.msra.mxu0 0.0
        %2036 = vmatprep.subr.mxu0 0.0
        %2037 = vmatpush2.msra.mxu0 0.0
        %2038 = vmatprep.subr.mxu0 0.0
        %2039 = vmatpush2.msra.mxu0 0.0
        %2040 = vmatprep.subr.mxu0 0.0
        %2041 = vmatpush2.msra.mxu0 0.0
        %2042 = vmatprep.subr.mxu0 0.0
        %2043 = vmatpush2.msra.mxu0 0.0
        %2044 = vmatprep.subr.mxu0 0.0
        %2045 = vmatpush2.msra.mxu0 0.0
        %2046 = vmatprep.subr.mxu0 0.0
        %2047 = vmatpush2.msra.mxu0 0.0
        %2048 = vmatprep.subr.mxu0 0.0
        %2049 = vmatpush2.msra.mxu0 0.0
        %2050 = vmatprep.subr.mxu0 0.0
        %2051 = vmatpush2.msra.mxu0 0.0
        %2052 = vmatprep.subr.mxu0 0.0
        %2053 = vmatpush2.msra.mxu0 0.0
        %2054 = vmatprep.subr.mxu0 0.0
        %2055 = vmatpush2.msra.mxu0 0.0
        %2056 = vmatprep.subr.mxu0 0.0
        %2057 = vmatpush2.msra.mxu0 0.0
        %2058 = vmatprep.subr.mxu0 0.0
        %2059 = vmatpush2.msra.mxu0 0.0
        %2060 = vmatprep.subr.mxu0 0.0
        %2061 = vmatpush2.msra.mxu0 0.0
        %2062 = vmatprep.subr.mxu0 0.0
        %2063 = vmatpush2.msra.mxu0 0.0
        %2064 = vmatprep.subr.mxu0 0.0
        %2065 = vmatpush2.msra.mxu0 0.0
        %2066 = vmatprep.mubr.f32.mxu0 0.0
        %v2067 = vand.u32 %v1685, 4294901760
        %2068 = vmatmul.mubr.f32.gmra.mxu0 %v2067
        %v2069 = vpop.f32.mrf.mxu0
        %v2070 = vadd.f32 %v1993, %v2069
        %v2071 = vpop.f32.mrf.mxu0
        %2072 = vdwg.mxu0
        %2073 = vmatprep.subr.mxu0 0.0
        %2074 = vmatpush1.msra.mxu0 0.0
        %2075 = vmatprep.subr.mxu0 0.0
        %2076 = vmatpush1.msra.mxu0 0.0
        %2077 = vmatprep.subr.mxu0 0.0
        %2078 = vmatpush1.msra.mxu0 0.0
        %2079 = vmatprep.subr.mxu0 0.0
        %2080 = vmatpush1.msra.mxu0 0.0
        %2081 = vmatprep.subr.mxu0 0.0
        %2082 = vmatpush1.msra.mxu0 0.0
        %2083 = vmatprep.subr.mxu0 0.0
        %2084 = vmatpush1.msra.mxu0 0.0
        %2085 = vmatprep.subr.mxu0 0.0
        %2086 = vmatpush1.msra.mxu0 0.0
        %2087 = vmatprep.subr.mxu0 0.0
        %2088 = vmatpush1.msra.mxu0 0.0
        %2089 = vmatprep.subr.mxu0 0.0
        %2090 = vmatpush1.msra.mxu0 0.0
        %2091 = vmatprep.subr.mxu0 0.0
        %2092 = vmatpush1.msra.mxu0 0.0
        %2093 = vmatprep.subr.mxu0 0.0
        %2094 = vmatpush1.msra.mxu0 0.0
        %2095 = vmatprep.subr.mxu0 0.0
        %2096 = vmatpush1.msra.mxu0 0.0
        %2097 = vmatprep.subr.mxu0 0.0
        %2098 = vmatpush1.msra.mxu0 0.0
        %2099 = vmatprep.subr.mxu0 0.0
        %2100 = vmatpush1.msra.mxu0 0.0
        %2101 = vmatprep.subr.mxu0 0.0
        %v2102 = vand.u32 %v1680, 4294901760
        %2103 = vmatpush1.msra.mxu0 %v2102
        %2104 = vmatprep.subr.mxu0 0.0
        %v2105 = vand.u32 %v1674, 4294901760
        %2106 = vmatpush1.msra.mxu0 %v2105
        %2107 = vmatprep.subr.mxu0 0.0
        %2108 = vmatpush2.msra.mxu0 0.0
        %2109 = vmatprep.subr.mxu0 0.0
        %2110 = vmatpush2.msra.mxu0 0.0
        %2111 = vmatprep.subr.mxu0 0.0
        %2112 = vmatpush2.msra.mxu0 0.0
        %2113 = vmatprep.subr.mxu0 0.0
        %2114 = vmatpush2.msra.mxu0 0.0
        %2115 = vmatprep.subr.mxu0 0.0
        %2116 = vmatpush2.msra.mxu0 0.0
        %2117 = vmatprep.subr.mxu0 0.0
        %2118 = vmatpush2.msra.mxu0 0.0
        %2119 = vmatprep.subr.mxu0 0.0
        %2120 = vmatpush2.msra.mxu0 0.0
        %2121 = vmatprep.subr.mxu0 0.0
        %2122 = vmatpush2.msra.mxu0 0.0
        %2123 = vmatprep.subr.mxu0 0.0
        %2124 = vmatpush2.msra.mxu0 0.0
        %2125 = vmatprep.subr.mxu0 0.0
        %2126 = vmatpush2.msra.mxu0 0.0
        %2127 = vmatprep.subr.mxu0 0.0
        %2128 = vmatpush2.msra.mxu0 0.0
        %2129 = vmatprep.subr.mxu0 0.0
        %2130 = vmatpush2.msra.mxu0 0.0
        %2131 = vmatprep.subr.mxu0 0.0
        %2132 = vmatpush2.msra.mxu0 0.0
        %2133 = vmatprep.subr.mxu0 0.0
        %2134 = vmatpush2.msra.mxu0 0.0
        %2135 = vmatprep.subr.mxu0 0.0
        %2136 = vmatpush2.msra.mxu0 0.0
        %2137 = vmatprep.subr.mxu0 0.0
        %2138 = vmatpush2.msra.mxu0 0.0
        %2139 = vmatprep.mubr.f32.mxu0 0.0
        %v2140 = vand.u32 %v1685, 4294901760
        %2141 = vmatmul.mubr.f32.gmra.mxu0 %v2140
        %v2142 = vpop.f32.mrf.mxu0
        %v2143 = vadd.f32 %v2070, %v2142
        %v2144 = vpop.f32.mrf.mxu0
        %2145 = vdwg.mxu0
        %s2146 = scalar_lea.vmem %s189, 8 [#allocation5]
        %2147 = vst.msk [vmem:[%s2146] sm:$0xff] %vm1168, %v2143
        %s2148 = scalar_lea.vmem %s167, 32 [#allocation2]
        %v2149 = vld [vmem:[%s2148] sm:$0xff]
        %v2150 = vld [vmem:[%s2148 + $0x8] sm:$0xff]
        %v2151 = vld [vmem:[%s2] sm:$0xff]
        %v2152 = vld [vmem:[%s2 + $0x8] sm:$0xff]
        %v2154 = vsel %vm196, %v2149, 0
        %v2157 = vsel %vm196, %v2150, 0
        %2159 = vmatprep.subr.mxu0 0.0
        %2160 = vmatpush1.msra.mxu0 0.0
        %2161 = vmatprep.subr.mxu0 0.0
        %2162 = vmatpush1.msra.mxu0 0.0
        %2163 = vmatprep.subr.mxu0 0.0
        %2164 = vmatpush1.msra.mxu0 0.0
        %2165 = vmatprep.subr.mxu0 0.0
        %2166 = vmatpush1.msra.mxu0 0.0
        %2167 = vmatprep.subr.mxu0 0.0
        %2168 = vmatpush1.msra.mxu0 0.0
        %2169 = vmatprep.subr.mxu0 0.0
        %2170 = vmatpush1.msra.mxu0 0.0
        %2171 = vmatprep.subr.mxu0 0.0
        %2172 = vmatpush1.msra.mxu0 0.0
        %2173 = vmatprep.subr.mxu0 0.0
        %2174 = vmatpush1.msra.mxu0 0.0
        %2175 = vmatprep.subr.mxu0 0.0
        %2176 = vmatpush1.msra.mxu0 0.0
        %2177 = vmatprep.subr.mxu0 0.0
        %2178 = vmatpush1.msra.mxu0 0.0
        %2179 = vmatprep.subr.mxu0 0.0
        %2180 = vmatpush1.msra.mxu0 0.0
        %2181 = vmatprep.subr.mxu0 0.0
        %2182 = vmatpush1.msra.mxu0 0.0
        %2183 = vmatprep.subr.mxu0 0.0
        %2184 = vmatpush1.msra.mxu0 0.0
        %2185 = vmatprep.subr.mxu0 0.0
        %2186 = vmatpush1.msra.mxu0 0.0
        %2187 = vmatprep.subr.mxu0 0.0
        %v2188 = vand.u32 %v2152, 4294901760
        %2189 = vmatpush1.msra.mxu0 %v2188
        %2190 = vmatprep.subr.mxu0 0.0
        %v2191 = vand.u32 %v2151, 4294901760
        %2192 = vmatpush1.msra.mxu0 %v2191
        %2193 = vmatprep.subr.mxu0 0.0
        %2194 = vmatpush2.msra.mxu0 0.0
        %2195 = vmatprep.subr.mxu0 0.0
        %2196 = vmatpush2.msra.mxu0 0.0
        %2197 = vmatprep.subr.mxu0 0.0
        %2198 = vmatpush2.msra.mxu0 0.0
        %2199 = vmatprep.subr.mxu0 0.0
        %2200 = vmatpush2.msra.mxu0 0.0
        %2201 = vmatprep.subr.mxu0 0.0
        %2202 = vmatpush2.msra.mxu0 0.0
        %2203 = vmatprep.subr.mxu0 0.0
        %2204 = vmatpush2.msra.mxu0 0.0
        %2205 = vmatprep.subr.mxu0 0.0
        %2206 = vmatpush2.msra.mxu0 0.0
        %2207 = vmatprep.subr.mxu0 0.0
        %2208 = vmatpush2.msra.mxu0 0.0
        %2209 = vmatprep.subr.mxu0 0.0
        %2210 = vmatpush2.msra.mxu0 0.0
        %2211 = vmatprep.subr.mxu0 0.0
        %2212 = vmatpush2.msra.mxu0 0.0
        %2213 = vmatprep.subr.mxu0 0.0
        %2214 = vmatpush2.msra.mxu0 0.0
        %2215 = vmatprep.subr.mxu0 0.0
        %2216 = vmatpush2.msra.mxu0 0.0
        %2217 = vmatprep.subr.mxu0 0.0
        %2218 = vmatpush2.msra.mxu0 0.0
        %2219 = vmatprep.subr.mxu0 0.0
        %2220 = vmatpush2.msra.mxu0 0.0
        %2221 = vmatprep.subr.mxu0 0.0
        %2222 = vmatpush2.msra.mxu0 0.0
        %2223 = vmatprep.subr.mxu0 0.0
        %2224 = vmatpush2.msra.mxu0 0.0
        %2225 = vmatprep.mubr.f32.mxu0 0.0
        %v2226 = vand.u32 %v2154, 4294901760
        %v2227 = vsub.f32 %v2154, %v2226
        %v2228 = vand.u32 %v2227, 4294901760
        %v2229 = vsub.f32 %v2227, %v2228
        %v2230 = vand.u32 %v2229, 4294901760
        %2231 = vmatmul.mubr.f32.gmra.mxu0 %v2230
        %v2232 = vpop.f32.mrf.mxu0
        %v2233 = vadd.f32 0.0, %v2232
        %v2234 = vpop.f32.mrf.mxu0
        %2235 = vmatprep.mubr.f32.mxu0 0.0
        %v2236 = vand.u32 %v2157, 4294901760
        %v2237 = vsub.f32 %v2157, %v2236
        %v2238 = vand.u32 %v2237, 4294901760
        %v2239 = vsub.f32 %v2237, %v2238
        %v2240 = vand.u32 %v2239, 4294901760
        %2241 = vmatmul.mubr.f32.gmra.mxu0 %v2240
        %v2242 = vpop.f32.mrf.mxu0
        %v2243 = vadd.f32 0.0, %v2242
        %v2244 = vpop.f32.mrf.mxu0
        %2245 = vdwg.mxu0
        %2246 = vmatprep.subr.mxu0 0.0
        %2247 = vmatpush1.msra.mxu0 0.0
        %2248 = vmatprep.subr.mxu0 0.0
        %2249 = vmatpush1.msra.mxu0 0.0
        %2250 = vmatprep.subr.mxu0 0.0
        %2251 = vmatpush1.msra.mxu0 0.0
        %2252 = vmatprep.subr.mxu0 0.0
        %2253 = vmatpush1.msra.mxu0 0.0
        %2254 = vmatprep.subr.mxu0 0.0
        %2255 = vmatpush1.msra.mxu0 0.0
        %2256 = vmatprep.subr.mxu0 0.0
        %2257 = vmatpush1.msra.mxu0 0.0
        %2258 = vmatprep.subr.mxu0 0.0
        %2259 = vmatpush1.msra.mxu0 0.0
        %2260 = vmatprep.subr.mxu0 0.0
        %2261 = vmatpush1.msra.mxu0 0.0
        %2262 = vmatprep.subr.mxu0 0.0
        %2263 = vmatpush1.msra.mxu0 0.0
        %2264 = vmatprep.subr.mxu0 0.0
        %2265 = vmatpush1.msra.mxu0 0.0
        %2266 = vmatprep.subr.mxu0 0.0
        %2267 = vmatpush1.msra.mxu0 0.0
        %2268 = vmatprep.subr.mxu0 0.0
        %2269 = vmatpush1.msra.mxu0 0.0
        %2270 = vmatprep.subr.mxu0 0.0
        %2271 = vmatpush1.msra.mxu0 0.0
        %2272 = vmatprep.subr.mxu0 0.0
        %2273 = vmatpush1.msra.mxu0 0.0
        %2274 = vmatprep.subr.mxu0 0.0
        %v2275 = vand.u32 %v2152, 4294901760
        %v2276 = vsub.f32 %v2152, %v2275
        %v2277 = vand.u32 %v2276, 4294901760
        %v2278 = vsub.f32 %v2276, %v2277
        %v2279 = vand.u32 %v2278, 4294901760
        %2280 = vmatpush1.msra.mxu0 %v2279
        %2281 = vmatprep.subr.mxu0 0.0
        %v2282 = vand.u32 %v2151, 4294901760
        %v2283 = vsub.f32 %v2151, %v2282
        %v2284 = vand.u32 %v2283, 4294901760
        %v2285 = vsub.f32 %v2283, %v2284
        %v2286 = vand.u32 %v2285, 4294901760
        %2287 = vmatpush1.msra.mxu0 %v2286
        %2288 = vmatprep.subr.mxu0 0.0
        %2289 = vmatpush2.msra.mxu0 0.0
        %2290 = vmatprep.subr.mxu0 0.0
        %2291 = vmatpush2.msra.mxu0 0.0
        %2292 = vmatprep.subr.mxu0 0.0
        %2293 = vmatpush2.msra.mxu0 0.0
        %2294 = vmatprep.subr.mxu0 0.0
        %2295 = vmatpush2.msra.mxu0 0.0
        %2296 = vmatprep.subr.mxu0 0.0
        %2297 = vmatpush2.msra.mxu0 0.0
        %2298 = vmatprep.subr.mxu0 0.0
        %2299 = vmatpush2.msra.mxu0 0.0
        %2300 = vmatprep.subr.mxu0 0.0
        %2301 = vmatpush2.msra.mxu0 0.0
        %2302 = vmatprep.subr.mxu0 0.0
        %2303 = vmatpush2.msra.mxu0 0.0
        %2304 = vmatprep.subr.mxu0 0.0
        %2305 = vmatpush2.msra.mxu0 0.0
        %2306 = vmatprep.subr.mxu0 0.0
        %2307 = vmatpush2.msra.mxu0 0.0
        %2308 = vmatprep.subr.mxu0 0.0
        %2309 = vmatpush2.msra.mxu0 0.0
        %2310 = vmatprep.subr.mxu0 0.0
        %2311 = vmatpush2.msra.mxu0 0.0
        %2312 = vmatprep.subr.mxu0 0.0
        %2313 = vmatpush2.msra.mxu0 0.0
        %2314 = vmatprep.subr.mxu0 0.0
        %2315 = vmatpush2.msra.mxu0 0.0
        %2316 = vmatprep.subr.mxu0 0.0
        %2317 = vmatpush2.msra.mxu0 0.0
        %2318 = vmatprep.subr.mxu0 0.0
        %2319 = vmatpush2.msra.mxu0 0.0
        %2320 = vmatprep.mubr.f32.mxu0 0.0
        %v2321 = vand.u32 %v2154, 4294901760
        %2322 = vmatmul.mubr.f32.gmra.mxu0 %v2321
        %v2323 = vpop.f32.mrf.mxu0
        %v2324 = vadd.f32 %v2233, %v2323
        %v2325 = vpop.f32.mrf.mxu0
        %2326 = vmatprep.mubr.f32.mxu0 0.0
        %v2327 = vand.u32 %v2157, 4294901760
        %2328 = vmatmul.mubr.f32.gmra.mxu0 %v2327
        %v2329 = vpop.f32.mrf.mxu0
        %v2330 = vadd.f32 %v2243, %v2329
        %v2331 = vpop.f32.mrf.mxu0
        %2332 = vdwg.mxu0
        %2333 = vmatprep.subr.mxu0 0.0
        %2334 = vmatpush1.msra.mxu0 0.0
        %2335 = vmatprep.subr.mxu0 0.0
        %2336 = vmatpush1.msra.mxu0 0.0
        %2337 = vmatprep.subr.mxu0 0.0
        %2338 = vmatpush1.msra.mxu0 0.0
        %2339 = vmatprep.subr.mxu0 0.0
        %2340 = vmatpush1.msra.mxu0 0.0
        %2341 = vmatprep.subr.mxu0 0.0
        %2342 = vmatpush1.msra.mxu0 0.0
        %2343 = vmatprep.subr.mxu0 0.0
        %2344 = vmatpush1.msra.mxu0 0.0
        %2345 = vmatprep.subr.mxu0 0.0
        %2346 = vmatpush1.msra.mxu0 0.0
        %2347 = vmatprep.subr.mxu0 0.0
        %2348 = vmatpush1.msra.mxu0 0.0
        %2349 = vmatprep.subr.mxu0 0.0
        %2350 = vmatpush1.msra.mxu0 0.0
        %2351 = vmatprep.subr.mxu0 0.0
        %2352 = vmatpush1.msra.mxu0 0.0
        %2353 = vmatprep.subr.mxu0 0.0
        %2354 = vmatpush1.msra.mxu0 0.0
        %2355 = vmatprep.subr.mxu0 0.0
        %2356 = vmatpush1.msra.mxu0 0.0
        %2357 = vmatprep.subr.mxu0 0.0
        %2358 = vmatpush1.msra.mxu0 0.0
        %2359 = vmatprep.subr.mxu0 0.0
        %2360 = vmatpush1.msra.mxu0 0.0
        %2361 = vmatprep.subr.mxu0 0.0
        %v2362 = vand.u32 %v2152, 4294901760
        %v2363 = vsub.f32 %v2152, %v2362
        %2364 = vmatpush1.msra.mxu0 %v2363
        %2365 = vmatprep.subr.mxu0 0.0
        %v2366 = vand.u32 %v2151, 4294901760
        %v2367 = vsub.f32 %v2151, %v2366
        %2368 = vmatpush1.msra.mxu0 %v2367
        %2369 = vmatprep.subr.mxu0 0.0
        %2370 = vmatpush2.msra.mxu0 0.0
        %2371 = vmatprep.subr.mxu0 0.0
        %2372 = vmatpush2.msra.mxu0 0.0
        %2373 = vmatprep.subr.mxu0 0.0
        %2374 = vmatpush2.msra.mxu0 0.0
        %2375 = vmatprep.subr.mxu0 0.0
        %2376 = vmatpush2.msra.mxu0 0.0
        %2377 = vmatprep.subr.mxu0 0.0
        %2378 = vmatpush2.msra.mxu0 0.0
        %2379 = vmatprep.subr.mxu0 0.0
        %2380 = vmatpush2.msra.mxu0 0.0
        %2381 = vmatprep.subr.mxu0 0.0
        %2382 = vmatpush2.msra.mxu0 0.0
        %2383 = vmatprep.subr.mxu0 0.0
        %2384 = vmatpush2.msra.mxu0 0.0
        %2385 = vmatprep.subr.mxu0 0.0
        %2386 = vmatpush2.msra.mxu0 0.0
        %2387 = vmatprep.subr.mxu0 0.0
        %2388 = vmatpush2.msra.mxu0 0.0
        %2389 = vmatprep.subr.mxu0 0.0
        %2390 = vmatpush2.msra.mxu0 0.0
        %2391 = vmatprep.subr.mxu0 0.0
        %2392 = vmatpush2.msra.mxu0 0.0
        %2393 = vmatprep.subr.mxu0 0.0
        %2394 = vmatpush2.msra.mxu0 0.0
        %2395 = vmatprep.subr.mxu0 0.0
        %2396 = vmatpush2.msra.mxu0 0.0
        %2397 = vmatprep.subr.mxu0 0.0
        %2398 = vmatpush2.msra.mxu0 0.0
        %2399 = vmatprep.subr.mxu0 0.0
        %2400 = vmatpush2.msra.mxu0 0.0
        %2401 = vmatprep.mubr.f32.mxu0 0.0
        %v2402 = vand.u32 %v2154, 4294901760
        %v2403 = vsub.f32 %v2154, %v2402
        %2404 = vmatmul.mubr.f32.gmra.mxu0 %v2403
        %v2405 = vpop.f32.mrf.mxu0
        %v2406 = vadd.f32 %v2324, %v2405
        %v2407 = vpop.f32.mrf.mxu0
        %2408 = vmatprep.mubr.f32.mxu0 0.0
        %v2409 = vand.u32 %v2157, 4294901760
        %v2410 = vsub.f32 %v2157, %v2409
        %2411 = vmatmul.mubr.f32.gmra.mxu0 %v2410
        %v2412 = vpop.f32.mrf.mxu0
        %v2413 = vadd.f32 %v2330, %v2412
        %v2414 = vpop.f32.mrf.mxu0
        %2415 = vdwg.mxu0
        %2416 = vmatprep.subr.mxu0 0.0
        %2417 = vmatpush1.msra.mxu0 0.0
        %2418 = vmatprep.subr.mxu0 0.0
        %2419 = vmatpush1.msra.mxu0 0.0
        %2420 = vmatprep.subr.mxu0 0.0
        %2421 = vmatpush1.msra.mxu0 0.0
        %2422 = vmatprep.subr.mxu0 0.0
        %2423 = vmatpush1.msra.mxu0 0.0
        %2424 = vmatprep.subr.mxu0 0.0
        %2425 = vmatpush1.msra.mxu0 0.0
        %2426 = vmatprep.subr.mxu0 0.0
        %2427 = vmatpush1.msra.mxu0 0.0
        %2428 = vmatprep.subr.mxu0 0.0
        %2429 = vmatpush1.msra.mxu0 0.0
        %2430 = vmatprep.subr.mxu0 0.0
        %2431 = vmatpush1.msra.mxu0 0.0
        %2432 = vmatprep.subr.mxu0 0.0
        %2433 = vmatpush1.msra.mxu0 0.0
        %2434 = vmatprep.subr.mxu0 0.0
        %2435 = vmatpush1.msra.mxu0 0.0
        %2436 = vmatprep.subr.mxu0 0.0
        %2437 = vmatpush1.msra.mxu0 0.0
        %2438 = vmatprep.subr.mxu0 0.0
        %2439 = vmatpush1.msra.mxu0 0.0
        %2440 = vmatprep.subr.mxu0 0.0
        %2441 = vmatpush1.msra.mxu0 0.0
        %2442 = vmatprep.subr.mxu0 0.0
        %2443 = vmatpush1.msra.mxu0 0.0
        %2444 = vmatprep.subr.mxu0 0.0
        %v2445 = vand.u32 %v2152, 4294901760
        %2446 = vmatpush1.msra.mxu0 %v2445
        %2447 = vmatprep.subr.mxu0 0.0
        %v2448 = vand.u32 %v2151, 4294901760
        %2449 = vmatpush1.msra.mxu0 %v2448
        %2450 = vmatprep.subr.mxu0 0.0
        %2451 = vmatpush2.msra.mxu0 0.0
        %2452 = vmatprep.subr.mxu0 0.0
        %2453 = vmatpush2.msra.mxu0 0.0
        %2454 = vmatprep.subr.mxu0 0.0
        %2455 = vmatpush2.msra.mxu0 0.0
        %2456 = vmatprep.subr.mxu0 0.0
        %2457 = vmatpush2.msra.mxu0 0.0
        %2458 = vmatprep.subr.mxu0 0.0
        %2459 = vmatpush2.msra.mxu0 0.0
        %2460 = vmatprep.subr.mxu0 0.0
        %2461 = vmatpush2.msra.mxu0 0.0
        %2462 = vmatprep.subr.mxu0 0.0
        %2463 = vmatpush2.msra.mxu0 0.0
        %2464 = vmatprep.subr.mxu0 0.0
        %2465 = vmatpush2.msra.mxu0 0.0
        %2466 = vmatprep.subr.mxu0 0.0
        %2467 = vmatpush2.msra.mxu0 0.0
        %2468 = vmatprep.subr.mxu0 0.0
        %2469 = vmatpush2.msra.mxu0 0.0
        %2470 = vmatprep.subr.mxu0 0.0
        %2471 = vmatpush2.msra.mxu0 0.0
        %2472 = vmatprep.subr.mxu0 0.0
        %2473 = vmatpush2.msra.mxu0 0.0
        %2474 = vmatprep.subr.mxu0 0.0
        %2475 = vmatpush2.msra.mxu0 0.0
        %2476 = vmatprep.subr.mxu0 0.0
        %2477 = vmatpush2.msra.mxu0 0.0
        %2478 = vmatprep.subr.mxu0 0.0
        %2479 = vmatpush2.msra.mxu0 0.0
        %2480 = vmatprep.subr.mxu0 0.0
        %2481 = vmatpush2.msra.mxu0 0.0
        %2482 = vmatprep.mubr.f32.mxu0 0.0
        %v2483 = vand.u32 %v2154, 4294901760
        %v2484 = vsub.f32 %v2154, %v2483
        %v2485 = vand.u32 %v2484, 4294901760
        %2486 = vmatmul.mubr.f32.gmra.mxu0 %v2485
        %v2487 = vpop.f32.mrf.mxu0
        %v2488 = vadd.f32 %v2406, %v2487
        %v2489 = vpop.f32.mrf.mxu0
        %2490 = vmatprep.mubr.f32.mxu0 0.0
        %v2491 = vand.u32 %v2157, 4294901760
        %v2492 = vsub.f32 %v2157, %v2491
        %v2493 = vand.u32 %v2492, 4294901760
        %2494 = vmatmul.mubr.f32.gmra.mxu0 %v2493
        %v2495 = vpop.f32.mrf.mxu0
        %v2496 = vadd.f32 %v2413, %v2495
        %v2497 = vpop.f32.mrf.mxu0
        %2498 = vdwg.mxu0
        %2499 = vmatprep.subr.mxu0 0.0
        %2500 = vmatpush1.msra.mxu0 0.0
        %2501 = vmatprep.subr.mxu0 0.0
        %2502 = vmatpush1.msra.mxu0 0.0
        %2503 = vmatprep.subr.mxu0 0.0
        %2504 = vmatpush1.msra.mxu0 0.0
        %2505 = vmatprep.subr.mxu0 0.0
        %2506 = vmatpush1.msra.mxu0 0.0
        %2507 = vmatprep.subr.mxu0 0.0
        %2508 = vmatpush1.msra.mxu0 0.0
        %2509 = vmatprep.subr.mxu0 0.0
        %2510 = vmatpush1.msra.mxu0 0.0
        %2511 = vmatprep.subr.mxu0 0.0
        %2512 = vmatpush1.msra.mxu0 0.0
        %2513 = vmatprep.subr.mxu0 0.0
        %2514 = vmatpush1.msra.mxu0 0.0
        %2515 = vmatprep.subr.mxu0 0.0
        %2516 = vmatpush1.msra.mxu0 0.0
        %2517 = vmatprep.subr.mxu0 0.0
        %2518 = vmatpush1.msra.mxu0 0.0
        %2519 = vmatprep.subr.mxu0 0.0
        %2520 = vmatpush1.msra.mxu0 0.0
        %2521 = vmatprep.subr.mxu0 0.0
        %2522 = vmatpush1.msra.mxu0 0.0
        %2523 = vmatprep.subr.mxu0 0.0
        %2524 = vmatpush1.msra.mxu0 0.0
        %2525 = vmatprep.subr.mxu0 0.0
        %2526 = vmatpush1.msra.mxu0 0.0
        %2527 = vmatprep.subr.mxu0 0.0
        %v2528 = vand.u32 %v2152, 4294901760
        %v2529 = vsub.f32 %v2152, %v2528
        %v2530 = vand.u32 %v2529, 4294901760
        %2531 = vmatpush1.msra.mxu0 %v2530
        %2532 = vmatprep.subr.mxu0 0.0
        %v2533 = vand.u32 %v2151, 4294901760
        %v2534 = vsub.f32 %v2151, %v2533
        %v2535 = vand.u32 %v2534, 4294901760
        %2536 = vmatpush1.msra.mxu0 %v2535
        %2537 = vmatprep.subr.mxu0 0.0
        %2538 = vmatpush2.msra.mxu0 0.0
        %2539 = vmatprep.subr.mxu0 0.0
        %2540 = vmatpush2.msra.mxu0 0.0
        %2541 = vmatprep.subr.mxu0 0.0
        %2542 = vmatpush2.msra.mxu0 0.0
        %2543 = vmatprep.subr.mxu0 0.0
        %2544 = vmatpush2.msra.mxu0 0.0
        %2545 = vmatprep.subr.mxu0 0.0
        %2546 = vmatpush2.msra.mxu0 0.0
        %2547 = vmatprep.subr.mxu0 0.0
        %2548 = vmatpush2.msra.mxu0 0.0
        %2549 = vmatprep.subr.mxu0 0.0
        %2550 = vmatpush2.msra.mxu0 0.0
        %2551 = vmatprep.subr.mxu0 0.0
        %2552 = vmatpush2.msra.mxu0 0.0
        %2553 = vmatprep.subr.mxu0 0.0
        %2554 = vmatpush2.msra.mxu0 0.0
        %2555 = vmatprep.subr.mxu0 0.0
        %2556 = vmatpush2.msra.mxu0 0.0
        %2557 = vmatprep.subr.mxu0 0.0
        %2558 = vmatpush2.msra.mxu0 0.0
        %2559 = vmatprep.subr.mxu0 0.0
        %2560 = vmatpush2.msra.mxu0 0.0
        %2561 = vmatprep.subr.mxu0 0.0
        %2562 = vmatpush2.msra.mxu0 0.0
        %2563 = vmatprep.subr.mxu0 0.0
        %2564 = vmatpush2.msra.mxu0 0.0
        %2565 = vmatprep.subr.mxu0 0.0
        %2566 = vmatpush2.msra.mxu0 0.0
        %2567 = vmatprep.subr.mxu0 0.0
        %2568 = vmatpush2.msra.mxu0 0.0
        %2569 = vmatprep.mubr.f32.mxu0 0.0
        %v2570 = vand.u32 %v2154, 4294901760
        %2571 = vmatmul.mubr.f32.gmra.mxu0 %v2570
        %v2572 = vpop.f32.mrf.mxu0
        %v2573 = vadd.f32 %v2488, %v2572
        %v2574 = vpop.f32.mrf.mxu0
        %2575 = vmatprep.mubr.f32.mxu0 0.0
        %v2576 = vand.u32 %v2157, 4294901760
        %2577 = vmatmul.mubr.f32.gmra.mxu0 %v2576
        %v2578 = vpop.f32.mrf.mxu0
        %v2579 = vadd.f32 %v2496, %v2578
        %v2580 = vpop.f32.mrf.mxu0
        %2581 = vdwg.mxu0
        %2582 = vmatprep.subr.mxu0 0.0
        %2583 = vmatpush1.msra.mxu0 0.0
        %2584 = vmatprep.subr.mxu0 0.0
        %2585 = vmatpush1.msra.mxu0 0.0
        %2586 = vmatprep.subr.mxu0 0.0
        %2587 = vmatpush1.msra.mxu0 0.0
        %2588 = vmatprep.subr.mxu0 0.0
        %2589 = vmatpush1.msra.mxu0 0.0
        %2590 = vmatprep.subr.mxu0 0.0
        %2591 = vmatpush1.msra.mxu0 0.0
        %2592 = vmatprep.subr.mxu0 0.0
        %2593 = vmatpush1.msra.mxu0 0.0
        %2594 = vmatprep.subr.mxu0 0.0
        %2595 = vmatpush1.msra.mxu0 0.0
        %2596 = vmatprep.subr.mxu0 0.0
        %2597 = vmatpush1.msra.mxu0 0.0
        %2598 = vmatprep.subr.mxu0 0.0
        %2599 = vmatpush1.msra.mxu0 0.0
        %2600 = vmatprep.subr.mxu0 0.0
        %2601 = vmatpush1.msra.mxu0 0.0
        %2602 = vmatprep.subr.mxu0 0.0
        %2603 = vmatpush1.msra.mxu0 0.0
        %2604 = vmatprep.subr.mxu0 0.0
        %2605 = vmatpush1.msra.mxu0 0.0
        %2606 = vmatprep.subr.mxu0 0.0
        %2607 = vmatpush1.msra.mxu0 0.0
        %2608 = vmatprep.subr.mxu0 0.0
        %2609 = vmatpush1.msra.mxu0 0.0
        %2610 = vmatprep.subr.mxu0 0.0
        %v2611 = vand.u32 %v2152, 4294901760
        %2612 = vmatpush1.msra.mxu0 %v2611
        %2613 = vmatprep.subr.mxu0 0.0
        %v2614 = vand.u32 %v2151, 4294901760
        %2615 = vmatpush1.msra.mxu0 %v2614
        %2616 = vmatprep.subr.mxu0 0.0
        %2617 = vmatpush2.msra.mxu0 0.0
        %2618 = vmatprep.subr.mxu0 0.0
        %2619 = vmatpush2.msra.mxu0 0.0
        %2620 = vmatprep.subr.mxu0 0.0
        %2621 = vmatpush2.msra.mxu0 0.0
        %2622 = vmatprep.subr.mxu0 0.0
        %2623 = vmatpush2.msra.mxu0 0.0
        %2624 = vmatprep.subr.mxu0 0.0
        %2625 = vmatpush2.msra.mxu0 0.0
        %2626 = vmatprep.subr.mxu0 0.0
        %2627 = vmatpush2.msra.mxu0 0.0
        %2628 = vmatprep.subr.mxu0 0.0
        %2629 = vmatpush2.msra.mxu0 0.0
        %2630 = vmatprep.subr.mxu0 0.0
        %2631 = vmatpush2.msra.mxu0 0.0
        %2632 = vmatprep.subr.mxu0 0.0
        %2633 = vmatpush2.msra.mxu0 0.0
        %2634 = vmatprep.subr.mxu0 0.0
        %2635 = vmatpush2.msra.mxu0 0.0
        %2636 = vmatprep.subr.mxu0 0.0
        %2637 = vmatpush2.msra.mxu0 0.0
        %2638 = vmatprep.subr.mxu0 0.0
        %2639 = vmatpush2.msra.mxu0 0.0
        %2640 = vmatprep.subr.mxu0 0.0
        %2641 = vmatpush2.msra.mxu0 0.0
        %2642 = vmatprep.subr.mxu0 0.0
        %2643 = vmatpush2.msra.mxu0 0.0
        %2644 = vmatprep.subr.mxu0 0.0
        %2645 = vmatpush2.msra.mxu0 0.0
        %2646 = vmatprep.subr.mxu0 0.0
        %2647 = vmatpush2.msra.mxu0 0.0
        %2648 = vmatprep.mubr.f32.mxu0 0.0
        %v2649 = vand.u32 %v2154, 4294901760
        %2650 = vmatmul.mubr.f32.gmra.mxu0 %v2649
        %v2651 = vpop.f32.mrf.mxu0
        %v2652 = vadd.f32 %v2573, %v2651
        %v2653 = vpop.f32.mrf.mxu0
        %2654 = vmatprep.mubr.f32.mxu0 0.0
        %v2655 = vand.u32 %v2157, 4294901760
        %2656 = vmatmul.mubr.f32.gmra.mxu0 %v2655
        %v2657 = vpop.f32.mrf.mxu0
        %v2658 = vadd.f32 %v2579, %v2657
        %v2659 = vpop.f32.mrf.mxu0
        %2660 = vdwg.mxu0
        %v2661 = vld [vmem:[%s1] sm:$0xff]
        %v2663 = vsel %vm196, %v2661, 0
        %2665 = vmatprep.subr.mxu0 0.0
        %2666 = vmatpush1.msra.mxu0 0.0
        %2667 = vmatprep.subr.mxu0 0.0
        %2668 = vmatpush1.msra.mxu0 0.0
        %2669 = vmatprep.subr.mxu0 0.0
        %2670 = vmatpush1.msra.mxu0 0.0
        %2671 = vmatprep.subr.mxu0 0.0
        %2672 = vmatpush1.msra.mxu0 0.0
        %2673 = vmatprep.subr.mxu0 0.0
        %2674 = vmatpush1.msra.mxu0 0.0
        %2675 = vmatprep.subr.mxu0 0.0
        %2676 = vmatpush1.msra.mxu0 0.0
        %2677 = vmatprep.subr.mxu0 0.0
        %2678 = vmatpush1.msra.mxu0 0.0
        %2679 = vmatprep.subr.mxu0 0.0
        %2680 = vmatpush1.msra.mxu0 0.0
        %2681 = vmatprep.subr.mxu0 0.0
        %2682 = vmatpush1.msra.mxu0 0.0
        %2683 = vmatprep.subr.mxu0 0.0
        %2684 = vmatpush1.msra.mxu0 0.0
        %2685 = vmatprep.subr.mxu0 0.0
        %2686 = vmatpush1.msra.mxu0 0.0
        %2687 = vmatprep.subr.mxu0 0.0
        %2688 = vmatpush1.msra.mxu0 0.0
        %2689 = vmatprep.subr.mxu0 0.0
        %2690 = vmatpush1.msra.mxu0 0.0
        %2691 = vmatprep.subr.mxu0 0.0
        %2692 = vmatpush1.msra.mxu0 0.0
        %2693 = vmatprep.subr.mxu0 0.0
        %v2694 = vand.u32 %v2658, 4294901760
        %2695 = vmatpush1.msra.mxu0 %v2694
        %2696 = vmatprep.subr.mxu0 0.0
        %v2697 = vand.u32 %v2652, 4294901760
        %2698 = vmatpush1.msra.mxu0 %v2697
        %2699 = vmatprep.subr.mxu0 0.0
        %2700 = vmatpush2.msra.mxu0 0.0
        %2701 = vmatprep.subr.mxu0 0.0
        %2702 = vmatpush2.msra.mxu0 0.0
        %2703 = vmatprep.subr.mxu0 0.0
        %2704 = vmatpush2.msra.mxu0 0.0
        %2705 = vmatprep.subr.mxu0 0.0
        %2706 = vmatpush2.msra.mxu0 0.0
        %2707 = vmatprep.subr.mxu0 0.0
        %2708 = vmatpush2.msra.mxu0 0.0
        %2709 = vmatprep.subr.mxu0 0.0
        %2710 = vmatpush2.msra.mxu0 0.0
        %2711 = vmatprep.subr.mxu0 0.0
        %2712 = vmatpush2.msra.mxu0 0.0
        %2713 = vmatprep.subr.mxu0 0.0
        %2714 = vmatpush2.msra.mxu0 0.0
        %2715 = vmatprep.subr.mxu0 0.0
        %2716 = vmatpush2.msra.mxu0 0.0
        %2717 = vmatprep.subr.mxu0 0.0
        %2718 = vmatpush2.msra.mxu0 0.0
        %2719 = vmatprep.subr.mxu0 0.0
        %2720 = vmatpush2.msra.mxu0 0.0
        %2721 = vmatprep.subr.mxu0 0.0
        %2722 = vmatpush2.msra.mxu0 0.0
        %2723 = vmatprep.subr.mxu0 0.0
        %2724 = vmatpush2.msra.mxu0 0.0
        %2725 = vmatprep.subr.mxu0 0.0
        %2726 = vmatpush2.msra.mxu0 0.0
        %2727 = vmatprep.subr.mxu0 0.0
        %2728 = vmatpush2.msra.mxu0 0.0
        %2729 = vmatprep.subr.mxu0 0.0
        %2730 = vmatpush2.msra.mxu0 0.0
        %2731 = vmatprep.mubr.f32.mxu0 0.0
        %v2732 = vand.u32 %v2663, 4294901760
        %v2733 = vsub.f32 %v2663, %v2732
        %v2734 = vand.u32 %v2733, 4294901760
        %v2735 = vsub.f32 %v2733, %v2734
        %v2736 = vand.u32 %v2735, 4294901760
        %2737 = vmatmul.mubr.f32.gmra.mxu0 %v2736
        %v2738 = vpop.f32.mrf.mxu0
        %v2739 = vadd.f32 0.0, %v2738
        %v2740 = vpop.f32.mrf.mxu0
        %2741 = vdwg.mxu0
        %2742 = vmatprep.subr.mxu0 0.0
        %2743 = vmatpush1.msra.mxu0 0.0
        %2744 = vmatprep.subr.mxu0 0.0
        %2745 = vmatpush1.msra.mxu0 0.0
        %2746 = vmatprep.subr.mxu0 0.0
        %2747 = vmatpush1.msra.mxu0 0.0
        %2748 = vmatprep.subr.mxu0 0.0
        %2749 = vmatpush1.msra.mxu0 0.0
        %2750 = vmatprep.subr.mxu0 0.0
        %2751 = vmatpush1.msra.mxu0 0.0
        %2752 = vmatprep.subr.mxu0 0.0
        %2753 = vmatpush1.msra.mxu0 0.0
        %2754 = vmatprep.subr.mxu0 0.0
        %2755 = vmatpush1.msra.mxu0 0.0
        %2756 = vmatprep.subr.mxu0 0.0
        %2757 = vmatpush1.msra.mxu0 0.0
        %2758 = vmatprep.subr.mxu0 0.0
        %2759 = vmatpush1.msra.mxu0 0.0
        %2760 = vmatprep.subr.mxu0 0.0
        %2761 = vmatpush1.msra.mxu0 0.0
        %2762 = vmatprep.subr.mxu0 0.0
        %2763 = vmatpush1.msra.mxu0 0.0
        %2764 = vmatprep.subr.mxu0 0.0
        %2765 = vmatpush1.msra.mxu0 0.0
        %2766 = vmatprep.subr.mxu0 0.0
        %2767 = vmatpush1.msra.mxu0 0.0
        %2768 = vmatprep.subr.mxu0 0.0
        %2769 = vmatpush1.msra.mxu0 0.0
        %2770 = vmatprep.subr.mxu0 0.0
        %v2771 = vand.u32 %v2658, 4294901760
        %v2772 = vsub.f32 %v2658, %v2771
        %v2773 = vand.u32 %v2772, 4294901760
        %v2774 = vsub.f32 %v2772, %v2773
        %v2775 = vand.u32 %v2774, 4294901760
        %2776 = vmatpush1.msra.mxu0 %v2775
        %2777 = vmatprep.subr.mxu0 0.0
        %v2778 = vand.u32 %v2652, 4294901760
        %v2779 = vsub.f32 %v2652, %v2778
        %v2780 = vand.u32 %v2779, 4294901760
        %v2781 = vsub.f32 %v2779, %v2780
        %v2782 = vand.u32 %v2781, 4294901760
        %2783 = vmatpush1.msra.mxu0 %v2782
        %2784 = vmatprep.subr.mxu0 0.0
        %2785 = vmatpush2.msra.mxu0 0.0
        %2786 = vmatprep.subr.mxu0 0.0
        %2787 = vmatpush2.msra.mxu0 0.0
        %2788 = vmatprep.subr.mxu0 0.0
        %2789 = vmatpush2.msra.mxu0 0.0
        %2790 = vmatprep.subr.mxu0 0.0
        %2791 = vmatpush2.msra.mxu0 0.0
        %2792 = vmatprep.subr.mxu0 0.0
        %2793 = vmatpush2.msra.mxu0 0.0
        %2794 = vmatprep.subr.mxu0 0.0
        %2795 = vmatpush2.msra.mxu0 0.0
        %2796 = vmatprep.subr.mxu0 0.0
        %2797 = vmatpush2.msra.mxu0 0.0
        %2798 = vmatprep.subr.mxu0 0.0
        %2799 = vmatpush2.msra.mxu0 0.0
        %2800 = vmatprep.subr.mxu0 0.0
        %2801 = vmatpush2.msra.mxu0 0.0
        %2802 = vmatprep.subr.mxu0 0.0
        %2803 = vmatpush2.msra.mxu0 0.0
        %2804 = vmatprep.subr.mxu0 0.0
        %2805 = vmatpush2.msra.mxu0 0.0
        %2806 = vmatprep.subr.mxu0 0.0
        %2807 = vmatpush2.msra.mxu0 0.0
        %2808 = vmatprep.subr.mxu0 0.0
        %2809 = vmatpush2.msra.mxu0 0.0
        %2810 = vmatprep.subr.mxu0 0.0
        %2811 = vmatpush2.msra.mxu0 0.0
        %2812 = vmatprep.subr.mxu0 0.0
        %2813 = vmatpush2.msra.mxu0 0.0
        %2814 = vmatprep.subr.mxu0 0.0
        %2815 = vmatpush2.msra.mxu0 0.0
        %2816 = vmatprep.mubr.f32.mxu0 0.0
        %v2817 = vand.u32 %v2663, 4294901760
        %2818 = vmatmul.mubr.f32.gmra.mxu0 %v2817
        %v2819 = vpop.f32.mrf.mxu0
        %v2820 = vadd.f32 %v2739, %v2819
        %v2821 = vpop.f32.mrf.mxu0
        %2822 = vdwg.mxu0
        %2823 = vmatprep.subr.mxu0 0.0
        %2824 = vmatpush1.msra.mxu0 0.0
        %2825 = vmatprep.subr.mxu0 0.0
        %2826 = vmatpush1.msra.mxu0 0.0
        %2827 = vmatprep.subr.mxu0 0.0
        %2828 = vmatpush1.msra.mxu0 0.0
        %2829 = vmatprep.subr.mxu0 0.0
        %2830 = vmatpush1.msra.mxu0 0.0
        %2831 = vmatprep.subr.mxu0 0.0
        %2832 = vmatpush1.msra.mxu0 0.0
        %2833 = vmatprep.subr.mxu0 0.0
        %2834 = vmatpush1.msra.mxu0 0.0
        %2835 = vmatprep.subr.mxu0 0.0
        %2836 = vmatpush1.msra.mxu0 0.0
        %2837 = vmatprep.subr.mxu0 0.0
        %2838 = vmatpush1.msra.mxu0 0.0
        %2839 = vmatprep.subr.mxu0 0.0
        %2840 = vmatpush1.msra.mxu0 0.0
        %2841 = vmatprep.subr.mxu0 0.0
        %2842 = vmatpush1.msra.mxu0 0.0
        %2843 = vmatprep.subr.mxu0 0.0
        %2844 = vmatpush1.msra.mxu0 0.0
        %2845 = vmatprep.subr.mxu0 0.0
        %2846 = vmatpush1.msra.mxu0 0.0
        %2847 = vmatprep.subr.mxu0 0.0
        %2848 = vmatpush1.msra.mxu0 0.0
        %2849 = vmatprep.subr.mxu0 0.0
        %2850 = vmatpush1.msra.mxu0 0.0
        %2851 = vmatprep.subr.mxu0 0.0
        %v2852 = vand.u32 %v2658, 4294901760
        %v2853 = vsub.f32 %v2658, %v2852
        %2854 = vmatpush1.msra.mxu0 %v2853
        %2855 = vmatprep.subr.mxu0 0.0
        %v2856 = vand.u32 %v2652, 4294901760
        %v2857 = vsub.f32 %v2652, %v2856
        %2858 = vmatpush1.msra.mxu0 %v2857
        %2859 = vmatprep.subr.mxu0 0.0
        %2860 = vmatpush2.msra.mxu0 0.0
        %2861 = vmatprep.subr.mxu0 0.0
        %2862 = vmatpush2.msra.mxu0 0.0
        %2863 = vmatprep.subr.mxu0 0.0
        %2864 = vmatpush2.msra.mxu0 0.0
        %2865 = vmatprep.subr.mxu0 0.0
        %2866 = vmatpush2.msra.mxu0 0.0
        %2867 = vmatprep.subr.mxu0 0.0
        %2868 = vmatpush2.msra.mxu0 0.0
        %2869 = vmatprep.subr.mxu0 0.0
        %2870 = vmatpush2.msra.mxu0 0.0
        %2871 = vmatprep.subr.mxu0 0.0
        %2872 = vmatpush2.msra.mxu0 0.0
        %2873 = vmatprep.subr.mxu0 0.0
        %2874 = vmatpush2.msra.mxu0 0.0
        %2875 = vmatprep.subr.mxu0 0.0
        %2876 = vmatpush2.msra.mxu0 0.0
        %2877 = vmatprep.subr.mxu0 0.0
        %2878 = vmatpush2.msra.mxu0 0.0
        %2879 = vmatprep.subr.mxu0 0.0
        %2880 = vmatpush2.msra.mxu0 0.0
        %2881 = vmatprep.subr.mxu0 0.0
        %2882 = vmatpush2.msra.mxu0 0.0
        %2883 = vmatprep.subr.mxu0 0.0
        %2884 = vmatpush2.msra.mxu0 0.0
        %2885 = vmatprep.subr.mxu0 0.0
        %2886 = vmatpush2.msra.mxu0 0.0
        %2887 = vmatprep.subr.mxu0 0.0
        %2888 = vmatpush2.msra.mxu0 0.0
        %2889 = vmatprep.subr.mxu0 0.0
        %2890 = vmatpush2.msra.mxu0 0.0
        %2891 = vmatprep.mubr.f32.mxu0 0.0
        %v2892 = vand.u32 %v2663, 4294901760
        %v2893 = vsub.f32 %v2663, %v2892
        %2894 = vmatmul.mubr.f32.gmra.mxu0 %v2893
        %v2895 = vpop.f32.mrf.mxu0
        %v2896 = vadd.f32 %v2820, %v2895
        %v2897 = vpop.f32.mrf.mxu0
        %2898 = vdwg.mxu0
        %2899 = vmatprep.subr.mxu0 0.0
        %2900 = vmatpush1.msra.mxu0 0.0
        %2901 = vmatprep.subr.mxu0 0.0
        %2902 = vmatpush1.msra.mxu0 0.0
        %2903 = vmatprep.subr.mxu0 0.0
        %2904 = vmatpush1.msra.mxu0 0.0
        %2905 = vmatprep.subr.mxu0 0.0
        %2906 = vmatpush1.msra.mxu0 0.0
        %2907 = vmatprep.subr.mxu0 0.0
        %2908 = vmatpush1.msra.mxu0 0.0
        %2909 = vmatprep.subr.mxu0 0.0
        %2910 = vmatpush1.msra.mxu0 0.0
        %2911 = vmatprep.subr.mxu0 0.0
        %2912 = vmatpush1.msra.mxu0 0.0
        %2913 = vmatprep.subr.mxu0 0.0
        %2914 = vmatpush1.msra.mxu0 0.0
        %2915 = vmatprep.subr.mxu0 0.0
        %2916 = vmatpush1.msra.mxu0 0.0
        %2917 = vmatprep.subr.mxu0 0.0
        %2918 = vmatpush1.msra.mxu0 0.0
        %2919 = vmatprep.subr.mxu0 0.0
        %2920 = vmatpush1.msra.mxu0 0.0
        %2921 = vmatprep.subr.mxu0 0.0
        %2922 = vmatpush1.msra.mxu0 0.0
        %2923 = vmatprep.subr.mxu0 0.0
        %2924 = vmatpush1.msra.mxu0 0.0
        %2925 = vmatprep.subr.mxu0 0.0
        %2926 = vmatpush1.msra.mxu0 0.0
        %2927 = vmatprep.subr.mxu0 0.0
        %v2928 = vand.u32 %v2658, 4294901760
        %2929 = vmatpush1.msra.mxu0 %v2928
        %2930 = vmatprep.subr.mxu0 0.0
        %v2931 = vand.u32 %v2652, 4294901760
        %2932 = vmatpush1.msra.mxu0 %v2931
        %2933 = vmatprep.subr.mxu0 0.0
        %2934 = vmatpush2.msra.mxu0 0.0
        %2935 = vmatprep.subr.mxu0 0.0
        %2936 = vmatpush2.msra.mxu0 0.0
        %2937 = vmatprep.subr.mxu0 0.0
        %2938 = vmatpush2.msra.mxu0 0.0
        %2939 = vmatprep.subr.mxu0 0.0
        %2940 = vmatpush2.msra.mxu0 0.0
        %2941 = vmatprep.subr.mxu0 0.0
        %2942 = vmatpush2.msra.mxu0 0.0
        %2943 = vmatprep.subr.mxu0 0.0
        %2944 = vmatpush2.msra.mxu0 0.0
        %2945 = vmatprep.subr.mxu0 0.0
        %2946 = vmatpush2.msra.mxu0 0.0
        %2947 = vmatprep.subr.mxu0 0.0
        %2948 = vmatpush2.msra.mxu0 0.0
        %2949 = vmatprep.subr.mxu0 0.0
        %2950 = vmatpush2.msra.mxu0 0.0
        %2951 = vmatprep.subr.mxu0 0.0
        %2952 = vmatpush2.msra.mxu0 0.0
        %2953 = vmatprep.subr.mxu0 0.0
        %2954 = vmatpush2.msra.mxu0 0.0
        %2955 = vmatprep.subr.mxu0 0.0
        %2956 = vmatpush2.msra.mxu0 0.0
        %2957 = vmatprep.subr.mxu0 0.0
        %2958 = vmatpush2.msra.mxu0 0.0
        %2959 = vmatprep.subr.mxu0 0.0
        %2960 = vmatpush2.msra.mxu0 0.0
        %2961 = vmatprep.subr.mxu0 0.0
        %2962 = vmatpush2.msra.mxu0 0.0
        %2963 = vmatprep.subr.mxu0 0.0
        %2964 = vmatpush2.msra.mxu0 0.0
        %2965 = vmatprep.mubr.f32.mxu0 0.0
        %v2966 = vand.u32 %v2663, 4294901760
        %v2967 = vsub.f32 %v2663, %v2966
        %v2968 = vand.u32 %v2967, 4294901760
        %2969 = vmatmul.mubr.f32.gmra.mxu0 %v2968
        %v2970 = vpop.f32.mrf.mxu0
        %v2971 = vadd.f32 %v2896, %v2970
        %v2972 = vpop.f32.mrf.mxu0
        %2973 = vdwg.mxu0
        %2974 = vmatprep.subr.mxu0 0.0
        %2975 = vmatpush1.msra.mxu0 0.0
        %2976 = vmatprep.subr.mxu0 0.0
        %2977 = vmatpush1.msra.mxu0 0.0
        %2978 = vmatprep.subr.mxu0 0.0
        %2979 = vmatpush1.msra.mxu0 0.0
        %2980 = vmatprep.subr.mxu0 0.0
        %2981 = vmatpush1.msra.mxu0 0.0
        %2982 = vmatprep.subr.mxu0 0.0
        %2983 = vmatpush1.msra.mxu0 0.0
        %2984 = vmatprep.subr.mxu0 0.0
        %2985 = vmatpush1.msra.mxu0 0.0
        %2986 = vmatprep.subr.mxu0 0.0
        %2987 = vmatpush1.msra.mxu0 0.0
        %2988 = vmatprep.subr.mxu0 0.0
        %2989 = vmatpush1.msra.mxu0 0.0
        %2990 = vmatprep.subr.mxu0 0.0
        %2991 = vmatpush1.msra.mxu0 0.0
        %2992 = vmatprep.subr.mxu0 0.0
        %2993 = vmatpush1.msra.mxu0 0.0
        %2994 = vmatprep.subr.mxu0 0.0
        %2995 = vmatpush1.msra.mxu0 0.0
        %2996 = vmatprep.subr.mxu0 0.0
        %2997 = vmatpush1.msra.mxu0 0.0
        %2998 = vmatprep.subr.mxu0 0.0
        %2999 = vmatpush1.msra.mxu0 0.0
        %3000 = vmatprep.subr.mxu0 0.0
        %3001 = vmatpush1.msra.mxu0 0.0
        %3002 = vmatprep.subr.mxu0 0.0
        %v3003 = vand.u32 %v2658, 4294901760
        %v3004 = vsub.f32 %v2658, %v3003
        %v3005 = vand.u32 %v3004, 4294901760
        %3006 = vmatpush1.msra.mxu0 %v3005
        %3007 = vmatprep.subr.mxu0 0.0
        %v3008 = vand.u32 %v2652, 4294901760
        %v3009 = vsub.f32 %v2652, %v3008
        %v3010 = vand.u32 %v3009, 4294901760
        %3011 = vmatpush1.msra.mxu0 %v3010
        %3012 = vmatprep.subr.mxu0 0.0
        %3013 = vmatpush2.msra.mxu0 0.0
        %3014 = vmatprep.subr.mxu0 0.0
        %3015 = vmatpush2.msra.mxu0 0.0
        %3016 = vmatprep.subr.mxu0 0.0
        %3017 = vmatpush2.msra.mxu0 0.0
        %3018 = vmatprep.subr.mxu0 0.0
        %3019 = vmatpush2.msra.mxu0 0.0
        %3020 = vmatprep.subr.mxu0 0.0
        %3021 = vmatpush2.msra.mxu0 0.0
        %3022 = vmatprep.subr.mxu0 0.0
        %3023 = vmatpush2.msra.mxu0 0.0
        %3024 = vmatprep.subr.mxu0 0.0
        %3025 = vmatpush2.msra.mxu0 0.0
        %3026 = vmatprep.subr.mxu0 0.0
        %3027 = vmatpush2.msra.mxu0 0.0
        %3028 = vmatprep.subr.mxu0 0.0
        %3029 = vmatpush2.msra.mxu0 0.0
        %3030 = vmatprep.subr.mxu0 0.0
        %3031 = vmatpush2.msra.mxu0 0.0
        %3032 = vmatprep.subr.mxu0 0.0
        %3033 = vmatpush2.msra.mxu0 0.0
        %3034 = vmatprep.subr.mxu0 0.0
        %3035 = vmatpush2.msra.mxu0 0.0
        %3036 = vmatprep.subr.mxu0 0.0
        %3037 = vmatpush2.msra.mxu0 0.0
        %3038 = vmatprep.subr.mxu0 0.0
        %3039 = vmatpush2.msra.mxu0 0.0
        %3040 = vmatprep.subr.mxu0 0.0
        %3041 = vmatpush2.msra.mxu0 0.0
        %3042 = vmatprep.subr.mxu0 0.0
        %3043 = vmatpush2.msra.mxu0 0.0
        %3044 = vmatprep.mubr.f32.mxu0 0.0
        %v3045 = vand.u32 %v2663, 4294901760
        %3046 = vmatmul.mubr.f32.gmra.mxu0 %v3045
        %v3047 = vpop.f32.mrf.mxu0
        %v3048 = vadd.f32 %v2971, %v3047
        %v3049 = vpop.f32.mrf.mxu0
        %3050 = vdwg.mxu0
        %3051 = vmatprep.subr.mxu0 0.0
        %3052 = vmatpush1.msra.mxu0 0.0
        %3053 = vmatprep.subr.mxu0 0.0
        %3054 = vmatpush1.msra.mxu0 0.0
        %3055 = vmatprep.subr.mxu0 0.0
        %3056 = vmatpush1.msra.mxu0 0.0
        %3057 = vmatprep.subr.mxu0 0.0
        %3058 = vmatpush1.msra.mxu0 0.0
        %3059 = vmatprep.subr.mxu0 0.0
        %3060 = vmatpush1.msra.mxu0 0.0
        %3061 = vmatprep.subr.mxu0 0.0
        %3062 = vmatpush1.msra.mxu0 0.0
        %3063 = vmatprep.subr.mxu0 0.0
        %3064 = vmatpush1.msra.mxu0 0.0
        %3065 = vmatprep.subr.mxu0 0.0
        %3066 = vmatpush1.msra.mxu0 0.0
        %3067 = vmatprep.subr.mxu0 0.0
        %3068 = vmatpush1.msra.mxu0 0.0
        %3069 = vmatprep.subr.mxu0 0.0
        %3070 = vmatpush1.msra.mxu0 0.0
        %3071 = vmatprep.subr.mxu0 0.0
        %3072 = vmatpush1.msra.mxu0 0.0
        %3073 = vmatprep.subr.mxu0 0.0
        %3074 = vmatpush1.msra.mxu0 0.0
        %3075 = vmatprep.subr.mxu0 0.0
        %3076 = vmatpush1.msra.mxu0 0.0
        %3077 = vmatprep.subr.mxu0 0.0
        %3078 = vmatpush1.msra.mxu0 0.0
        %3079 = vmatprep.subr.mxu0 0.0
        %v3080 = vand.u32 %v2658, 4294901760
        %3081 = vmatpush1.msra.mxu0 %v3080
        %3082 = vmatprep.subr.mxu0 0.0
        %v3083 = vand.u32 %v2652, 4294901760
        %3084 = vmatpush1.msra.mxu0 %v3083
        %3085 = vmatprep.subr.mxu0 0.0
        %3086 = vmatpush2.msra.mxu0 0.0
        %3087 = vmatprep.subr.mxu0 0.0
        %3088 = vmatpush2.msra.mxu0 0.0
        %3089 = vmatprep.subr.mxu0 0.0
        %3090 = vmatpush2.msra.mxu0 0.0
        %3091 = vmatprep.subr.mxu0 0.0
        %3092 = vmatpush2.msra.mxu0 0.0
        %3093 = vmatprep.subr.mxu0 0.0
        %3094 = vmatpush2.msra.mxu0 0.0
        %3095 = vmatprep.subr.mxu0 0.0
        %3096 = vmatpush2.msra.mxu0 0.0
        %3097 = vmatprep.subr.mxu0 0.0
        %3098 = vmatpush2.msra.mxu0 0.0
        %3099 = vmatprep.subr.mxu0 0.0
        %3100 = vmatpush2.msra.mxu0 0.0
        %3101 = vmatprep.subr.mxu0 0.0
        %3102 = vmatpush2.msra.mxu0 0.0
        %3103 = vmatprep.subr.mxu0 0.0
        %3104 = vmatpush2.msra.mxu0 0.0
        %3105 = vmatprep.subr.mxu0 0.0
        %3106 = vmatpush2.msra.mxu0 0.0
        %3107 = vmatprep.subr.mxu0 0.0
        %3108 = vmatpush2.msra.mxu0 0.0
        %3109 = vmatprep.subr.mxu0 0.0
        %3110 = vmatpush2.msra.mxu0 0.0
        %3111 = vmatprep.subr.mxu0 0.0
        %3112 = vmatpush2.msra.mxu0 0.0
        %3113 = vmatprep.subr.mxu0 0.0
        %3114 = vmatpush2.msra.mxu0 0.0
        %3115 = vmatprep.subr.mxu0 0.0
        %3116 = vmatpush2.msra.mxu0 0.0
        %3117 = vmatprep.mubr.f32.mxu0 0.0
        %v3118 = vand.u32 %v2663, 4294901760
        %3119 = vmatmul.mubr.f32.gmra.mxu0 %v3118
        %v3120 = vpop.f32.mrf.mxu0
        %v3121 = vadd.f32 %v3048, %v3120
        %v3122 = vpop.f32.mrf.mxu0
        %3123 = vdwg.mxu0
        %s3124 = scalar_lea.vmem %s189, 16 [#allocation5]
        %3125 = vst.msk [vmem:[%s3124] sm:$0xff] %vm1168, %v3121
        %s3126 = scalar_lea.vmem %s167, 48 [#allocation2]
        %v3127 = vld [vmem:[%s3126] sm:$0xff]
        %v3128 = vld [vmem:[%s3126 + $0x8] sm:$0xff]
        %v3129 = vld [vmem:[%s2] sm:$0xff]
        %v3130 = vld [vmem:[%s2 + $0x8] sm:$0xff]
        %v3132 = vsel %vm196, %v3127, 0
        %v3135 = vsel %vm196, %v3128, 0
        %3137 = vmatprep.subr.mxu0 0.0
        %3138 = vmatpush1.msra.mxu0 0.0
        %3139 = vmatprep.subr.mxu0 0.0
        %3140 = vmatpush1.msra.mxu0 0.0
        %3141 = vmatprep.subr.mxu0 0.0
        %3142 = vmatpush1.msra.mxu0 0.0
        %3143 = vmatprep.subr.mxu0 0.0
        %3144 = vmatpush1.msra.mxu0 0.0
        %3145 = vmatprep.subr.mxu0 0.0
        %3146 = vmatpush1.msra.mxu0 0.0
        %3147 = vmatprep.subr.mxu0 0.0
        %3148 = vmatpush1.msra.mxu0 0.0
        %3149 = vmatprep.subr.mxu0 0.0
        %3150 = vmatpush1.msra.mxu0 0.0
        %3151 = vmatprep.subr.mxu0 0.0
        %3152 = vmatpush1.msra.mxu0 0.0
        %3153 = vmatprep.subr.mxu0 0.0
        %3154 = vmatpush1.msra.mxu0 0.0
        %3155 = vmatprep.subr.mxu0 0.0
        %3156 = vmatpush1.msra.mxu0 0.0
        %3157 = vmatprep.subr.mxu0 0.0
        %3158 = vmatpush1.msra.mxu0 0.0
        %3159 = vmatprep.subr.mxu0 0.0
        %3160 = vmatpush1.msra.mxu0 0.0
        %3161 = vmatprep.subr.mxu0 0.0
        %3162 = vmatpush1.msra.mxu0 0.0
        %3163 = vmatprep.subr.mxu0 0.0
        %3164 = vmatpush1.msra.mxu0 0.0
        %3165 = vmatprep.subr.mxu0 0.0
        %v3166 = vand.u32 %v3130, 4294901760
        %3167 = vmatpush1.msra.mxu0 %v3166
        %3168 = vmatprep.subr.mxu0 0.0
        %v3169 = vand.u32 %v3129, 4294901760
        %3170 = vmatpush1.msra.mxu0 %v3169
        %3171 = vmatprep.subr.mxu0 0.0
        %3172 = vmatpush2.msra.mxu0 0.0
        %3173 = vmatprep.subr.mxu0 0.0
        %3174 = vmatpush2.msra.mxu0 0.0
        %3175 = vmatprep.subr.mxu0 0.0
        %3176 = vmatpush2.msra.mxu0 0.0
        %3177 = vmatprep.subr.mxu0 0.0
        %3178 = vmatpush2.msra.mxu0 0.0
        %3179 = vmatprep.subr.mxu0 0.0
        %3180 = vmatpush2.msra.mxu0 0.0
        %3181 = vmatprep.subr.mxu0 0.0
        %3182 = vmatpush2.msra.mxu0 0.0
        %3183 = vmatprep.subr.mxu0 0.0
        %3184 = vmatpush2.msra.mxu0 0.0
        %3185 = vmatprep.subr.mxu0 0.0
        %3186 = vmatpush2.msra.mxu0 0.0
        %3187 = vmatprep.subr.mxu0 0.0
        %3188 = vmatpush2.msra.mxu0 0.0
        %3189 = vmatprep.subr.mxu0 0.0
        %3190 = vmatpush2.msra.mxu0 0.0
        %3191 = vmatprep.subr.mxu0 0.0
        %3192 = vmatpush2.msra.mxu0 0.0
        %3193 = vmatprep.subr.mxu0 0.0
        %3194 = vmatpush2.msra.mxu0 0.0
        %3195 = vmatprep.subr.mxu0 0.0
        %3196 = vmatpush2.msra.mxu0 0.0
        %3197 = vmatprep.subr.mxu0 0.0
        %3198 = vmatpush2.msra.mxu0 0.0
        %3199 = vmatprep.subr.mxu0 0.0
        %3200 = vmatpush2.msra.mxu0 0.0
        %3201 = vmatprep.subr.mxu0 0.0
        %3202 = vmatpush2.msra.mxu0 0.0
        %3203 = vmatprep.mubr.f32.mxu0 0.0
        %v3204 = vand.u32 %v3132, 4294901760
        %v3205 = vsub.f32 %v3132, %v3204
        %v3206 = vand.u32 %v3205, 4294901760
        %v3207 = vsub.f32 %v3205, %v3206
        %v3208 = vand.u32 %v3207, 4294901760
        %3209 = vmatmul.mubr.f32.gmra.mxu0 %v3208
        %v3210 = vpop.f32.mrf.mxu0
        %v3211 = vadd.f32 0.0, %v3210
        %v3212 = vpop.f32.mrf.mxu0
        %3213 = vmatprep.mubr.f32.mxu0 0.0
        %v3214 = vand.u32 %v3135, 4294901760
        %v3215 = vsub.f32 %v3135, %v3214
        %v3216 = vand.u32 %v3215, 4294901760
        %v3217 = vsub.f32 %v3215, %v3216
        %v3218 = vand.u32 %v3217, 4294901760
        %3219 = vmatmul.mubr.f32.gmra.mxu0 %v3218
        %v3220 = vpop.f32.mrf.mxu0
        %v3221 = vadd.f32 0.0, %v3220
        %v3222 = vpop.f32.mrf.mxu0
        %3223 = vdwg.mxu0
        %3224 = vmatprep.subr.mxu0 0.0
        %3225 = vmatpush1.msra.mxu0 0.0
        %3226 = vmatprep.subr.mxu0 0.0
        %3227 = vmatpush1.msra.mxu0 0.0
        %3228 = vmatprep.subr.mxu0 0.0
        %3229 = vmatpush1.msra.mxu0 0.0
        %3230 = vmatprep.subr.mxu0 0.0
        %3231 = vmatpush1.msra.mxu0 0.0
        %3232 = vmatprep.subr.mxu0 0.0
        %3233 = vmatpush1.msra.mxu0 0.0
        %3234 = vmatprep.subr.mxu0 0.0
        %3235 = vmatpush1.msra.mxu0 0.0
        %3236 = vmatprep.subr.mxu0 0.0
        %3237 = vmatpush1.msra.mxu0 0.0
        %3238 = vmatprep.subr.mxu0 0.0
        %3239 = vmatpush1.msra.mxu0 0.0
        %3240 = vmatprep.subr.mxu0 0.0
        %3241 = vmatpush1.msra.mxu0 0.0
        %3242 = vmatprep.subr.mxu0 0.0
        %3243 = vmatpush1.msra.mxu0 0.0
        %3244 = vmatprep.subr.mxu0 0.0
        %3245 = vmatpush1.msra.mxu0 0.0
        %3246 = vmatprep.subr.mxu0 0.0
        %3247 = vmatpush1.msra.mxu0 0.0
        %3248 = vmatprep.subr.mxu0 0.0
        %3249 = vmatpush1.msra.mxu0 0.0
        %3250 = vmatprep.subr.mxu0 0.0
        %3251 = vmatpush1.msra.mxu0 0.0
        %3252 = vmatprep.subr.mxu0 0.0
        %v3253 = vand.u32 %v3130, 4294901760
        %v3254 = vsub.f32 %v3130, %v3253
        %v3255 = vand.u32 %v3254, 4294901760
        %v3256 = vsub.f32 %v3254, %v3255
        %v3257 = vand.u32 %v3256, 4294901760
        %3258 = vmatpush1.msra.mxu0 %v3257
        %3259 = vmatprep.subr.mxu0 0.0
        %v3260 = vand.u32 %v3129, 4294901760
        %v3261 = vsub.f32 %v3129, %v3260
        %v3262 = vand.u32 %v3261, 4294901760
        %v3263 = vsub.f32 %v3261, %v3262
        %v3264 = vand.u32 %v3263, 4294901760
        %3265 = vmatpush1.msra.mxu0 %v3264
        %3266 = vmatprep.subr.mxu0 0.0
        %3267 = vmatpush2.msra.mxu0 0.0
        %3268 = vmatprep.subr.mxu0 0.0
        %3269 = vmatpush2.msra.mxu0 0.0
        %3270 = vmatprep.subr.mxu0 0.0
        %3271 = vmatpush2.msra.mxu0 0.0
        %3272 = vmatprep.subr.mxu0 0.0
        %3273 = vmatpush2.msra.mxu0 0.0
        %3274 = vmatprep.subr.mxu0 0.0
        %3275 = vmatpush2.msra.mxu0 0.0
        %3276 = vmatprep.subr.mxu0 0.0
        %3277 = vmatpush2.msra.mxu0 0.0
        %3278 = vmatprep.subr.mxu0 0.0
        %3279 = vmatpush2.msra.mxu0 0.0
        %3280 = vmatprep.subr.mxu0 0.0
        %3281 = vmatpush2.msra.mxu0 0.0
        %3282 = vmatprep.subr.mxu0 0.0
        %3283 = vmatpush2.msra.mxu0 0.0
        %3284 = vmatprep.subr.mxu0 0.0
        %3285 = vmatpush2.msra.mxu0 0.0
        %3286 = vmatprep.subr.mxu0 0.0
        %3287 = vmatpush2.msra.mxu0 0.0
        %3288 = vmatprep.subr.mxu0 0.0
        %3289 = vmatpush2.msra.mxu0 0.0
        %3290 = vmatprep.subr.mxu0 0.0
        %3291 = vmatpush2.msra.mxu0 0.0
        %3292 = vmatprep.subr.mxu0 0.0
        %3293 = vmatpush2.msra.mxu0 0.0
        %3294 = vmatprep.subr.mxu0 0.0
        %3295 = vmatpush2.msra.mxu0 0.0
        %3296 = vmatprep.subr.mxu0 0.0
        %3297 = vmatpush2.msra.mxu0 0.0
        %3298 = vmatprep.mubr.f32.mxu0 0.0
        %v3299 = vand.u32 %v3132, 4294901760
        %3300 = vmatmul.mubr.f32.gmra.mxu0 %v3299
        %v3301 = vpop.f32.mrf.mxu0
        %v3302 = vadd.f32 %v3211, %v3301
        %v3303 = vpop.f32.mrf.mxu0
        %3304 = vmatprep.mubr.f32.mxu0 0.0
        %v3305 = vand.u32 %v3135, 4294901760
        %3306 = vmatmul.mubr.f32.gmra.mxu0 %v3305
        %v3307 = vpop.f32.mrf.mxu0
        %v3308 = vadd.f32 %v3221, %v3307
        %v3309 = vpop.f32.mrf.mxu0
        %3310 = vdwg.mxu0
        %3311 = vmatprep.subr.mxu0 0.0
        %3312 = vmatpush1.msra.mxu0 0.0
        %3313 = vmatprep.subr.mxu0 0.0
        %3314 = vmatpush1.msra.mxu0 0.0
        %3315 = vmatprep.subr.mxu0 0.0
        %3316 = vmatpush1.msra.mxu0 0.0
        %3317 = vmatprep.subr.mxu0 0.0
        %3318 = vmatpush1.msra.mxu0 0.0
        %3319 = vmatprep.subr.mxu0 0.0
        %3320 = vmatpush1.msra.mxu0 0.0
        %3321 = vmatprep.subr.mxu0 0.0
        %3322 = vmatpush1.msra.mxu0 0.0
        %3323 = vmatprep.subr.mxu0 0.0
        %3324 = vmatpush1.msra.mxu0 0.0
        %3325 = vmatprep.subr.mxu0 0.0
        %3326 = vmatpush1.msra.mxu0 0.0
        %3327 = vmatprep.subr.mxu0 0.0
        %3328 = vmatpush1.msra.mxu0 0.0
        %3329 = vmatprep.subr.mxu0 0.0
        %3330 = vmatpush1.msra.mxu0 0.0
        %3331 = vmatprep.subr.mxu0 0.0
        %3332 = vmatpush1.msra.mxu0 0.0
        %3333 = vmatprep.subr.mxu0 0.0
        %3334 = vmatpush1.msra.mxu0 0.0
        %3335 = vmatprep.subr.mxu0 0.0
        %3336 = vmatpush1.msra.mxu0 0.0
        %3337 = vmatprep.subr.mxu0 0.0
        %3338 = vmatpush1.msra.mxu0 0.0
        %3339 = vmatprep.subr.mxu0 0.0
        %v3340 = vand.u32 %v3130, 4294901760
        %v3341 = vsub.f32 %v3130, %v3340
        %3342 = vmatpush1.msra.mxu0 %v3341
        %3343 = vmatprep.subr.mxu0 0.0
        %v3344 = vand.u32 %v3129, 4294901760
        %v3345 = vsub.f32 %v3129, %v3344
        %3346 = vmatpush1.msra.mxu0 %v3345
        %3347 = vmatprep.subr.mxu0 0.0
        %3348 = vmatpush2.msra.mxu0 0.0
        %3349 = vmatprep.subr.mxu0 0.0
        %3350 = vmatpush2.msra.mxu0 0.0
        %3351 = vmatprep.subr.mxu0 0.0
        %3352 = vmatpush2.msra.mxu0 0.0
        %3353 = vmatprep.subr.mxu0 0.0
        %3354 = vmatpush2.msra.mxu0 0.0
        %3355 = vmatprep.subr.mxu0 0.0
        %3356 = vmatpush2.msra.mxu0 0.0
        %3357 = vmatprep.subr.mxu0 0.0
        %3358 = vmatpush2.msra.mxu0 0.0
        %3359 = vmatprep.subr.mxu0 0.0
        %3360 = vmatpush2.msra.mxu0 0.0
        %3361 = vmatprep.subr.mxu0 0.0
        %3362 = vmatpush2.msra.mxu0 0.0
        %3363 = vmatprep.subr.mxu0 0.0
        %3364 = vmatpush2.msra.mxu0 0.0
        %3365 = vmatprep.subr.mxu0 0.0
        %3366 = vmatpush2.msra.mxu0 0.0
        %3367 = vmatprep.subr.mxu0 0.0
        %3368 = vmatpush2.msra.mxu0 0.0
        %3369 = vmatprep.subr.mxu0 0.0
        %3370 = vmatpush2.msra.mxu0 0.0
        %3371 = vmatprep.subr.mxu0 0.0
        %3372 = vmatpush2.msra.mxu0 0.0
        %3373 = vmatprep.subr.mxu0 0.0
        %3374 = vmatpush2.msra.mxu0 0.0
        %3375 = vmatprep.subr.mxu0 0.0
        %3376 = vmatpush2.msra.mxu0 0.0
        %3377 = vmatprep.subr.mxu0 0.0
        %3378 = vmatpush2.msra.mxu0 0.0
        %3379 = vmatprep.mubr.f32.mxu0 0.0
        %v3380 = vand.u32 %v3132, 4294901760
        %v3381 = vsub.f32 %v3132, %v3380
        %3382 = vmatmul.mubr.f32.gmra.mxu0 %v3381
        %v3383 = vpop.f32.mrf.mxu0
        %v3384 = vadd.f32 %v3302, %v3383
        %v3385 = vpop.f32.mrf.mxu0
        %3386 = vmatprep.mubr.f32.mxu0 0.0
        %v3387 = vand.u32 %v3135, 4294901760
        %v3388 = vsub.f32 %v3135, %v3387
        %3389 = vmatmul.mubr.f32.gmra.mxu0 %v3388
        %v3390 = vpop.f32.mrf.mxu0
        %v3391 = vadd.f32 %v3308, %v3390
        %v3392 = vpop.f32.mrf.mxu0
        %3393 = vdwg.mxu0
        %3394 = vmatprep.subr.mxu0 0.0
        %3395 = vmatpush1.msra.mxu0 0.0
        %3396 = vmatprep.subr.mxu0 0.0
        %3397 = vmatpush1.msra.mxu0 0.0
        %3398 = vmatprep.subr.mxu0 0.0
        %3399 = vmatpush1.msra.mxu0 0.0
        %3400 = vmatprep.subr.mxu0 0.0
        %3401 = vmatpush1.msra.mxu0 0.0
        %3402 = vmatprep.subr.mxu0 0.0
        %3403 = vmatpush1.msra.mxu0 0.0
        %3404 = vmatprep.subr.mxu0 0.0
        %3405 = vmatpush1.msra.mxu0 0.0
        %3406 = vmatprep.subr.mxu0 0.0
        %3407 = vmatpush1.msra.mxu0 0.0
        %3408 = vmatprep.subr.mxu0 0.0
        %3409 = vmatpush1.msra.mxu0 0.0
        %3410 = vmatprep.subr.mxu0 0.0
        %3411 = vmatpush1.msra.mxu0 0.0
        %3412 = vmatprep.subr.mxu0 0.0
        %3413 = vmatpush1.msra.mxu0 0.0
        %3414 = vmatprep.subr.mxu0 0.0
        %3415 = vmatpush1.msra.mxu0 0.0
        %3416 = vmatprep.subr.mxu0 0.0
        %3417 = vmatpush1.msra.mxu0 0.0
        %3418 = vmatprep.subr.mxu0 0.0
        %3419 = vmatpush1.msra.mxu0 0.0
        %3420 = vmatprep.subr.mxu0 0.0
        %3421 = vmatpush1.msra.mxu0 0.0
        %3422 = vmatprep.subr.mxu0 0.0
        %v3423 = vand.u32 %v3130, 4294901760
        %3424 = vmatpush1.msra.mxu0 %v3423
        %3425 = vmatprep.subr.mxu0 0.0
        %v3426 = vand.u32 %v3129, 4294901760
        %3427 = vmatpush1.msra.mxu0 %v3426
        %3428 = vmatprep.subr.mxu0 0.0
        %3429 = vmatpush2.msra.mxu0 0.0
        %3430 = vmatprep.subr.mxu0 0.0
        %3431 = vmatpush2.msra.mxu0 0.0
        %3432 = vmatprep.subr.mxu0 0.0
        %3433 = vmatpush2.msra.mxu0 0.0
        %3434 = vmatprep.subr.mxu0 0.0
        %3435 = vmatpush2.msra.mxu0 0.0
        %3436 = vmatprep.subr.mxu0 0.0
        %3437 = vmatpush2.msra.mxu0 0.0
        %3438 = vmatprep.subr.mxu0 0.0
        %3439 = vmatpush2.msra.mxu0 0.0
        %3440 = vmatprep.subr.mxu0 0.0
        %3441 = vmatpush2.msra.mxu0 0.0
        %3442 = vmatprep.subr.mxu0 0.0
        %3443 = vmatpush2.msra.mxu0 0.0
        %3444 = vmatprep.subr.mxu0 0.0
        %3445 = vmatpush2.msra.mxu0 0.0
        %3446 = vmatprep.subr.mxu0 0.0
        %3447 = vmatpush2.msra.mxu0 0.0
        %3448 = vmatprep.subr.mxu0 0.0
        %3449 = vmatpush2.msra.mxu0 0.0
        %3450 = vmatprep.subr.mxu0 0.0
        %3451 = vmatpush2.msra.mxu0 0.0
        %3452 = vmatprep.subr.mxu0 0.0
        %3453 = vmatpush2.msra.mxu0 0.0
        %3454 = vmatprep.subr.mxu0 0.0
        %3455 = vmatpush2.msra.mxu0 0.0
        %3456 = vmatprep.subr.mxu0 0.0
        %3457 = vmatpush2.msra.mxu0 0.0
        %3458 = vmatprep.subr.mxu0 0.0
        %3459 = vmatpush2.msra.mxu0 0.0
        %3460 = vmatprep.mubr.f32.mxu0 0.0
        %v3461 = vand.u32 %v3132, 4294901760
        %v3462 = vsub.f32 %v3132, %v3461
        %v3463 = vand.u32 %v3462, 4294901760
        %3464 = vmatmul.mubr.f32.gmra.mxu0 %v3463
        %v3465 = vpop.f32.mrf.mxu0
        %v3466 = vadd.f32 %v3384, %v3465
        %v3467 = vpop.f32.mrf.mxu0
        %3468 = vmatprep.mubr.f32.mxu0 0.0
        %v3469 = vand.u32 %v3135, 4294901760
        %v3470 = vsub.f32 %v3135, %v3469
        %v3471 = vand.u32 %v3470, 4294901760
        %3472 = vmatmul.mubr.f32.gmra.mxu0 %v3471
        %v3473 = vpop.f32.mrf.mxu0
        %v3474 = vadd.f32 %v3391, %v3473
        %v3475 = vpop.f32.mrf.mxu0
        %3476 = vdwg.mxu0
        %3477 = vmatprep.subr.mxu0 0.0
        %3478 = vmatpush1.msra.mxu0 0.0
        %3479 = vmatprep.subr.mxu0 0.0
        %3480 = vmatpush1.msra.mxu0 0.0
        %3481 = vmatprep.subr.mxu0 0.0
        %3482 = vmatpush1.msra.mxu0 0.0
        %3483 = vmatprep.subr.mxu0 0.0
        %3484 = vmatpush1.msra.mxu0 0.0
        %3485 = vmatprep.subr.mxu0 0.0
        %3486 = vmatpush1.msra.mxu0 0.0
        %3487 = vmatprep.subr.mxu0 0.0
        %3488 = vmatpush1.msra.mxu0 0.0
        %3489 = vmatprep.subr.mxu0 0.0
        %3490 = vmatpush1.msra.mxu0 0.0
        %3491 = vmatprep.subr.mxu0 0.0
        %3492 = vmatpush1.msra.mxu0 0.0
        %3493 = vmatprep.subr.mxu0 0.0
        %3494 = vmatpush1.msra.mxu0 0.0
        %3495 = vmatprep.subr.mxu0 0.0
        %3496 = vmatpush1.msra.mxu0 0.0
        %3497 = vmatprep.subr.mxu0 0.0
        %3498 = vmatpush1.msra.mxu0 0.0
        %3499 = vmatprep.subr.mxu0 0.0
        %3500 = vmatpush1.msra.mxu0 0.0
        %3501 = vmatprep.subr.mxu0 0.0
        %3502 = vmatpush1.msra.mxu0 0.0
        %3503 = vmatprep.subr.mxu0 0.0
        %3504 = vmatpush1.msra.mxu0 0.0
        %3505 = vmatprep.subr.mxu0 0.0
        %v3506 = vand.u32 %v3130, 4294901760
        %v3507 = vsub.f32 %v3130, %v3506
        %v3508 = vand.u32 %v3507, 4294901760
        %3509 = vmatpush1.msra.mxu0 %v3508
        %3510 = vmatprep.subr.mxu0 0.0
        %v3511 = vand.u32 %v3129, 4294901760
        %v3512 = vsub.f32 %v3129, %v3511
        %v3513 = vand.u32 %v3512, 4294901760
        %3514 = vmatpush1.msra.mxu0 %v3513
        %3515 = vmatprep.subr.mxu0 0.0
        %3516 = vmatpush2.msra.mxu0 0.0
        %3517 = vmatprep.subr.mxu0 0.0
        %3518 = vmatpush2.msra.mxu0 0.0
        %3519 = vmatprep.subr.mxu0 0.0
        %3520 = vmatpush2.msra.mxu0 0.0
        %3521 = vmatprep.subr.mxu0 0.0
        %3522 = vmatpush2.msra.mxu0 0.0
        %3523 = vmatprep.subr.mxu0 0.0
        %3524 = vmatpush2.msra.mxu0 0.0
        %3525 = vmatprep.subr.mxu0 0.0
        %3526 = vmatpush2.msra.mxu0 0.0
        %3527 = vmatprep.subr.mxu0 0.0
        %3528 = vmatpush2.msra.mxu0 0.0
        %3529 = vmatprep.subr.mxu0 0.0
        %3530 = vmatpush2.msra.mxu0 0.0
        %3531 = vmatprep.subr.mxu0 0.0
        %3532 = vmatpush2.msra.mxu0 0.0
        %3533 = vmatprep.subr.mxu0 0.0
        %3534 = vmatpush2.msra.mxu0 0.0
        %3535 = vmatprep.subr.mxu0 0.0
        %3536 = vmatpush2.msra.mxu0 0.0
        %3537 = vmatprep.subr.mxu0 0.0
        %3538 = vmatpush2.msra.mxu0 0.0
        %3539 = vmatprep.subr.mxu0 0.0
        %3540 = vmatpush2.msra.mxu0 0.0
        %3541 = vmatprep.subr.mxu0 0.0
        %3542 = vmatpush2.msra.mxu0 0.0
        %3543 = vmatprep.subr.mxu0 0.0
        %3544 = vmatpush2.msra.mxu0 0.0
        %3545 = vmatprep.subr.mxu0 0.0
        %3546 = vmatpush2.msra.mxu0 0.0
        %3547 = vmatprep.mubr.f32.mxu0 0.0
        %v3548 = vand.u32 %v3132, 4294901760
        %3549 = vmatmul.mubr.f32.gmra.mxu0 %v3548
        %v3550 = vpop.f32.mrf.mxu0
        %v3551 = vadd.f32 %v3466, %v3550
        %v3552 = vpop.f32.mrf.mxu0
        %3553 = vmatprep.mubr.f32.mxu0 0.0
        %v3554 = vand.u32 %v3135, 4294901760
        %3555 = vmatmul.mubr.f32.gmra.mxu0 %v3554
        %v3556 = vpop.f32.mrf.mxu0
        %v3557 = vadd.f32 %v3474, %v3556
        %v3558 = vpop.f32.mrf.mxu0
        %3559 = vdwg.mxu0
        %3560 = vmatprep.subr.mxu0 0.0
        %3561 = vmatpush1.msra.mxu0 0.0
        %3562 = vmatprep.subr.mxu0 0.0
        %3563 = vmatpush1.msra.mxu0 0.0
        %3564 = vmatprep.subr.mxu0 0.0
        %3565 = vmatpush1.msra.mxu0 0.0
        %3566 = vmatprep.subr.mxu0 0.0
        %3567 = vmatpush1.msra.mxu0 0.0
        %3568 = vmatprep.subr.mxu0 0.0
        %3569 = vmatpush1.msra.mxu0 0.0
        %3570 = vmatprep.subr.mxu0 0.0
        %3571 = vmatpush1.msra.mxu0 0.0
        %3572 = vmatprep.subr.mxu0 0.0
        %3573 = vmatpush1.msra.mxu0 0.0
        %3574 = vmatprep.subr.mxu0 0.0
        %3575 = vmatpush1.msra.mxu0 0.0
        %3576 = vmatprep.subr.mxu0 0.0
        %3577 = vmatpush1.msra.mxu0 0.0
        %3578 = vmatprep.subr.mxu0 0.0
        %3579 = vmatpush1.msra.mxu0 0.0
        %3580 = vmatprep.subr.mxu0 0.0
        %3581 = vmatpush1.msra.mxu0 0.0
        %3582 = vmatprep.subr.mxu0 0.0
        %3583 = vmatpush1.msra.mxu0 0.0
        %3584 = vmatprep.subr.mxu0 0.0
        %3585 = vmatpush1.msra.mxu0 0.0
        %3586 = vmatprep.subr.mxu0 0.0
        %3587 = vmatpush1.msra.mxu0 0.0
        %3588 = vmatprep.subr.mxu0 0.0
        %v3589 = vand.u32 %v3130, 4294901760
        %3590 = vmatpush1.msra.mxu0 %v3589
        %3591 = vmatprep.subr.mxu0 0.0
        %v3592 = vand.u32 %v3129, 4294901760
        %3593 = vmatpush1.msra.mxu0 %v3592
        %3594 = vmatprep.subr.mxu0 0.0
        %3595 = vmatpush2.msra.mxu0 0.0
        %3596 = vmatprep.subr.mxu0 0.0
        %3597 = vmatpush2.msra.mxu0 0.0
        %3598 = vmatprep.subr.mxu0 0.0
        %3599 = vmatpush2.msra.mxu0 0.0
        %3600 = vmatprep.subr.mxu0 0.0
        %3601 = vmatpush2.msra.mxu0 0.0
        %3602 = vmatprep.subr.mxu0 0.0
        %3603 = vmatpush2.msra.mxu0 0.0
        %3604 = vmatprep.subr.mxu0 0.0
        %3605 = vmatpush2.msra.mxu0 0.0
        %3606 = vmatprep.subr.mxu0 0.0
        %3607 = vmatpush2.msra.mxu0 0.0
        %3608 = vmatprep.subr.mxu0 0.0
        %3609 = vmatpush2.msra.mxu0 0.0
        %3610 = vmatprep.subr.mxu0 0.0
        %3611 = vmatpush2.msra.mxu0 0.0
        %3612 = vmatprep.subr.mxu0 0.0
        %3613 = vmatpush2.msra.mxu0 0.0
        %3614 = vmatprep.subr.mxu0 0.0
        %3615 = vmatpush2.msra.mxu0 0.0
        %3616 = vmatprep.subr.mxu0 0.0
        %3617 = vmatpush2.msra.mxu0 0.0
        %3618 = vmatprep.subr.mxu0 0.0
        %3619 = vmatpush2.msra.mxu0 0.0
        %3620 = vmatprep.subr.mxu0 0.0
        %3621 = vmatpush2.msra.mxu0 0.0
        %3622 = vmatprep.subr.mxu0 0.0
        %3623 = vmatpush2.msra.mxu0 0.0
        %3624 = vmatprep.subr.mxu0 0.0
        %3625 = vmatpush2.msra.mxu0 0.0
        %3626 = vmatprep.mubr.f32.mxu0 0.0
        %v3627 = vand.u32 %v3132, 4294901760
        %3628 = vmatmul.mubr.f32.gmra.mxu0 %v3627
        %v3629 = vpop.f32.mrf.mxu0
        %v3630 = vadd.f32 %v3551, %v3629
        %v3631 = vpop.f32.mrf.mxu0
        %3632 = vmatprep.mubr.f32.mxu0 0.0
        %v3633 = vand.u32 %v3135, 4294901760
        %3634 = vmatmul.mubr.f32.gmra.mxu0 %v3633
        %v3635 = vpop.f32.mrf.mxu0
        %v3636 = vadd.f32 %v3557, %v3635
        %v3637 = vpop.f32.mrf.mxu0
        %3638 = vdwg.mxu0
        %v3639 = vld [vmem:[%s1] sm:$0xff]
        %v3641 = vsel %vm196, %v3639, 0
        %3643 = vmatprep.subr.mxu0 0.0
        %3644 = vmatpush1.msra.mxu0 0.0
        %3645 = vmatprep.subr.mxu0 0.0
        %3646 = vmatpush1.msra.mxu0 0.0
        %3647 = vmatprep.subr.mxu0 0.0
        %3648 = vmatpush1.msra.mxu0 0.0
        %3649 = vmatprep.subr.mxu0 0.0
        %3650 = vmatpush1.msra.mxu0 0.0
        %3651 = vmatprep.subr.mxu0 0.0
        %3652 = vmatpush1.msra.mxu0 0.0
        %3653 = vmatprep.subr.mxu0 0.0
        %3654 = vmatpush1.msra.mxu0 0.0
        %3655 = vmatprep.subr.mxu0 0.0
        %3656 = vmatpush1.msra.mxu0 0.0
        %3657 = vmatprep.subr.mxu0 0.0
        %3658 = vmatpush1.msra.mxu0 0.0
        %3659 = vmatprep.subr.mxu0 0.0
        %3660 = vmatpush1.msra.mxu0 0.0
        %3661 = vmatprep.subr.mxu0 0.0
        %3662 = vmatpush1.msra.mxu0 0.0
        %3663 = vmatprep.subr.mxu0 0.0
        %3664 = vmatpush1.msra.mxu0 0.0
        %3665 = vmatprep.subr.mxu0 0.0
        %3666 = vmatpush1.msra.mxu0 0.0
        %3667 = vmatprep.subr.mxu0 0.0
        %3668 = vmatpush1.msra.mxu0 0.0
        %3669 = vmatprep.subr.mxu0 0.0
        %3670 = vmatpush1.msra.mxu0 0.0
        %3671 = vmatprep.subr.mxu0 0.0
        %v3672 = vand.u32 %v3636, 4294901760
        %3673 = vmatpush1.msra.mxu0 %v3672
        %3674 = vmatprep.subr.mxu0 0.0
        %v3675 = vand.u32 %v3630, 4294901760
        %3676 = vmatpush1.msra.mxu0 %v3675
        %3677 = vmatprep.subr.mxu0 0.0
        %3678 = vmatpush2.msra.mxu0 0.0
        %3679 = vmatprep.subr.mxu0 0.0
        %3680 = vmatpush2.msra.mxu0 0.0
        %3681 = vmatprep.subr.mxu0 0.0
        %3682 = vmatpush2.msra.mxu0 0.0
        %3683 = vmatprep.subr.mxu0 0.0
        %3684 = vmatpush2.msra.mxu0 0.0
        %3685 = vmatprep.subr.mxu0 0.0
        %3686 = vmatpush2.msra.mxu0 0.0
        %3687 = vmatprep.subr.mxu0 0.0
        %3688 = vmatpush2.msra.mxu0 0.0
        %3689 = vmatprep.subr.mxu0 0.0
        %3690 = vmatpush2.msra.mxu0 0.0
        %3691 = vmatprep.subr.mxu0 0.0
        %3692 = vmatpush2.msra.mxu0 0.0
        %3693 = vmatprep.subr.mxu0 0.0
        %3694 = vmatpush2.msra.mxu0 0.0
        %3695 = vmatprep.subr.mxu0 0.0
        %3696 = vmatpush2.msra.mxu0 0.0
        %3697 = vmatprep.subr.mxu0 0.0
        %3698 = vmatpush2.msra.mxu0 0.0
        %3699 = vmatprep.subr.mxu0 0.0
        %3700 = vmatpush2.msra.mxu0 0.0
        %3701 = vmatprep.subr.mxu0 0.0
        %3702 = vmatpush2.msra.mxu0 0.0
        %3703 = vmatprep.subr.mxu0 0.0
        %3704 = vmatpush2.msra.mxu0 0.0
        %3705 = vmatprep.subr.mxu0 0.0
        %3706 = vmatpush2.msra.mxu0 0.0
        %3707 = vmatprep.subr.mxu0 0.0
        %3708 = vmatpush2.msra.mxu0 0.0
        %3709 = vmatprep.mubr.f32.mxu0 0.0
        %v3710 = vand.u32 %v3641, 4294901760
        %v3711 = vsub.f32 %v3641, %v3710
        %v3712 = vand.u32 %v3711, 4294901760
        %v3713 = vsub.f32 %v3711, %v3712
        %v3714 = vand.u32 %v3713, 4294901760
        %3715 = vmatmul.mubr.f32.gmra.mxu0 %v3714
        %v3716 = vpop.f32.mrf.mxu0
        %v3717 = vadd.f32 0.0, %v3716
        %v3718 = vpop.f32.mrf.mxu0
        %3719 = vdwg.mxu0
        %3720 = vmatprep.subr.mxu0 0.0
        %3721 = vmatpush1.msra.mxu0 0.0
        %3722 = vmatprep.subr.mxu0 0.0
        %3723 = vmatpush1.msra.mxu0 0.0
        %3724 = vmatprep.subr.mxu0 0.0
        %3725 = vmatpush1.msra.mxu0 0.0
        %3726 = vmatprep.subr.mxu0 0.0
        %3727 = vmatpush1.msra.mxu0 0.0
        %3728 = vmatprep.subr.mxu0 0.0
        %3729 = vmatpush1.msra.mxu0 0.0
        %3730 = vmatprep.subr.mxu0 0.0
        %3731 = vmatpush1.msra.mxu0 0.0
        %3732 = vmatprep.subr.mxu0 0.0
        %3733 = vmatpush1.msra.mxu0 0.0
        %3734 = vmatprep.subr.mxu0 0.0
        %3735 = vmatpush1.msra.mxu0 0.0
        %3736 = vmatprep.subr.mxu0 0.0
        %3737 = vmatpush1.msra.mxu0 0.0
        %3738 = vmatprep.subr.mxu0 0.0
        %3739 = vmatpush1.msra.mxu0 0.0
        %3740 = vmatprep.subr.mxu0 0.0
        %3741 = vmatpush1.msra.mxu0 0.0
        %3742 = vmatprep.subr.mxu0 0.0
        %3743 = vmatpush1.msra.mxu0 0.0
        %3744 = vmatprep.subr.mxu0 0.0
        %3745 = vmatpush1.msra.mxu0 0.0
        %3746 = vmatprep.subr.mxu0 0.0
        %3747 = vmatpush1.msra.mxu0 0.0
        %3748 = vmatprep.subr.mxu0 0.0
        %v3749 = vand.u32 %v3636, 4294901760
        %v3750 = vsub.f32 %v3636, %v3749
        %v3751 = vand.u32 %v3750, 4294901760
        %v3752 = vsub.f32 %v3750, %v3751
        %v3753 = vand.u32 %v3752, 4294901760
        %3754 = vmatpush1.msra.mxu0 %v3753
        %3755 = vmatprep.subr.mxu0 0.0
        %v3756 = vand.u32 %v3630, 4294901760
        %v3757 = vsub.f32 %v3630, %v3756
        %v3758 = vand.u32 %v3757, 4294901760
        %v3759 = vsub.f32 %v3757, %v3758
        %v3760 = vand.u32 %v3759, 4294901760
        %3761 = vmatpush1.msra.mxu0 %v3760
        %3762 = vmatprep.subr.mxu0 0.0
        %3763 = vmatpush2.msra.mxu0 0.0
        %3764 = vmatprep.subr.mxu0 0.0
        %3765 = vmatpush2.msra.mxu0 0.0
        %3766 = vmatprep.subr.mxu0 0.0
        %3767 = vmatpush2.msra.mxu0 0.0
        %3768 = vmatprep.subr.mxu0 0.0
        %3769 = vmatpush2.msra.mxu0 0.0
        %3770 = vmatprep.subr.mxu0 0.0
        %3771 = vmatpush2.msra.mxu0 0.0
        %3772 = vmatprep.subr.mxu0 0.0
        %3773 = vmatpush2.msra.mxu0 0.0
        %3774 = vmatprep.subr.mxu0 0.0
        %3775 = vmatpush2.msra.mxu0 0.0
        %3776 = vmatprep.subr.mxu0 0.0
        %3777 = vmatpush2.msra.mxu0 0.0
        %3778 = vmatprep.subr.mxu0 0.0
        %3779 = vmatpush2.msra.mxu0 0.0
        %3780 = vmatprep.subr.mxu0 0.0
        %3781 = vmatpush2.msra.mxu0 0.0
        %3782 = vmatprep.subr.mxu0 0.0
        %3783 = vmatpush2.msra.mxu0 0.0
        %3784 = vmatprep.subr.mxu0 0.0
        %3785 = vmatpush2.msra.mxu0 0.0
        %3786 = vmatprep.subr.mxu0 0.0
        %3787 = vmatpush2.msra.mxu0 0.0
        %3788 = vmatprep.subr.mxu0 0.0
        %3789 = vmatpush2.msra.mxu0 0.0
        %3790 = vmatprep.subr.mxu0 0.0
        %3791 = vmatpush2.msra.mxu0 0.0
        %3792 = vmatprep.subr.mxu0 0.0
        %3793 = vmatpush2.msra.mxu0 0.0
        %3794 = vmatprep.mubr.f32.mxu0 0.0
        %v3795 = vand.u32 %v3641, 4294901760
        %3796 = vmatmul.mubr.f32.gmra.mxu0 %v3795
        %v3797 = vpop.f32.mrf.mxu0
        %v3798 = vadd.f32 %v3717, %v3797
        %v3799 = vpop.f32.mrf.mxu0
        %3800 = vdwg.mxu0
        %3801 = vmatprep.subr.mxu0 0.0
        %3802 = vmatpush1.msra.mxu0 0.0
        %3803 = vmatprep.subr.mxu0 0.0
        %3804 = vmatpush1.msra.mxu0 0.0
        %3805 = vmatprep.subr.mxu0 0.0
        %3806 = vmatpush1.msra.mxu0 0.0
        %3807 = vmatprep.subr.mxu0 0.0
        %3808 = vmatpush1.msra.mxu0 0.0
        %3809 = vmatprep.subr.mxu0 0.0
        %3810 = vmatpush1.msra.mxu0 0.0
        %3811 = vmatprep.subr.mxu0 0.0
        %3812 = vmatpush1.msra.mxu0 0.0
        %3813 = vmatprep.subr.mxu0 0.0
        %3814 = vmatpush1.msra.mxu0 0.0
        %3815 = vmatprep.subr.mxu0 0.0
        %3816 = vmatpush1.msra.mxu0 0.0
        %3817 = vmatprep.subr.mxu0 0.0
        %3818 = vmatpush1.msra.mxu0 0.0
        %3819 = vmatprep.subr.mxu0 0.0
        %3820 = vmatpush1.msra.mxu0 0.0
        %3821 = vmatprep.subr.mxu0 0.0
        %3822 = vmatpush1.msra.mxu0 0.0
        %3823 = vmatprep.subr.mxu0 0.0
        %3824 = vmatpush1.msra.mxu0 0.0
        %3825 = vmatprep.subr.mxu0 0.0
        %3826 = vmatpush1.msra.mxu0 0.0
        %3827 = vmatprep.subr.mxu0 0.0
        %3828 = vmatpush1.msra.mxu0 0.0
        %3829 = vmatprep.subr.mxu0 0.0
        %v3830 = vand.u32 %v3636, 4294901760
        %v3831 = vsub.f32 %v3636, %v3830
        %3832 = vmatpush1.msra.mxu0 %v3831
        %3833 = vmatprep.subr.mxu0 0.0
        %v3834 = vand.u32 %v3630, 4294901760
        %v3835 = vsub.f32 %v3630, %v3834
        %3836 = vmatpush1.msra.mxu0 %v3835
        %3837 = vmatprep.subr.mxu0 0.0
        %3838 = vmatpush2.msra.mxu0 0.0
        %3839 = vmatprep.subr.mxu0 0.0
        %3840 = vmatpush2.msra.mxu0 0.0
        %3841 = vmatprep.subr.mxu0 0.0
        %3842 = vmatpush2.msra.mxu0 0.0
        %3843 = vmatprep.subr.mxu0 0.0
        %3844 = vmatpush2.msra.mxu0 0.0
        %3845 = vmatprep.subr.mxu0 0.0
        %3846 = vmatpush2.msra.mxu0 0.0
        %3847 = vmatprep.subr.mxu0 0.0
        %3848 = vmatpush2.msra.mxu0 0.0
        %3849 = vmatprep.subr.mxu0 0.0
        %3850 = vmatpush2.msra.mxu0 0.0
        %3851 = vmatprep.subr.mxu0 0.0
        %3852 = vmatpush2.msra.mxu0 0.0
        %3853 = vmatprep.subr.mxu0 0.0
        %3854 = vmatpush2.msra.mxu0 0.0
        %3855 = vmatprep.subr.mxu0 0.0
        %3856 = vmatpush2.msra.mxu0 0.0
        %3857 = vmatprep.subr.mxu0 0.0
        %3858 = vmatpush2.msra.mxu0 0.0
        %3859 = vmatprep.subr.mxu0 0.0
        %3860 = vmatpush2.msra.mxu0 0.0
        %3861 = vmatprep.subr.mxu0 0.0
        %3862 = vmatpush2.msra.mxu0 0.0
        %3863 = vmatprep.subr.mxu0 0.0
        %3864 = vmatpush2.msra.mxu0 0.0
        %3865 = vmatprep.subr.mxu0 0.0
        %3866 = vmatpush2.msra.mxu0 0.0
        %3867 = vmatprep.subr.mxu0 0.0
        %3868 = vmatpush2.msra.mxu0 0.0
        %3869 = vmatprep.mubr.f32.mxu0 0.0
        %v3870 = vand.u32 %v3641, 4294901760
        %v3871 = vsub.f32 %v3641, %v3870
        %3872 = vmatmul.mubr.f32.gmra.mxu0 %v3871
        %v3873 = vpop.f32.mrf.mxu0
        %v3874 = vadd.f32 %v3798, %v3873
        %v3875 = vpop.f32.mrf.mxu0
        %3876 = vdwg.mxu0
        %3877 = vmatprep.subr.mxu0 0.0
        %3878 = vmatpush1.msra.mxu0 0.0
        %3879 = vmatprep.subr.mxu0 0.0
        %3880 = vmatpush1.msra.mxu0 0.0
        %3881 = vmatprep.subr.mxu0 0.0
        %3882 = vmatpush1.msra.mxu0 0.0
        %3883 = vmatprep.subr.mxu0 0.0
        %3884 = vmatpush1.msra.mxu0 0.0
        %3885 = vmatprep.subr.mxu0 0.0
        %3886 = vmatpush1.msra.mxu0 0.0
        %3887 = vmatprep.subr.mxu0 0.0
        %3888 = vmatpush1.msra.mxu0 0.0
        %3889 = vmatprep.subr.mxu0 0.0
        %3890 = vmatpush1.msra.mxu0 0.0
        %3891 = vmatprep.subr.mxu0 0.0
        %3892 = vmatpush1.msra.mxu0 0.0
        %3893 = vmatprep.subr.mxu0 0.0
        %3894 = vmatpush1.msra.mxu0 0.0
        %3895 = vmatprep.subr.mxu0 0.0
        %3896 = vmatpush1.msra.mxu0 0.0
        %3897 = vmatprep.subr.mxu0 0.0
        %3898 = vmatpush1.msra.mxu0 0.0
        %3899 = vmatprep.subr.mxu0 0.0
        %3900 = vmatpush1.msra.mxu0 0.0
        %3901 = vmatprep.subr.mxu0 0.0
        %3902 = vmatpush1.msra.mxu0 0.0
        %3903 = vmatprep.subr.mxu0 0.0
        %3904 = vmatpush1.msra.mxu0 0.0
        %3905 = vmatprep.subr.mxu0 0.0
        %v3906 = vand.u32 %v3636, 4294901760
        %3907 = vmatpush1.msra.mxu0 %v3906
        %3908 = vmatprep.subr.mxu0 0.0
        %v3909 = vand.u32 %v3630, 4294901760
        %3910 = vmatpush1.msra.mxu0 %v3909
        %3911 = vmatprep.subr.mxu0 0.0
        %3912 = vmatpush2.msra.mxu0 0.0
        %3913 = vmatprep.subr.mxu0 0.0
        %3914 = vmatpush2.msra.mxu0 0.0
        %3915 = vmatprep.subr.mxu0 0.0
        %3916 = vmatpush2.msra.mxu0 0.0
        %3917 = vmatprep.subr.mxu0 0.0
        %3918 = vmatpush2.msra.mxu0 0.0
        %3919 = vmatprep.subr.mxu0 0.0
        %3920 = vmatpush2.msra.mxu0 0.0
        %3921 = vmatprep.subr.mxu0 0.0
        %3922 = vmatpush2.msra.mxu0 0.0
        %3923 = vmatprep.subr.mxu0 0.0
        %3924 = vmatpush2.msra.mxu0 0.0
        %3925 = vmatprep.subr.mxu0 0.0
        %3926 = vmatpush2.msra.mxu0 0.0
        %3927 = vmatprep.subr.mxu0 0.0
        %3928 = vmatpush2.msra.mxu0 0.0
        %3929 = vmatprep.subr.mxu0 0.0
        %3930 = vmatpush2.msra.mxu0 0.0
        %3931 = vmatprep.subr.mxu0 0.0
        %3932 = vmatpush2.msra.mxu0 0.0
        %3933 = vmatprep.subr.mxu0 0.0
        %3934 = vmatpush2.msra.mxu0 0.0
        %3935 = vmatprep.subr.mxu0 0.0
        %3936 = vmatpush2.msra.mxu0 0.0
        %3937 = vmatprep.subr.mxu0 0.0
        %3938 = vmatpush2.msra.mxu0 0.0
        %3939 = vmatprep.subr.mxu0 0.0
        %3940 = vmatpush2.msra.mxu0 0.0
        %3941 = vmatprep.subr.mxu0 0.0
        %3942 = vmatpush2.msra.mxu0 0.0
        %3943 = vmatprep.mubr.f32.mxu0 0.0
        %v3944 = vand.u32 %v3641, 4294901760
        %v3945 = vsub.f32 %v3641, %v3944
        %v3946 = vand.u32 %v3945, 4294901760
        %3947 = vmatmul.mubr.f32.gmra.mxu0 %v3946
        %v3948 = vpop.f32.mrf.mxu0
        %v3949 = vadd.f32 %v3874, %v3948
        %v3950 = vpop.f32.mrf.mxu0
        %3951 = vdwg.mxu0
        %3952 = vmatprep.subr.mxu0 0.0
        %3953 = vmatpush1.msra.mxu0 0.0
        %3954 = vmatprep.subr.mxu0 0.0
        %3955 = vmatpush1.msra.mxu0 0.0
        %3956 = vmatprep.subr.mxu0 0.0
        %3957 = vmatpush1.msra.mxu0 0.0
        %3958 = vmatprep.subr.mxu0 0.0
        %3959 = vmatpush1.msra.mxu0 0.0
        %3960 = vmatprep.subr.mxu0 0.0
        %3961 = vmatpush1.msra.mxu0 0.0
        %3962 = vmatprep.subr.mxu0 0.0
        %3963 = vmatpush1.msra.mxu0 0.0
        %3964 = vmatprep.subr.mxu0 0.0
        %3965 = vmatpush1.msra.mxu0 0.0
        %3966 = vmatprep.subr.mxu0 0.0
        %3967 = vmatpush1.msra.mxu0 0.0
        %3968 = vmatprep.subr.mxu0 0.0
        %3969 = vmatpush1.msra.mxu0 0.0
        %3970 = vmatprep.subr.mxu0 0.0
        %3971 = vmatpush1.msra.mxu0 0.0
        %3972 = vmatprep.subr.mxu0 0.0
        %3973 = vmatpush1.msra.mxu0 0.0
        %3974 = vmatprep.subr.mxu0 0.0
        %3975 = vmatpush1.msra.mxu0 0.0
        %3976 = vmatprep.subr.mxu0 0.0
        %3977 = vmatpush1.msra.mxu0 0.0
        %3978 = vmatprep.subr.mxu0 0.0
        %3979 = vmatpush1.msra.mxu0 0.0
        %3980 = vmatprep.subr.mxu0 0.0
        %v3981 = vand.u32 %v3636, 4294901760
        %v3982 = vsub.f32 %v3636, %v3981
        %v3983 = vand.u32 %v3982, 4294901760
        %3984 = vmatpush1.msra.mxu0 %v3983
        %3985 = vmatprep.subr.mxu0 0.0
        %v3986 = vand.u32 %v3630, 4294901760
        %v3987 = vsub.f32 %v3630, %v3986
        %v3988 = vand.u32 %v3987, 4294901760
        %3989 = vmatpush1.msra.mxu0 %v3988
        %3990 = vmatprep.subr.mxu0 0.0
        %3991 = vmatpush2.msra.mxu0 0.0
        %3992 = vmatprep.subr.mxu0 0.0
        %3993 = vmatpush2.msra.mxu0 0.0
        %3994 = vmatprep.subr.mxu0 0.0
        %3995 = vmatpush2.msra.mxu0 0.0
        %3996 = vmatprep.subr.mxu0 0.0
        %3997 = vmatpush2.msra.mxu0 0.0
        %3998 = vmatprep.subr.mxu0 0.0
        %3999 = vmatpush2.msra.mxu0 0.0
        %4000 = vmatprep.subr.mxu0 0.0
        %4001 = vmatpush2.msra.mxu0 0.0
        %4002 = vmatprep.subr.mxu0 0.0
        %4003 = vmatpush2.msra.mxu0 0.0
        %4004 = vmatprep.subr.mxu0 0.0
        %4005 = vmatpush2.msra.mxu0 0.0
        %4006 = vmatprep.subr.mxu0 0.0
        %4007 = vmatpush2.msra.mxu0 0.0
        %4008 = vmatprep.subr.mxu0 0.0
        %4009 = vmatpush2.msra.mxu0 0.0
        %4010 = vmatprep.subr.mxu0 0.0
        %4011 = vmatpush2.msra.mxu0 0.0
        %4012 = vmatprep.subr.mxu0 0.0
        %4013 = vmatpush2.msra.mxu0 0.0
        %4014 = vmatprep.subr.mxu0 0.0
        %4015 = vmatpush2.msra.mxu0 0.0
        %4016 = vmatprep.subr.mxu0 0.0
        %4017 = vmatpush2.msra.mxu0 0.0
        %4018 = vmatprep.subr.mxu0 0.0
        %4019 = vmatpush2.msra.mxu0 0.0
        %4020 = vmatprep.subr.mxu0 0.0
        %4021 = vmatpush2.msra.mxu0 0.0
        %4022 = vmatprep.mubr.f32.mxu0 0.0
        %v4023 = vand.u32 %v3641, 4294901760
        %4024 = vmatmul.mubr.f32.gmra.mxu0 %v4023
        %v4025 = vpop.f32.mrf.mxu0
        %v4026 = vadd.f32 %v3949, %v4025
        %v4027 = vpop.f32.mrf.mxu0
        %4028 = vdwg.mxu0
        %4029 = vmatprep.subr.mxu0 0.0
        %4030 = vmatpush1.msra.mxu0 0.0
        %4031 = vmatprep.subr.mxu0 0.0
        %4032 = vmatpush1.msra.mxu0 0.0
        %4033 = vmatprep.subr.mxu0 0.0
        %4034 = vmatpush1.msra.mxu0 0.0
        %4035 = vmatprep.subr.mxu0 0.0
        %4036 = vmatpush1.msra.mxu0 0.0
        %4037 = vmatprep.subr.mxu0 0.0
        %4038 = vmatpush1.msra.mxu0 0.0
        %4039 = vmatprep.subr.mxu0 0.0
        %4040 = vmatpush1.msra.mxu0 0.0
        %4041 = vmatprep.subr.mxu0 0.0
        %4042 = vmatpush1.msra.mxu0 0.0
        %4043 = vmatprep.subr.mxu0 0.0
        %4044 = vmatpush1.msra.mxu0 0.0
        %4045 = vmatprep.subr.mxu0 0.0
        %4046 = vmatpush1.msra.mxu0 0.0
        %4047 = vmatprep.subr.mxu0 0.0
        %4048 = vmatpush1.msra.mxu0 0.0
        %4049 = vmatprep.subr.mxu0 0.0
        %4050 = vmatpush1.msra.mxu0 0.0
        %4051 = vmatprep.subr.mxu0 0.0
        %4052 = vmatpush1.msra.mxu0 0.0
        %4053 = vmatprep.subr.mxu0 0.0
        %4054 = vmatpush1.msra.mxu0 0.0
        %4055 = vmatprep.subr.mxu0 0.0
        %4056 = vmatpush1.msra.mxu0 0.0
        %4057 = vmatprep.subr.mxu0 0.0
        %v4058 = vand.u32 %v3636, 4294901760
        %4059 = vmatpush1.msra.mxu0 %v4058
        %4060 = vmatprep.subr.mxu0 0.0
        %v4061 = vand.u32 %v3630, 4294901760
        %4062 = vmatpush1.msra.mxu0 %v4061
        %4063 = vmatprep.subr.mxu0 0.0
        %4064 = vmatpush2.msra.mxu0 0.0
        %4065 = vmatprep.subr.mxu0 0.0
        %4066 = vmatpush2.msra.mxu0 0.0
        %4067 = vmatprep.subr.mxu0 0.0
        %4068 = vmatpush2.msra.mxu0 0.0
        %4069 = vmatprep.subr.mxu0 0.0
        %4070 = vmatpush2.msra.mxu0 0.0
        %4071 = vmatprep.subr.mxu0 0.0
        %4072 = vmatpush2.msra.mxu0 0.0
        %4073 = vmatprep.subr.mxu0 0.0
        %4074 = vmatpush2.msra.mxu0 0.0
        %4075 = vmatprep.subr.mxu0 0.0
        %4076 = vmatpush2.msra.mxu0 0.0
        %4077 = vmatprep.subr.mxu0 0.0
        %4078 = vmatpush2.msra.mxu0 0.0
        %4079 = vmatprep.subr.mxu0 0.0
        %4080 = vmatpush2.msra.mxu0 0.0
        %4081 = vmatprep.subr.mxu0 0.0
        %4082 = vmatpush2.msra.mxu0 0.0
        %4083 = vmatprep.subr.mxu0 0.0
        %4084 = vmatpush2.msra.mxu0 0.0
        %4085 = vmatprep.subr.mxu0 0.0
        %4086 = vmatpush2.msra.mxu0 0.0
        %4087 = vmatprep.subr.mxu0 0.0
        %4088 = vmatpush2.msra.mxu0 0.0
        %4089 = vmatprep.subr.mxu0 0.0
        %4090 = vmatpush2.msra.mxu0 0.0
        %4091 = vmatprep.subr.mxu0 0.0
        %4092 = vmatpush2.msra.mxu0 0.0
        %4093 = vmatprep.subr.mxu0 0.0
        %4094 = vmatpush2.msra.mxu0 0.0
        %4095 = vmatprep.mubr.f32.mxu0 0.0
        %v4096 = vand.u32 %v3641, 4294901760
        %4097 = vmatmul.mubr.f32.gmra.mxu0 %v4096
        %v4098 = vpop.f32.mrf.mxu0
        %v4099 = vadd.f32 %v4026, %v4098
        %v4100 = vpop.f32.mrf.mxu0
        %4101 = vdwg.mxu0
        %s4102 = scalar_lea.vmem %s189, 24 [#allocation5]
        %4103 = vst.msk [vmem:[%s4102] sm:$0xff] %vm1168, %v4099
        %s4104 = sand.u32 %s96, 1
        %s4105 = scalar_lea.sflag [#allocation4], %s4104
        %s4106 = sand.u32 %s96, 1
        %s4107 = smul.addr %s4106, 32
        %s4108 = scalar_lea.vmem [#allocation5], %s4107
        // Predicated region
        $region37: #{tpu_custom_call.1} parent=31 // pred_check
          %p4109 = pneg %p106
        $region38: #{tpu_custom_call.1} parent=31 // pred_check_branch
          %4111 = sbr.rel (%p4109) target = $region40
        $region39: #{tpu_custom_call.1} parent=31 // pred_region
          %s4112 = smul.u32 4, %s20
          %s4114 = ssub.s32 512, 512
          %4115 = vsyncadd %s4105, %s4114
          %s4116 = smul.addr %s4112, 128
          %s4117 = scalar_lea.hbm %s3, %s4116
          %s4118 = sshll.u32 %s4108, 4
          %s4119 = int_to_ptr.vmem [resolvable:$true] %s4118
          %4124 = dma.vmem_to_hbm [thread:$0]  %s4119, 512, %s4117, %s4105, 128, 128, 8
        $region40: #{tpu_custom_call.1} parent=31 // pred_fallthru
          _
      $region32: #{tpu_custom_call.1} parent=5 // pred_fallthru
        _
      %p4125 = scmp.le.s32.totalorder 2, %s15
      // Predicated region
      $region41: #{tpu_custom_call.1} parent=5 // pred_check
        %p4126 = pneg %p4125
      $region42: #{tpu_custom_call.1} parent=5 // pred_check_branch
        %4128 = sbr.rel (%p4126) target = $region44
      $region43: #{tpu_custom_call.1} parent=5 // pred_region
        %s4129 = ssub.s32 %s15, 2
        // Predicated region
        $region45: #{tpu_custom_call.1} parent=43 // pred_check
          %p4130 = pneg %p112
        $region46: #{tpu_custom_call.1} parent=43 // pred_check_branch
          %4132 = sbr.rel (%p4130) target = $region48
        $region47: #{tpu_custom_call.1} parent=43 // pred_region
          %s4133 = sand.u32 %s97, 1
          %s4134 = scalar_lea.sflag [#allocation4], %s4133
          %s4135 = sand.u32 %s97, 1
          %s4136 = smul.addr %s4135, 32
          %s4137 = scalar_lea.vmem [#allocation5], %s4136
          %4138 = dma.done %s4134, 512
        $region48: #{tpu_custom_call.1} parent=43 // pred_fallthru
          _
      $region44: #{tpu_custom_call.1} parent=5 // pred_fallthru
        _
    $region6: #{tpu_custom_call.1} parent=1 // loop_footer
      %s19 = sadd.s32 1, %s15
    $region7: #{tpu_custom_call.1} parent=1 // loop_footer_branch
      %14 = sbr.rel target = $region3
    $region8: #{tpu_custom_call.1} parent=1 // loop_exit
      _
    %4139 = vsyncpa [#allocation3], 1
    %s4140 = scalar_lea.sflag [#allocation3], 1
    %4141 = vsyncpa %s4140, 1
    %4142 = vsyncpa [#allocation4], 1
    %s4143 = scalar_lea.sflag [#allocation4], 1
    %4144 = vsyncpa %s4143, 1

</llo_original>
